<compile_context>
chip_gen: v7x
topology: tpu7x:2x2x1
jax: 0.10.0
libtpu: 0.0.40
codegen_flags: <defaults>
</compile_context>

<pallas_src>
import functools

import numpy as np
import jax
import jax.numpy as jnp
from jax import lax
from jax.experimental import pallas as pl
from jax.experimental.pallas import tpu as pltpu


# -----------------------------------------------------------------------------
# Symbolic part: discrete feature domains, labels, decision tree classify_11
# -----------------------------------------------------------------------------
l11_margin = ['entire', 'indented', 'lobed', 'serrate', 'serrulate', 'undulate']
l11_shape = ['elliptical', 'lanceolate', 'oblong', 'obovate', 'ovate']
l11_texture = ['glossy', 'leathery', 'smooth', 'rough']
l11_labels = ['Alstonia Scholaris', 'Citrus limon', 'Jatropha curcas',
              'Mangifera indica', 'Ocimum basilicum', 'Platanus orientalis',
              'Pongamia Pinnata', 'Psidium guajava', 'Punica granatum',
              'Syzygium cumini', 'Terminalia Arjuna']


def classify_11(margin, shape, texture):
    if margin == 'serrate':
        return 'Ocimum basilicum'
    elif margin == 'indented':
        return 'Jatropha curcas'
    elif margin == 'lobed':
        return 'Platanus orientalis'
    elif margin == 'serrulate':
        return 'Citrus limon'
    elif margin == 'entire':
        if shape == 'ovate':
            return 'Pongamia Pinnata'
        elif shape == 'lanceolate':
            return 'Mangifera indica'
        elif shape == 'oblong':
            return 'Syzygium cumini'
        elif shape == 'obovate':
            return 'Psidium guajava'
        else:
            if texture == 'leathery':
                return 'Alstonia Scholaris'
            elif texture == 'rough':
                return 'Terminalia Arjuna'
            elif texture == 'glossy':
                return 'Citrus limon'
            else:
                return 'Punica granatum'
    else:  # undulate
        if shape == 'elliptical':
            return 'Terminalia Arjuna'
        elif shape == 'lanceolate':
            return 'Mangifera indica'
        else:
            return 'Syzygium cumini'


def build_blackbox_constants():
    """Expansion matrices + one-hot decision-tree matrix for the exact blackbox."""
    M1, M2, M3, L = len(l11_margin), len(l11_shape), len(l11_texture), len(l11_labels)
    J = M1 * M2 * M3
    e1 = np.zeros((M1, J), np.float32)
    e2 = np.zeros((M2, J), np.float32)
    e3 = np.zeros((M3, J), np.float32)
    mp = np.zeros((J, L), np.float32)
    for m in range(M1):
        for s in range(M2):
            for t in range(M3):
                j = (m * M2 + s) * M3 + t
                e1[m, j] = 1.0
                e2[s, j] = 1.0
                e3[t, j] = 1.0
                y = l11_labels.index(classify_11(l11_margin[m], l11_shape[s], l11_texture[t]))
                mp[j, y] = 1.0
    return (jnp.asarray(e1), jnp.asarray(e2), jnp.asarray(e3), jnp.asarray(mp))


# -----------------------------------------------------------------------------
# Pallas kernels
# -----------------------------------------------------------------------------
def _conv_relu_pool_kernel(x_ref, w_ref, b_ref, o_ref, scr_ref, *,
                           pool_w, n_groups, group_c):
    """Fused conv-as-matmul + bias + ReLU + 3x3 MaxPool for one 3-conv-row band.

    x_ref:   (3, ow, K)   im2col patches of the 3 conv rows feeding one pooled row
    w_ref:   (K, N)       conv weights as a matrix
    b_ref:   (1, N)
    scr_ref: (ow, N)      VMEM scratch with the row-pooled activation
    o_ref:   (pool_w, N)                    if n_groups == 1
             (n_groups, pool_w, group_c)    if n_groups  > 1 (per-net channel split)
    """
    w = w_ref[...]
    # conv rows of the band -> max over the 3 rows (bias/ReLU commute with max)
    acc = jnp.dot(x_ref[0], w, preferred_element_type=jnp.float32)
    acc = jnp.maximum(acc, jnp.dot(x_ref[1], w, preferred_element_type=jnp.float32))
    acc = jnp.maximum(acc, jnp.dot(x_ref[2], w, preferred_element_type=jnp.float32))
    scr_ref[...] = jnp.maximum(acc + b_ref[...], 0.0)
    # 3-wide column pool via stride-3 sublane reads of the scratch
    pooled = jnp.maximum(
        jnp.maximum(scr_ref[pl.ds(0, pool_w, stride=3)],
                    scr_ref[pl.ds(1, pool_w, stride=3)]),
        scr_ref[pl.ds(2, pool_w, stride=3)])
    if n_groups == 1:
        o_ref[...] = pooled
    else:
        for g in range(n_groups):
            o_ref[g] = pooled[:, g * group_c:(g + 1) * group_c]


def conv1_relu_pool(patches, w, b, n_groups=3):
    """conv1 for all three nets at once (weights concatenated along cout).

    patches: (B, oh, ow, K) shared im2col; output (3, B, oh//3, ow//3, cout/3)
    so downstream per-net stages need no XLA slicing.
    """
    B, oh, ow, K = patches.shape
    N = w.shape[-1]
    gc = N // n_groups
    ph, pw = oh // 3, ow // 3
    return pl.pallas_call(
        functools.partial(_conv_relu_pool_kernel, pool_w=pw,
                          n_groups=n_groups, group_c=gc),
        out_shape=jax.ShapeDtypeStruct((n_groups, B, ph, pw, gc), jnp.float32),
        grid=(B, ph),
        in_specs=[pl.BlockSpec((None, 3, ow, K), lambda bi, r: (bi, r, 0, 0)),
                  pl.BlockSpec((K, N), lambda bi, r: (0, 0)),
                  pl.BlockSpec((1, N), lambda bi, r: (0, 0))],
        out_specs=pl.BlockSpec((n_groups, None, None, pw, gc),
                               lambda bi, r: (0, bi, r, 0, 0)),
        scratch_shapes=[pltpu.VMEM((ow, N), jnp.float32)],
        compiler_params=pltpu.CompilerParams(
            dimension_semantics=("parallel", "parallel")),
    )(patches, w, b)


def grouped_conv_relu_pool(patches, w, b):
    """Per-net conv+ReLU+pool: net axis on the grid, only real channels in K.

    patches: (G, B, oh, ow, K); w: (G, K, N); b: (G, 1, N)
    returns  (G, B, oh//3, ow//3, N)
    """
    G, B, oh, ow, K = patches.shape
    N = w.shape[-1]
    ph, pw = oh // 3, ow // 3
    return pl.pallas_call(
        functools.partial(_conv_relu_pool_kernel, pool_w=pw,
                          n_groups=1, group_c=N),
        out_shape=jax.ShapeDtypeStruct((G, B, ph, pw, N), jnp.float32),
        grid=(B, G, ph),
        in_specs=[pl.BlockSpec((None, None, 3, ow, K),
                               lambda bi, g, r: (g, bi, r, 0, 0)),
                  pl.BlockSpec((None, K, N), lambda bi, g, r: (g, 0, 0)),
                  pl.BlockSpec((None, 1, N), lambda bi, g, r: (g, 0, 0))],
        out_specs=pl.BlockSpec((None, None, None, pw, N),
                               lambda bi, g, r: (g, bi, r, 0, 0)),
        scratch_shapes=[pltpu.VMEM((ow, N), jnp.float32)],
        compiler_params=pltpu.CompilerParams(
            dimension_semantics=("parallel", "parallel", "parallel")),
    )(patches, w, b)


def _head_kernel(x_ref,
                 w1a_ref, b1a_ref, w2a_ref, b2a_ref,
                 w1b_ref, b1b_ref, w2b_ref, b2b_ref,
                 w1c_ref, b1c_ref, w2c_ref, b2c_ref,
                 e1_ref, e2_ref, e3_ref, mp_ref, o_ref):
    """fc1+ReLU+fc2+softmax for all three nets, then exact blackbox expectation."""
    def branch(x, w1_ref, b1_ref, w2_ref, b2_ref):
        h = jnp.dot(x, w1_ref[...], preferred_element_type=jnp.float32)
        h = jnp.maximum(h + b1_ref[...], 0.0)
        logits = jnp.dot(h, w2_ref[...], preferred_element_type=jnp.float32) + b2_ref[...]
        m = jnp.max(logits, axis=-1, keepdims=True)
        e = jnp.exp(logits - m)
        s = jnp.sum(e, axis=-1, keepdims=True)
        r = pl.reciprocal(s, approx=True)
        r = r * (2.0 - s * r)  # one Newton step -> ~f32-exact softmax, still off VALU
        return e * r

    p1 = branch(x_ref[0], w1a_ref, b1a_ref, w2a_ref, b2a_ref)
    p2 = branch(x_ref[1], w1b_ref, b1b_ref, w2b_ref, b2b_ref)
    p3 = branch(x_ref[2], w1c_ref, b1c_ref, w2c_ref, b2c_ref)
    # Joint distribution over (margin, shape, texture) as a product of 0/1
    # expansion matmuls, pushed through the one-hot decision-tree matrix.
    q = (jnp.dot(p1, e1_ref[...], preferred_element_type=jnp.float32)
         * jnp.dot(p2, e2_ref[...], preferred_element_type=jnp.float32)
         * jnp.dot(p3, e3_ref[...], preferred_element_type=jnp.float32))
    o_ref[...] = jnp.dot(q, mp_ref[...], preferred_element_type=jnp.float32)


def head_apply(feats, P):
    """feats: (3, B, flat_dim) -> (B, num_labels), one fused launch."""
    _, B, _ = feats.shape
    L = P['bb_map'].shape[1]
    args = (feats,
            P['fc1_w'][0], P['fc1_b'][0], P['fc2_w'][0], P['fc2_b'][0],
            P['fc1_w'][1], P['fc1_b'][1], P['fc2_w'][1], P['fc2_b'][1],
            P['fc1_w'][2], P['fc1_b'][2], P['fc2_w'][2], P['fc2_b'][2],
            P['bb_e1'], P['bb_e2'], P['bb_e3'], P['bb_map'])
    return pl.pallas_call(
        _head_kernel,
        out_shape=jax.ShapeDtypeStruct((B, L), jnp.float32),
        grid=(1,),
        in_specs=[pl.BlockSpec(a.shape, lambda i, nd=a.ndim: (0,) * nd)
                  for a in args],
        out_specs=pl.BlockSpec((B, L), lambda i: (0, 0)),
    )(*args)


# -----------------------------------------------------------------------------
# Glue: patch extraction, weight packing, LeavesNet forward, parameter init
# -----------------------------------------------------------------------------
def _patches(x, kh, kw):
    """im2col via a single XLA op; feature order = (cin, dy, dx) (channel-major)."""
    return lax.conv_general_dilated_patches(
        x, (kh, kw), (1, 1), 'VALID',
        dimension_numbers=('NHWC', 'HWIO', 'NHWC'))


def _crop_pool_rows(p):
    """Crop the conv-row axis to a multiple of 3 (no-op for the sizes used here)."""
    oh = p.shape[1]
    use = 3 * (oh // 3)
    return p if use == oh else p[:, :use]


def _conv_mat(w_pt):
    """torch (cout, cin, kh, kw) -> (cin*kh*kw, cout), channel-major row order
    matching lax.conv_general_dilated_patches."""
    cout, cin, kh, kw = w_pt.shape
    return jnp.transpose(w_pt, (1, 2, 3, 0)).reshape(cin * kh * kw, cout)


def pack_leaves_params(params):
    """One-time re-layout of torch-style per-net weights into fused form."""
    nets = [params['net1'], params['net2'], params['net3']]
    e1, e2, e3, mp = params['bbox']
    return {
        # conv1: the three nets share the input image -> one matmul, cout = 96.
        'conv1_w': jnp.concatenate([_conv_mat(n['conv1_w']) for n in nets], axis=1),
        'conv1_b': jnp.concatenate([n['conv1_b'] for n in nets])[None],
        # conv2/conv3: per-net weights over per-net inputs (K = 800 / 576,
        # no structural zeros -- the net axis lives on the grid).
        'conv2_w': jnp.stack([_conv_mat(n['conv2_w']) for n in nets]),
        'conv2_b': jnp.stack([n['conv2_b'][None] for n in nets]),
        'conv3_w': jnp.stack([_conv_mat(n['conv3_w']) for n in nets]),
        'conv3_b': jnp.stack([n['conv3_b'][None] for n in nets]),
        'fc1_w': tuple(n['fc1_w'] for n in nets),
        'fc1_b': tuple(n['fc1_b'][None] for n in nets),
        'fc2_w': tuple(n['fc2_w'] for n in nets),
        'fc2_b': tuple(n['fc2_b'][None] for n in nets),
        'bb_e1': e1, 'bb_e2': e2, 'bb_e3': e3, 'bb_map': mp,
    }


def leaves_net_forward(x_nchw, P):
    x = jnp.transpose(x_nchw, (0, 2, 3, 1)).astype(jnp.float32)  # NCHW -> NHWC
    B = x.shape[0]

    # conv1 (10x10) + ReLU + pool: one shared im2col, all three nets on cout.
    p = _crop_pool_rows(_patches(x, 10, 10))                     # (B, 57, 57, 300)
    y = conv1_relu_pool(p, P['conv1_w'], P['conv1_b'])           # (3, B, 19, 19, 32)

    # conv2 (5x5) + ReLU + pool: per-net K = 800 (only real channels).
    G, _, h, wd, c = y.shape
    p = _crop_pool_rows(_patches(y.reshape(G * B, h, wd, c), 5, 5))
    p = p.reshape((G, B) + p.shape[1:])                          # (3, B, 15, 15, 800)
    y = grouped_conv_relu_pool(p, P['conv2_w'], P['conv2_b'])    # (3, B, 5, 5, 64)

    # conv3 (3x3) + ReLU + pool: per-net K = 576.
    G, _, h, wd, c = y.shape
    p = _crop_pool_rows(_patches(y.reshape(G * B, h, wd, c), 3, 3))
    p = p.reshape((G, B) + p.shape[1:])                          # (3, B, 3, 3, 576)
    y = grouped_conv_relu_pool(p, P['conv3_w'], P['conv3_b'])    # (3, B, 1, 1, 128)

    # nn.Flatten on NCHW is channel-major; pooled spatial is 1x1 for img=66.
    ph, pw, cdim = y.shape[2], y.shape[3], y.shape[4]
    if ph == 1 and pw == 1:
        feats = y.reshape(3, B, cdim)
    else:
        feats = jnp.transpose(y, (0, 1, 4, 2, 3)).reshape(3, B, cdim * ph * pw)

    # fused head: fc1+ReLU+fc2+softmax (x3) + exact blackbox expectation.
    return head_apply(feats, P)


def _uniform(key, shape, fan_in):
    bound = 1.0 / np.sqrt(fan_in)
    return jax.random.uniform(key, shape, jnp.float32, -bound, bound)


def init_leafnet_params(key, num_features, flat_dim):
    ks = jax.random.split(key, 10)
    return {
        'conv1_w': _uniform(ks[0], (32, 3, 10, 10), 3 * 10 * 10),
        'conv1_b': _uniform(ks[1], (32,), 3 * 10 * 10),
        'conv2_w': _uniform(ks[2], (64, 32, 5, 5), 32 * 5 * 5),
        'conv2_b': _uniform(ks[3], (64,), 32 * 5 * 5),
        'conv3_w': _uniform(ks[4], (128, 64, 3, 3), 64 * 3 * 3),
        'conv3_b': _uniform(ks[5], (128,), 64 * 3 * 3),
        'fc1_w': _uniform(ks[6], (flat_dim, flat_dim), flat_dim),
        'fc1_b': _uniform(ks[7], (flat_dim,), flat_dim),
        'fc2_w': _uniform(ks[8], (flat_dim, num_features), flat_dim),
        'fc2_b': _uniform(ks[9], (num_features,), flat_dim),
    }


def init_leaves_net_params(key, img_size):
    s = img_size
    s = (s - 10 + 1) // 3
    s = (s - 5 + 1) // 3
    s = (s - 3 + 1) // 3
    flat_dim = 128 * s * s
    k1, k2, k3 = jax.random.split(key, 3)
    return {
        'net1': init_leafnet_params(k1, len(l11_margin), flat_dim),
        'net2': init_leafnet_params(k2, len(l11_shape), flat_dim),
        'net3': init_leafnet_params(k3, len(l11_texture), flat_dim),
        'bbox': build_blackbox_constants(),
    }


if __name__ == "__main__":
    key = jax.random.PRNGKey(0)
    k_param, k_x = jax.random.split(key)

    BATCH, IMG = 2, 66  # smallest spatial size that survives the conv/pool stack
    raw_params = init_leaves_net_params(k_param, IMG)
    packed = pack_leaves_params(raw_params)  # one-time weight re-layout
    x = jax.random.normal(k_x, (BATCH, 3, IMG, IMG), jnp.float32)  # NCHW like torch

    fwd = jax.jit(leaves_net_forward)
    out = jax.block_until_ready(fwd(x, packed))

    assert out.shape == (BATCH, len(l11_labels))
    assert bool(jnp.all(jnp.isfinite(out)))
    # output rows are probability distributions over the 11 species
    assert bool(jnp.allclose(jnp.sum(out, axis=-1), 1.0, atol=1e-3))
    print("KERNEL_OK")
</pallas_src>

<mosaic_0001>
module attributes {stable_mosaic.version = 11 : i64} {
  func.func @_conv_relu_pool_kernel(%arg0: i32, %arg1: i32, %arg2: memref<1x3x57x300xf32, #tpu.memory_space<vmem>>, %arg3: memref<300x96xf32, #tpu.memory_space<vmem>>, %arg4: memref<1x96xf32, #tpu.memory_space<vmem>>, %arg5: memref<3x1x1x19x32xf32, #tpu.memory_space<vmem>>, %arg6: memref<57x96xf32, #tpu.memory_space<vmem>>) attributes {dimension_semantics = [#tpu.dimension_semantics<parallel>, #tpu.dimension_semantics<parallel>], iteration_bounds = array<i64: 2, 19>, scalar_prefetch = 0 : i64, scratch_operands = 1 : i64, tpu.core_type = #tpu.core_type<tc>, window_params = [{transform_indices = @transform_0, window_bounds = array<i64: 1, 3, 57, 300>}, {pipeline_mode = #tpu.pipeline_mode<synchronous>, transform_indices = @transform_1, window_bounds = array<i64: 300, 96>}, {pipeline_mode = #tpu.pipeline_mode<synchronous>, transform_indices = @transform_2, window_bounds = array<i64: 1, 96>}, {transform_indices = @transform_3, window_bounds = array<i64: 3, 1, 1, 19, 32>}]} {
    %c0 = arith.constant 0 : index
    %c0_0 = arith.constant 0 : index
    %0 = vector.load %arg3[%c0, %c0_0] : memref<300x96xf32, #tpu.memory_space<vmem>>, vector<300x96xf32>
    %c0_1 = arith.constant 0 : index
    %c0_2 = arith.constant 0 : index
    %c0_3 = arith.constant 0 : index
    %c0_4 = arith.constant 0 : index
    %1 = vector.load %arg2[%c0_1, %c0_2, %c0_3, %c0_4] : memref<1x3x57x300xf32, #tpu.memory_space<vmem>>, vector<1x1x57x300xf32>
    %2 = vector.shape_cast %1 : vector<1x1x57x300xf32> to vector<57x300xf32>
    %cst = arith.constant dense<0.000000e+00> : vector<57x96xf32>
    %3 = tpu.matmul %2, %0, %cst {dimension_numbers = #tpu.dot_dimension_numbers<[1], [0], [0], [1], [0, 0, 1, 1], [], []>} : vector<57x300xf32>, vector<300x96xf32>, vector<57x96xf32> -> vector<57x96xf32>
    %c0_5 = arith.constant 0 : index
    %c1 = arith.constant 1 : index
    %c0_6 = arith.constant 0 : index
    %c0_7 = arith.constant 0 : index
    %4 = vector.load %arg2[%c0_5, %c1, %c0_6, %c0_7] : memref<1x3x57x300xf32, #tpu.memory_space<vmem>>, vector<1x1x57x300xf32>
    %5 = vector.shape_cast %4 : vector<1x1x57x300xf32> to vector<57x300xf32>
    %cst_8 = arith.constant dense<0.000000e+00> : vector<57x96xf32>
    %6 = tpu.matmul %5, %0, %cst_8 {dimension_numbers = #tpu.dot_dimension_numbers<[1], [0], [0], [1], [0, 0, 1, 1], [], []>} : vector<57x300xf32>, vector<300x96xf32>, vector<57x96xf32> -> vector<57x96xf32>
    %7 = arith.maximumf %3, %6 : vector<57x96xf32>
    %c0_9 = arith.constant 0 : index
    %c2 = arith.constant 2 : index
    %c0_10 = arith.constant 0 : index
    %c0_11 = arith.constant 0 : index
    %8 = vector.load %arg2[%c0_9, %c2, %c0_10, %c0_11] : memref<1x3x57x300xf32, #tpu.memory_space<vmem>>, vector<1x1x57x300xf32>
    %9 = vector.shape_cast %8 : vector<1x1x57x300xf32> to vector<57x300xf32>
    %cst_12 = arith.constant dense<0.000000e+00> : vector<57x96xf32>
    %10 = tpu.matmul %9, %0, %cst_12 {dimension_numbers = #tpu.dot_dimension_numbers<[1], [0], [0], [1], [0, 0, 1, 1], [], []>} : vector<57x300xf32>, vector<300x96xf32>, vector<57x96xf32> -> vector<57x96xf32>
    %11 = arith.maximumf %7, %10 : vector<57x96xf32>
    %c0_13 = arith.constant 0 : index
    %c0_14 = arith.constant 0 : index
    %12 = vector.load %arg4[%c0_13, %c0_14] : memref<1x96xf32, #tpu.memory_space<vmem>>, vector<1x96xf32>
    %13 = vector.broadcast %12 : vector<1x96xf32> to vector<57x96xf32>
    %14 = arith.addf %11, %13 : vector<57x96xf32>
    %cst_15 = arith.constant 0.000000e+00 : f32
    %15 = vector.broadcast %cst_15 : f32 to vector<57x96xf32>
    %16 = arith.maximumf %14, %15 : vector<57x96xf32>
    %c0_16 = arith.constant 0 : index
    %c0_17 = arith.constant 0 : index
    %17 = vector.load %arg6[%c0_16, %c0_17] : memref<57x96xf32, #tpu.memory_space<vmem>>, vector<57x96xf32>
    tpu.vector_store %arg6[%c0_16, %c0_17], %16 {strides = array<i32>} : memref<57x96xf32, #tpu.memory_space<vmem>>, vector<57x96xf32>,
    %c0_18 = arith.constant 0 : index
    %c0_19 = arith.constant 0 : index
    %18 = tpu.strided_load %arg6[%c0_18, %c0_19] {strides = array<i32: 3, 1>} : memref<57x96xf32, #tpu.memory_space<vmem>>, vector<19x96xf32>
    %c1_20 = arith.constant 1 : index
    %c0_21 = arith.constant 0 : index
    %19 = tpu.strided_load %arg6[%c1_20, %c0_21] {strides = array<i32: 3, 1>} : memref<57x96xf32, #tpu.memory_space<vmem>>, vector<19x96xf32>
    %20 = arith.maximumf %18, %19 : vector<19x96xf32>
    %c2_22 = arith.constant 2 : index
    %c0_23 = arith.constant 0 : index
    %21 = tpu.strided_load %arg6[%c2_22, %c0_23] {strides = array<i32: 3, 1>} : memref<57x96xf32, #tpu.memory_space<vmem>>, vector<19x96xf32>
    %22 = arith.maximumf %20, %21 : vector<19x96xf32>
    %23 = vector.extract_strided_slice %22 {offsets = [0, 0], sizes = [19, 32], strides = [1, 1]} : vector<19x96xf32> to vector<19x32xf32>
    %c0_24 = arith.constant 0 : index
    %c0_25 = arith.constant 0 : index
    %c0_26 = arith.constant 0 : index
    %c0_27 = arith.constant 0 : index
    %c0_28 = arith.constant 0 : index
    %24 = vector.load %arg5[%c0_24, %c0_25, %c0_26, %c0_27, %c0_28] : memref<3x1x1x19x32xf32, #tpu.memory_space<vmem>>, vector<1x1x1x19x32xf32>
    %25 = vector.shape_cast %24 : vector<1x1x1x19x32xf32> to vector<19x32xf32>
    %26 = vector.shape_cast %23 : vector<19x32xf32> to vector<1x1x1x19x32xf32>
    tpu.vector_store %arg5[%c0_24, %c0_25, %c0_26, %c0_27, %c0_28], %26 {strides = array<i32>} : memref<3x1x1x19x32xf32, #tpu.memory_space<vmem>>, vector<1x1x1x19x32xf32>,
    %27 = vector.extract_strided_slice %22 {offsets = [0, 32], sizes = [19, 32], strides = [1, 1]} : vector<19x96xf32> to vector<19x32xf32>
    %c1_29 = arith.constant 1 : index
    %c0_30 = arith.constant 0 : index
    %c0_31 = arith.constant 0 : index
    %c0_32 = arith.constant 0 : index
    %c0_33 = arith.constant 0 : index
    %28 = vector.load %arg5[%c1_29, %c0_30, %c0_31, %c0_32, %c0_33] : memref<3x1x1x19x32xf32, #tpu.memory_space<vmem>>, vector<1x1x1x19x32xf32>
    %29 = vector.shape_cast %28 : vector<1x1x1x19x32xf32> to vector<19x32xf32>
    %30 = vector.shape_cast %27 : vector<19x32xf32> to vector<1x1x1x19x32xf32>
    tpu.vector_store %arg5[%c1_29, %c0_30, %c0_31, %c0_32, %c0_33], %30 {strides = array<i32>} : memref<3x1x1x19x32xf32, #tpu.memory_space<vmem>>, vector<1x1x1x19x32xf32>,
    %31 = vector.extract_strided_slice %22 {offsets = [0, 64], sizes = [19, 32], strides = [1, 1]} : vector<19x96xf32> to vector<19x32xf32>
    %c2_34 = arith.constant 2 : index
    %c0_35 = arith.constant 0 : index
    %c0_36 = arith.constant 0 : index
    %c0_37 = arith.constant 0 : index
    %c0_38 = arith.constant 0 : index
    %32 = vector.load %arg5[%c2_34, %c0_35, %c0_36, %c0_37, %c0_38] : memref<3x1x1x19x32xf32, #tpu.memory_space<vmem>>, vector<1x1x1x19x32xf32>
    %33 = vector.shape_cast %32 : vector<1x1x1x19x32xf32> to vector<19x32xf32>
    %34 = vector.shape_cast %31 : vector<19x32xf32> to vector<1x1x1x19x32xf32>
    tpu.vector_store %arg5[%c2_34, %c0_35, %c0_36, %c0_37, %c0_38], %34 {strides = array<i32>} : memref<3x1x1x19x32xf32, #tpu.memory_space<vmem>>, vector<1x1x1x19x32xf32>,
    return
  }
  func.func @transform_0(%arg0: i32, %arg1: i32) -> (i32, i32, i32, i32) {
    %c0_i32 = arith.constant 0 : i32
    %c0_i32_0 = arith.constant 0 : i32
    %c0_i32_1 = arith.constant 0 : i32
    return %arg0, %arg1, %c0_i32, %c0_i32_0 : i32, i32, i32, i32
  }
  func.func @transform_1(%arg0: i32, %arg1: i32) -> (i32, i32) {
    %c0_i32 = arith.constant 0 : i32
    %c0_i32_0 = arith.constant 0 : i32
    %c0_i32_1 = arith.constant 0 : i32
    return %c0_i32, %c0_i32_0 : i32, i32
  }
  func.func @transform_2(%arg0: i32, %arg1: i32) -> (i32, i32) {
    %c0_i32 = arith.constant 0 : i32
    %c0_i32_0 = arith.constant 0 : i32
    %c0_i32_1 = arith.constant 0 : i32
    return %c0_i32, %c0_i32_0 : i32, i32
  }
  func.func @transform_3(%arg0: i32, %arg1: i32) -> (i32, i32, i32, i32, i32) {
    %c0_i32 = arith.constant 0 : i32
    %c0_i32_0 = arith.constant 0 : i32
    %c0_i32_1 = arith.constant 0 : i32
    %c0_i32_2 = arith.constant 0 : i32
    return %c0_i32, %arg0, %arg1, %c0_i32_0, %c0_i32_1 : i32, i32, i32, i32, i32
  }
}

module attributes {stable_mosaic.version = 11 : i64} {
  func.func @_conv_relu_pool_kernel(%arg0: i32, %arg1: i32, %arg2: i32, %arg3: memref<1x1x3x15x800xf32, #tpu.memory_space<vmem>>, %arg4: memref<1x800x64xf32, #tpu.memory_space<vmem>>, %arg5: memref<1x1x64xf32, #tpu.memory_space<vmem>>, %arg6: memref<1x1x1x5x64xf32, #tpu.memory_space<vmem>>, %arg7: memref<15x64xf32, #tpu.memory_space<vmem>>) attributes {dimension_semantics = [#tpu.dimension_semantics<parallel>, #tpu.dimension_semantics<parallel>, #tpu.dimension_semantics<parallel>], iteration_bounds = array<i64: 2, 3, 5>, scalar_prefetch = 0 : i64, scratch_operands = 1 : i64, tpu.core_type = #tpu.core_type<tc>, window_params = [{transform_indices = @transform_0, window_bounds = array<i64: 1, 1, 3, 15, 800>}, {transform_indices = @transform_1, window_bounds = array<i64: 1, 800, 64>}, {transform_indices = @transform_2, window_bounds = array<i64: 1, 1, 64>}, {transform_indices = @transform_3, window_bounds = array<i64: 1, 1, 1, 5, 64>}]} {
    %c0 = arith.constant 0 : index
    %c0_0 = arith.constant 0 : index
    %c0_1 = arith.constant 0 : index
    %0 = vector.load %arg4[%c0, %c0_0, %c0_1] : memref<1x800x64xf32, #tpu.memory_space<vmem>>, vector<1x800x64xf32>
    %1 = vector.shape_cast %0 : vector<1x800x64xf32> to vector<800x64xf32>
    %c0_2 = arith.constant 0 : index
    %c0_3 = arith.constant 0 : index
    %c0_4 = arith.constant 0 : index
    %c0_5 = arith.constant 0 : index
    %c0_6 = arith.constant 0 : index
    %2 = vector.load %arg3[%c0_2, %c0_3, %c0_4, %c0_5, %c0_6] : memref<1x1x3x15x800xf32, #tpu.memory_space<vmem>>, vector<1x1x1x15x800xf32>
    %3 = vector.shape_cast %2 : vector<1x1x1x15x800xf32> to vector<15x800xf32>
    %cst = arith.constant dense<0.000000e+00> : vector<15x64xf32>
    %4 = tpu.matmul %3, %1, %cst {dimension_numbers = #tpu.dot_dimension_numbers<[1], [0], [0], [1], [0, 0, 1, 1], [], []>} : vector<15x800xf32>, vector<800x64xf32>, vector<15x64xf32> -> vector<15x64xf32>
    %c0_7 = arith.constant 0 : index
    %c0_8 = arith.constant 0 : index
    %c1 = arith.constant 1 : index
    %c0_9 = arith.constant 0 : index
    %c0_10 = arith.constant 0 : index
    %5 = vector.load %arg3[%c0_7, %c0_8, %c1, %c0_9, %c0_10] : memref<1x1x3x15x800xf32, #tpu.memory_space<vmem>>, vector<1x1x1x15x800xf32>
    %6 = vector.shape_cast %5 : vector<1x1x1x15x800xf32> to vector<15x800xf32>
    %cst_11 = arith.constant dense<0.000000e+00> : vector<15x64xf32>
    %7 = tpu.matmul %6, %1, %cst_11 {dimension_numbers = #tpu.dot_dimension_numbers<[1], [0], [0], [1], [0, 0, 1, 1], [], []>} : vector<15x800xf32>, vector<800x64xf32>, vector<15x64xf32> -> vector<15x64xf32>
    %8 = arith.maximumf %4, %7 : vector<15x64xf32>
    %c0_12 = arith.constant 0 : index
    %c0_13 = arith.constant 0 : index
    %c2 = arith.constant 2 : index
    %c0_14 = arith.constant 0 : index
    %c0_15 = arith.constant 0 : index
    %9 = vector.load %arg3[%c0_12, %c0_13, %c2, %c0_14, %c0_15] : memref<1x1x3x15x800xf32, #tpu.memory_space<vmem>>, vector<1x1x1x15x800xf32>
    %10 = vector.shape_cast %9 : vector<1x1x1x15x800xf32> to vector<15x800xf32>
    %cst_16 = arith.constant dense<0.000000e+00> : vector<15x64xf32>
    %11 = tpu.matmul %10, %1, %cst_16 {dimension_numbers = #tpu.dot_dimension_numbers<[1], [0], [0], [1], [0, 0, 1, 1], [], []>} : vector<15x800xf32>, vector<800x64xf32>, vector<15x64xf32> -> vector<15x64xf32>
    %12 = arith.maximumf %8, %11 : vector<15x64xf32>
    %c0_17 = arith.constant 0 : index
    %c0_18 = arith.constant 0 : index
    %c0_19 = arith.constant 0 : index
    %13 = vector.load %arg5[%c0_17, %c0_18, %c0_19] : memref<1x1x64xf32, #tpu.memory_space<vmem>>, vector<1x1x64xf32>
    %14 = vector.shape_cast %13 : vector<1x1x64xf32> to vector<1x64xf32>
    %15 = vector.broadcast %14 : vector<1x64xf32> to vector<15x64xf32>
    %16 = arith.addf %12, %15 : vector<15x64xf32>
    %cst_20 = arith.constant 0.000000e+00 : f32
    %17 = vector.broadcast %cst_20 : f32 to vector<15x64xf32>
    %18 = arith.maximumf %16, %17 : vector<15x64xf32>
    %c0_21 = arith.constant 0 : index
    %c0_22 = arith.constant 0 : index
    %19 = vector.load %arg7[%c0_21, %c0_22] : memref<15x64xf32, #tpu.memory_space<vmem>>, vector<15x64xf32>
    tpu.vector_store %arg7[%c0_21, %c0_22], %18 {strides = array<i32>} : memref<15x64xf32, #tpu.memory_space<vmem>>, vector<15x64xf32>,
    %c0_23 = arith.constant 0 : index
    %c0_24 = arith.constant 0 : index
    %20 = tpu.strided_load %arg7[%c0_23, %c0_24] {strides = array<i32: 3, 1>} : memref<15x64xf32, #tpu.memory_space<vmem>>, vector<5x64xf32>
    %c1_25 = arith.constant 1 : index
    %c0_26 = arith.constant 0 : index
    %21 = tpu.strided_load %arg7[%c1_25, %c0_26] {strides = array<i32: 3, 1>} : memref<15x64xf32, #tpu.memory_space<vmem>>, vector<5x64xf32>
    %22 = arith.maximumf %20, %21 : vector<5x64xf32>
    %c2_27 = arith.constant 2 : index
    %c0_28 = arith.constant 0 : index
    %23 = tpu.strided_load %arg7[%c2_27, %c0_28] {strides = array<i32: 3, 1>} : memref<15x64xf32, #tpu.memory_space<vmem>>, vector<5x64xf32>
    %24 = arith.maximumf %22, %23 : vector<5x64xf32>
    %c0_29 = arith.constant 0 : index
    %c0_30 = arith.constant 0 : index
    %c0_31 = arith.constant 0 : index
    %c0_32 = arith.constant 0 : index
    %c0_33 = arith.constant 0 : index
    %25 = vector.load %arg6[%c0_29, %c0_30, %c0_31, %c0_32, %c0_33] : memref<1x1x1x5x64xf32, #tpu.memory_space<vmem>>, vector<1x1x1x5x64xf32>
    %26 = vector.shape_cast %25 : vector<1x1x1x5x64xf32> to vector<5x64xf32>
    %27 = vector.shape_cast %24 : vector<5x64xf32> to vector<1x1x1x5x64xf32>
    tpu.vector_store %arg6[%c0_29, %c0_30, %c0_31, %c0_32, %c0_33], %27 {strides = array<i32>} : memref<1x1x1x5x64xf32, #tpu.memory_space<vmem>>, vector<1x1x1x5x64xf32>,
    return
  }
  func.func @transform_0(%arg0: i32, %arg1: i32, %arg2: i32) -> (i32, i32, i32, i32, i32) {
    %c0_i32 = arith.constant 0 : i32
    %c0_i32_0 = arith.constant 0 : i32
    %c0_i32_1 = arith.constant 0 : i32
    return %arg1, %arg0, %arg2, %c0_i32, %c0_i32_0 : i32, i32, i32, i32, i32
  }
  func.func @transform_1(%arg0: i32, %arg1: i32, %arg2: i32) -> (i32, i32, i32) {
    %c0_i32 = arith.constant 0 : i32
    %c0_i32_0 = arith.constant 0 : i32
    %c0_i32_1 = arith.constant 0 : i32
    return %arg1, %c0_i32, %c0_i32_0 : i32, i32, i32
  }
  func.func @transform_2(%arg0: i32, %arg1: i32, %arg2: i32) -> (i32, i32, i32) {
    %c0_i32 = arith.constant 0 : i32
    %c0_i32_0 = arith.constant 0 : i32
    %c0_i32_1 = arith.constant 0 : i32
    return %arg1, %c0_i32, %c0_i32_0 : i32, i32, i32
  }
  func.func @transform_3(%arg0: i32, %arg1: i32, %arg2: i32) -> (i32, i32, i32, i32, i32) {
    %c0_i32 = arith.constant 0 : i32
    %c0_i32_0 = arith.constant 0 : i32
    %c0_i32_1 = arith.constant 0 : i32
    return %arg1, %arg0, %arg2, %c0_i32, %c0_i32_0 : i32, i32, i32, i32, i32
  }
}

module attributes {stable_mosaic.version = 11 : i64} {
  func.func @_conv_relu_pool_kernel(%arg0: i32, %arg1: i32, %arg2: i32, %arg3: memref<1x1x3x3x576xf32, #tpu.memory_space<vmem>>, %arg4: memref<1x576x128xf32, #tpu.memory_space<vmem>>, %arg5: memref<1x1x128xf32, #tpu.memory_space<vmem>>, %arg6: memref<1x1x1x1x128xf32, #tpu.memory_space<vmem>>, %arg7: memref<3x128xf32, #tpu.memory_space<vmem>>) attributes {dimension_semantics = [#tpu.dimension_semantics<parallel>, #tpu.dimension_semantics<parallel>, #tpu.dimension_semantics<parallel>], iteration_bounds = array<i64: 2, 3, 1>, scalar_prefetch = 0 : i64, scratch_operands = 1 : i64, tpu.core_type = #tpu.core_type<tc>, window_params = [{transform_indices = @transform_0, window_bounds = array<i64: 1, 1, 3, 3, 576>}, {transform_indices = @transform_1, window_bounds = array<i64: 1, 576, 128>}, {transform_indices = @transform_2, window_bounds = array<i64: 1, 1, 128>}, {transform_indices = @transform_3, window_bounds = array<i64: 1, 1, 1, 1, 128>}]} {
    %c0 = arith.constant 0 : index
    %c0_0 = arith.constant 0 : index
    %c0_1 = arith.constant 0 : index
    %0 = vector.load %arg4[%c0, %c0_0, %c0_1] : memref<1x576x128xf32, #tpu.memory_space<vmem>>, vector<1x576x128xf32>
    %1 = vector.shape_cast %0 : vector<1x576x128xf32> to vector<576x128xf32>
    %c0_2 = arith.constant 0 : index
    %c0_3 = arith.constant 0 : index
    %c0_4 = arith.constant 0 : index
    %c0_5 = arith.constant 0 : index
    %c0_6 = arith.constant 0 : index
    %2 = vector.load %arg3[%c0_2, %c0_3, %c0_4, %c0_5, %c0_6] : memref<1x1x3x3x576xf32, #tpu.memory_space<vmem>>, vector<1x1x1x3x576xf32>
    %3 = vector.shape_cast %2 : vector<1x1x1x3x576xf32> to vector<3x576xf32>
    %cst = arith.constant dense<0.000000e+00> : vector<3x128xf32>
    %4 = tpu.matmul %3, %1, %cst {dimension_numbers = #tpu.dot_dimension_numbers<[1], [0], [0], [1], [0, 0, 1, 1], [], []>} : vector<3x576xf32>, vector<576x128xf32>, vector<3x128xf32> -> vector<3x128xf32>
    %c0_7 = arith.constant 0 : index
    %c0_8 = arith.constant 0 : index
    %c1 = arith.constant 1 : index
    %c0_9 = arith.constant 0 : index
    %c0_10 = arith.constant 0 : index
    %5 = vector.load %arg3[%c0_7, %c0_8, %c1, %c0_9, %c0_10] : memref<1x1x3x3x576xf32, #tpu.memory_space<vmem>>, vector<1x1x1x3x576xf32>
    %6 = vector.shape_cast %5 : vector<1x1x1x3x576xf32> to vector<3x576xf32>
    %cst_11 = arith.constant dense<0.000000e+00> : vector<3x128xf32>
    %7 = tpu.matmul %6, %1, %cst_11 {dimension_numbers = #tpu.dot_dimension_numbers<[1], [0], [0], [1], [0, 0, 1, 1], [], []>} : vector<3x576xf32>, vector<576x128xf32>, vector<3x128xf32> -> vector<3x128xf32>
    %8 = arith.maximumf %4, %7 : vector<3x128xf32>
    %c0_12 = arith.constant 0 : index
    %c0_13 = arith.constant 0 : index
    %c2 = arith.constant 2 : index
    %c0_14 = arith.constant 0 : index
    %c0_15 = arith.constant 0 : index
    %9 = vector.load %arg3[%c0_12, %c0_13, %c2, %c0_14, %c0_15] : memref<1x1x3x3x576xf32, #tpu.memory_space<vmem>>, vector<1x1x1x3x576xf32>
    %10 = vector.shape_cast %9 : vector<1x1x1x3x576xf32> to vector<3x576xf32>
    %cst_16 = arith.constant dense<0.000000e+00> : vector<3x128xf32>
    %11 = tpu.matmul %10, %1, %cst_16 {dimension_numbers = #tpu.dot_dimension_numbers<[1], [0], [0], [1], [0, 0, 1, 1], [], []>} : vector<3x576xf32>, vector<576x128xf32>, vector<3x128xf32> -> vector<3x128xf32>
    %12 = arith.maximumf %8, %11 : vector<3x128xf32>
    %c0_17 = arith.constant 0 : index
    %c0_18 = arith.constant 0 : index
    %c0_19 = arith.constant 0 : index
    %13 = vector.load %arg5[%c0_17, %c0_18, %c0_19] : memref<1x1x128xf32, #tpu.memory_space<vmem>>, vector<1x1x128xf32>
    %14 = vector.shape_cast %13 : vector<1x1x128xf32> to vector<1x128xf32>
    %15 = vector.broadcast %14 : vector<1x128xf32> to vector<3x128xf32>
    %16 = arith.addf %12, %15 : vector<3x128xf32>
    %cst_20 = arith.constant 0.000000e+00 : f32
    %17 = vector.broadcast %cst_20 : f32 to vector<3x128xf32>
    %18 = arith.maximumf %16, %17 : vector<3x128xf32>
    %c0_21 = arith.constant 0 : index
    %c0_22 = arith.constant 0 : index
    %19 = vector.load %arg7[%c0_21, %c0_22] : memref<3x128xf32, #tpu.memory_space<vmem>>, vector<3x128xf32>
    tpu.vector_store %arg7[%c0_21, %c0_22], %18 {strides = array<i32>} : memref<3x128xf32, #tpu.memory_space<vmem>>, vector<3x128xf32>,
    %c0_23 = arith.constant 0 : index
    %c0_24 = arith.constant 0 : index
    %20 = tpu.strided_load %arg7[%c0_23, %c0_24] {strides = array<i32: 3, 1>} : memref<3x128xf32, #tpu.memory_space<vmem>>, vector<1x128xf32>
    %c1_25 = arith.constant 1 : index
    %c0_26 = arith.constant 0 : index
    %21 = tpu.strided_load %arg7[%c1_25, %c0_26] {strides = array<i32: 3, 1>} : memref<3x128xf32, #tpu.memory_space<vmem>>, vector<1x128xf32>
    %22 = arith.maximumf %20, %21 : vector<1x128xf32>
    %c2_27 = arith.constant 2 : index
    %c0_28 = arith.constant 0 : index
    %23 = tpu.strided_load %arg7[%c2_27, %c0_28] {strides = array<i32: 3, 1>} : memref<3x128xf32, #tpu.memory_space<vmem>>, vector<1x128xf32>
    %24 = arith.maximumf %22, %23 : vector<1x128xf32>
    %c0_29 = arith.constant 0 : index
    %c0_30 = arith.constant 0 : index
    %c0_31 = arith.constant 0 : index
    %c0_32 = arith.constant 0 : index
    %c0_33 = arith.constant 0 : index
    %25 = vector.load %arg6[%c0_29, %c0_30, %c0_31, %c0_32, %c0_33] : memref<1x1x1x1x128xf32, #tpu.memory_space<vmem>>, vector<1x1x1x1x128xf32>
    %26 = vector.shape_cast %25 : vector<1x1x1x1x128xf32> to vector<1x128xf32>
    %27 = vector.shape_cast %24 : vector<1x128xf32> to vector<1x1x1x1x128xf32>
    tpu.vector_store %arg6[%c0_29, %c0_30, %c0_31, %c0_32, %c0_33], %27 {strides = array<i32>} : memref<1x1x1x1x128xf32, #tpu.memory_space<vmem>>, vector<1x1x1x1x128xf32>,
    return
  }
  func.func @transform_0(%arg0: i32, %arg1: i32, %arg2: i32) -> (i32, i32, i32, i32, i32) {
    %c0_i32 = arith.constant 0 : i32
    %c0_i32_0 = arith.constant 0 : i32
    %c0_i32_1 = arith.constant 0 : i32
    return %arg1, %arg0, %arg2, %c0_i32, %c0_i32_0 : i32, i32, i32, i32, i32
  }
  func.func @transform_1(%arg0: i32, %arg1: i32, %arg2: i32) -> (i32, i32, i32) {
    %c0_i32 = arith.constant 0 : i32
    %c0_i32_0 = arith.constant 0 : i32
    %c0_i32_1 = arith.constant 0 : i32
    return %arg1, %c0_i32, %c0_i32_0 : i32, i32, i32
  }
  func.func @transform_2(%arg0: i32, %arg1: i32, %arg2: i32) -> (i32, i32, i32) {
    %c0_i32 = arith.constant 0 : i32
    %c0_i32_0 = arith.constant 0 : i32
    %c0_i32_1 = arith.constant 0 : i32
    return %arg1, %c0_i32, %c0_i32_0 : i32, i32, i32
  }
  func.func @transform_3(%arg0: i32, %arg1: i32, %arg2: i32) -> (i32, i32, i32, i32, i32) {
    %c0_i32 = arith.constant 0 : i32
    %c0_i32_0 = arith.constant 0 : i32
    %c0_i32_1 = arith.constant 0 : i32
    return %arg1, %arg0, %arg2, %c0_i32, %c0_i32_0 : i32, i32, i32, i32, i32
  }
}

module attributes {stable_mosaic.version = 11 : i64} {
  func.func @_head_kernel(%arg0: i32, %arg1: memref<3x2x128xf32, #tpu.memory_space<vmem>>, %arg2: memref<128x128xf32, #tpu.memory_space<vmem>>, %arg3: memref<1x128xf32, #tpu.memory_space<vmem>>, %arg4: memref<128x6xf32, #tpu.memory_space<vmem>>, %arg5: memref<1x6xf32, #tpu.memory_space<vmem>>, %arg6: memref<128x128xf32, #tpu.memory_space<vmem>>, %arg7: memref<1x128xf32, #tpu.memory_space<vmem>>, %arg8: memref<128x5xf32, #tpu.memory_space<vmem>>, %arg9: memref<1x5xf32, #tpu.memory_space<vmem>>, %arg10: memref<128x128xf32, #tpu.memory_space<vmem>>, %arg11: memref<1x128xf32, #tpu.memory_space<vmem>>, %arg12: memref<128x4xf32, #tpu.memory_space<vmem>>, %arg13: memref<1x4xf32, #tpu.memory_space<vmem>>, %arg14: memref<6x120xf32, #tpu.memory_space<vmem>>, %arg15: memref<5x120xf32, #tpu.memory_space<vmem>>, %arg16: memref<4x120xf32, #tpu.memory_space<vmem>>, %arg17: memref<120x11xf32, #tpu.memory_space<vmem>>, %arg18: memref<2x11xf32, #tpu.memory_space<vmem>>) attributes {dimension_semantics = [#tpu.dimension_semantics<arbitrary>], iteration_bounds = array<i64: 1>, scalar_prefetch = 0 : i64, scratch_operands = 0 : i64, tpu.core_type = #tpu.core_type<tc>, window_params = [{pipeline_mode = #tpu.pipeline_mode<synchronous>, transform_indices = @transform_0, window_bounds = array<i64: 3, 2, 128>}, {pipeline_mode = #tpu.pipeline_mode<synchronous>, transform_indices = @transform_1, window_bounds = array<i64: 128, 128>}, {pipeline_mode = #tpu.pipeline_mode<synchronous>, transform_indices = @transform_2, window_bounds = array<i64: 1, 128>}, {pipeline_mode = #tpu.pipeline_mode<synchronous>, transform_indices = @transform_3, window_bounds = array<i64: 128, 6>}, {pipeline_mode = #tpu.pipeline_mode<synchronous>, transform_indices = @transform_4, window_bounds = array<i64: 1, 6>}, {pipeline_mode = #tpu.pipeline_mode<synchronous>, transform_indices = @transform_5, window_bounds = array<i64: 128, 128>}, {pipeline_mode = #tpu.pipeline_mode<synchronous>, transform_indices = @transform_6, window_bounds = array<i64: 1, 128>}, {pipeline_mode = #tpu.pipeline_mode<synchronous>, transform_indices = @transform_7, window_bounds = array<i64: 128, 5>}, {pipeline_mode = #tpu.pipeline_mode<synchronous>, transform_indices = @transform_8, window_bounds = array<i64: 1, 5>}, {pipeline_mode = #tpu.pipeline_mode<synchronous>, transform_indices = @transform_9, window_bounds = array<i64: 128, 128>}, {pipeline_mode = #tpu.pipeline_mode<synchronous>, transform_indices = @transform_10, window_bounds = array<i64: 1, 128>}, {pipeline_mode = #tpu.pipeline_mode<synchronous>, transform_indices = @transform_11, window_bounds = array<i64: 128, 4>}, {pipeline_mode = #tpu.pipeline_mode<synchronous>, transform_indices = @transform_12, window_bounds = array<i64: 1, 4>}, {pipeline_mode = #tpu.pipeline_mode<synchronous>, transform_indices = @transform_13, window_bounds = array<i64: 6, 120>}, {pipeline_mode = #tpu.pipeline_mode<synchronous>, transform_indices = @transform_14, window_bounds = array<i64: 5, 120>}, {pipeline_mode = #tpu.pipeline_mode<synchronous>, transform_indices = @transform_15, window_bounds = array<i64: 4, 120>}, {pipeline_mode = #tpu.pipeline_mode<synchronous>, transform_indices = @transform_16, window_bounds = array<i64: 120, 11>}, {pipeline_mode = #tpu.pipeline_mode<synchronous>, transform_indices = @transform_17, window_bounds = array<i64: 2, 11>}]} {
    %c0 = arith.constant 0 : index
    %c0_0 = arith.constant 0 : index
    %c0_1 = arith.constant 0 : index
    %0 = vector.load %arg1[%c0, %c0_0, %c0_1] : memref<3x2x128xf32, #tpu.memory_space<vmem>>, vector<1x2x128xf32>
    %1 = vector.shape_cast %0 : vector<1x2x128xf32> to vector<2x128xf32>
    %c0_2 = arith.constant 0 : index
    %c0_3 = arith.constant 0 : index
    %2 = vector.load %arg2[%c0_2, %c0_3] : memref<128x128xf32, #tpu.memory_space<vmem>>, vector<128x128xf32>
    %cst = arith.constant dense<0.000000e+00> : vector<2x128xf32>
    %3 = tpu.matmul %1, %2, %cst {dimension_numbers = #tpu.dot_dimension_numbers<[1], [0], [0], [1], [0, 0, 1, 1], [], []>} : vector<2x128xf32>, vector<128x128xf32>, vector<2x128xf32> -> vector<2x128xf32>
    %c0_4 = arith.constant 0 : index
    %c0_5 = arith.constant 0 : index
    %4 = vector.load %arg3[%c0_4, %c0_5] : memref<1x128xf32, #tpu.memory_space<vmem>>, vector<1x128xf32>
    %5 = vector.broadcast %4 : vector<1x128xf32> to vector<2x128xf32>
    %6 = arith.addf %3, %5 : vector<2x128xf32>
    %cst_6 = arith.constant 0.000000e+00 : f32
    %7 = vector.broadcast %cst_6 : f32 to vector<2x128xf32>
    %8 = arith.maximumf %6, %7 : vector<2x128xf32>
    %c0_7 = arith.constant 0 : index
    %c0_8 = arith.constant 0 : index
    %9 = vector.load %arg4[%c0_7, %c0_8] : memref<128x6xf32, #tpu.memory_space<vmem>>, vector<128x6xf32>
    %cst_9 = arith.constant dense<0.000000e+00> : vector<2x6xf32>
    %10 = tpu.matmul %8, %9, %cst_9 {dimension_numbers = #tpu.dot_dimension_numbers<[1], [0], [0], [1], [0, 0, 1, 1], [], []>} : vector<2x128xf32>, vector<128x6xf32>, vector<2x6xf32> -> vector<2x6xf32>
    %c0_10 = arith.constant 0 : index
    %c0_11 = arith.constant 0 : index
    %11 = vector.load %arg5[%c0_10, %c0_11] : memref<1x6xf32, #tpu.memory_space<vmem>>, vector<1x6xf32>
    %12 = vector.broadcast %11 : vector<1x6xf32> to vector<2x6xf32>
    %13 = arith.addf %10, %12 : vector<2x6xf32>
    %cst_12 = arith.constant dense<0xFF800000> : vector<2xf32>
    %14 = vector.multi_reduction <maximumf>, %13, %cst_12 [1] : vector<2x6xf32> to vector<2xf32>
    %15 = vector.shape_cast %14 : vector<2xf32> to vector<2x1xf32>
    %16 = vector.broadcast %15 : vector<2x1xf32> to vector<2x6xf32>
    %17 = arith.subf %13, %16 : vector<2x6xf32>
    %18 = math.exp %17 : vector<2x6xf32>
    %cst_13 = arith.constant dense<0.000000e+00> : vector<2xf32>
    %19 = vector.multi_reduction <add>, %18, %cst_13 [1] : vector<2x6xf32> to vector<2xf32>
    %20 = vector.shape_cast %19 : vector<2xf32> to vector<2x1xf32>
    %21 = tpu.reciprocal %20 {approx = true} : vector<2x1xf32> -> vector<2x1xf32>
    %22 = arith.mulf %20, %21 : vector<2x1xf32>
    %cst_14 = arith.constant 2.000000e+00 : f32
    %23 = vector.broadcast %cst_14 : f32 to vector<2x1xf32>
    %24 = arith.subf %23, %22 : vector<2x1xf32>
    %25 = arith.mulf %21, %24 : vector<2x1xf32>
    %26 = vector.broadcast %25 : vector<2x1xf32> to vector<2x6xf32>
    %27 = arith.mulf %18, %26 : vector<2x6xf32>
    %c1 = arith.constant 1 : index
    %c0_15 = arith.constant 0 : index
    %c0_16 = arith.constant 0 : index
    %28 = vector.load %arg1[%c1, %c0_15, %c0_16] : memref<3x2x128xf32, #tpu.memory_space<vmem>>, vector<1x2x128xf32>
    %29 = vector.shape_cast %28 : vector<1x2x128xf32> to vector<2x128xf32>
    %c0_17 = arith.constant 0 : index
    %c0_18 = arith.constant 0 : index
    %30 = vector.load %arg6[%c0_17, %c0_18] : memref<128x128xf32, #tpu.memory_space<vmem>>, vector<128x128xf32>
    %cst_19 = arith.constant dense<0.000000e+00> : vector<2x128xf32>
    %31 = tpu.matmul %29, %30, %cst_19 {dimension_numbers = #tpu.dot_dimension_numbers<[1], [0], [0], [1], [0, 0, 1, 1], [], []>} : vector<2x128xf32>, vector<128x128xf32>, vector<2x128xf32> -> vector<2x128xf32>
    %c0_20 = arith.constant 0 : index
    %c0_21 = arith.constant 0 : index
    %32 = vector.load %arg7[%c0_20, %c0_21] : memref<1x128xf32, #tpu.memory_space<vmem>>, vector<1x128xf32>
    %33 = vector.broadcast %32 : vector<1x128xf32> to vector<2x128xf32>
    %34 = arith.addf %31, %33 : vector<2x128xf32>
    %cst_22 = arith.constant 0.000000e+00 : f32
    %35 = vector.broadcast %cst_22 : f32 to vector<2x128xf32>
    %36 = arith.maximumf %34, %35 : vector<2x128xf32>
    %c0_23 = arith.constant 0 : index
    %c0_24 = arith.constant 0 : index
    %37 = vector.load %arg8[%c0_23, %c0_24] : memref<128x5xf32, #tpu.memory_space<vmem>>, vector<128x5xf32>
    %cst_25 = arith.constant dense<0.000000e+00> : vector<2x5xf32>
    %38 = tpu.matmul %36, %37, %cst_25 {dimension_numbers = #tpu.dot_dimension_numbers<[1], [0], [0], [1], [0, 0, 1, 1], [], []>} : vector<2x128xf32>, vector<128x5xf32>, vector<2x5xf32> -> vector<2x5xf32>
    %c0_26 = arith.constant 0 : index
    %c0_27 = arith.constant 0 : index
    %39 = vector.load %arg9[%c0_26, %c0_27] : memref<1x5xf32, #tpu.memory_space<vmem>>, vector<1x5xf32>
    %40 = vector.broadcast %39 : vector<1x5xf32> to vector<2x5xf32>
    %41 = arith.addf %38, %40 : vector<2x5xf32>
    %cst_28 = arith.constant dense<0xFF800000> : vector<2xf32>
    %42 = vector.multi_reduction <maximumf>, %41, %cst_28 [1] : vector<2x5xf32> to vector<2xf32>
    %43 = vector.shape_cast %42 : vector<2xf32> to vector<2x1xf32>
    %44 = vector.broadcast %43 : vector<2x1xf32> to vector<2x5xf32>
    %45 = arith.subf %41, %44 : vector<2x5xf32>
    %46 = math.exp %45 : vector<2x5xf32>
    %cst_29 = arith.constant dense<0.000000e+00> : vector<2xf32>
    %47 = vector.multi_reduction <add>, %46, %cst_29 [1] : vector<2x5xf32> to vector<2xf32>
    %48 = vector.shape_cast %47 : vector<2xf32> to vector<2x1xf32>
    %49 = tpu.reciprocal %48 {approx = true} : vector<2x1xf32> -> vector<2x1xf32>
    %50 = arith.mulf %48, %49 : vector<2x1xf32>
    %cst_30 = arith.constant 2.000000e+00 : f32
    %51 = vector.broadcast %cst_30 : f32 to vector<2x1xf32>
    %52 = arith.subf %51, %50 : vector<2x1xf32>
    %53 = arith.mulf %49, %52 : vector<2x1xf32>
    %54 = vector.broadcast %53 : vector<2x1xf32> to vector<2x5xf32>
    %55 = arith.mulf %46, %54 : vector<2x5xf32>
    %c2 = arith.constant 2 : index
    %c0_31 = arith.constant 0 : index
    %c0_32 = arith.constant 0 : index
    %56 = vector.load %arg1[%c2, %c0_31, %c0_32] : memref<3x2x128xf32, #tpu.memory_space<vmem>>, vector<1x2x128xf32>
    %57 = vector.shape_cast %56 : vector<1x2x128xf32> to vector<2x128xf32>
    %c0_33 = arith.constant 0 : index
    %c0_34 = arith.constant 0 : index
    %58 = vector.load %arg10[%c0_33, %c0_34] : memref<128x128xf32, #tpu.memory_space<vmem>>, vector<128x128xf32>
    %cst_35 = arith.constant dense<0.000000e+00> : vector<2x128xf32>
    %59 = tpu.matmul %57, %58, %cst_35 {dimension_numbers = #tpu.dot_dimension_numbers<[1], [0], [0], [1], [0, 0, 1, 1], [], []>} : vector<2x128xf32>, vector<128x128xf32>, vector<2x128xf32> -> vector<2x128xf32>
    %c0_36 = arith.constant 0 : index
    %c0_37 = arith.constant 0 : index
    %60 = vector.load %arg11[%c0_36, %c0_37] : memref<1x128xf32, #tpu.memory_space<vmem>>, vector<1x128xf32>
    %61 = vector.broadcast %60 : vector<1x128xf32> to vector<2x128xf32>
    %62 = arith.addf %59, %61 : vector<2x128xf32>
    %cst_38 = arith.constant 0.000000e+00 : f32
    %63 = vector.broadcast %cst_38 : f32 to vector<2x128xf32>
    %64 = arith.maximumf %62, %63 : vector<2x128xf32>
    %c0_39 = arith.constant 0 : index
    %c0_40 = arith.constant 0 : index
    %65 = vector.load %arg12[%c0_39, %c0_40] : memref<128x4xf32, #tpu.memory_space<vmem>>, vector<128x4xf32>
    %cst_41 = arith.constant dense<0.000000e+00> : vector<2x4xf32>
    %66 = tpu.matmul %64, %65, %cst_41 {dimension_numbers = #tpu.dot_dimension_numbers<[1], [0], [0], [1], [0, 0, 1, 1], [], []>} : vector<2x128xf32>, vector<128x4xf32>, vector<2x4xf32> -> vector<2x4xf32>
    %c0_42 = arith.constant 0 : index
    %c0_43 = arith.constant 0 : index
    %67 = vector.load %arg13[%c0_42, %c0_43] : memref<1x4xf32, #tpu.memory_space<vmem>>, vector<1x4xf32>
    %68 = vector.broadcast %67 : vector<1x4xf32> to vector<2x4xf32>
    %69 = arith.addf %66, %68 : vector<2x4xf32>
    %cst_44 = arith.constant dense<0xFF800000> : vector<2xf32>
    %70 = vector.multi_reduction <maximumf>, %69, %cst_44 [1] : vector<2x4xf32> to vector<2xf32>
    %71 = vector.shape_cast %70 : vector<2xf32> to vector<2x1xf32>
    %72 = vector.broadcast %71 : vector<2x1xf32> to vector<2x4xf32>
    %73 = arith.subf %69, %72 : vector<2x4xf32>
    %74 = math.exp %73 : vector<2x4xf32>
    %cst_45 = arith.constant dense<0.000000e+00> : vector<2xf32>
    %75 = vector.multi_reduction <add>, %74, %cst_45 [1] : vector<2x4xf32> to vector<2xf32>
    %76 = vector.shape_cast %75 : vector<2xf32> to vector<2x1xf32>
    %77 = tpu.reciprocal %76 {approx = true} : vector<2x1xf32> -> vector<2x1xf32>
    %78 = arith.mulf %76, %77 : vector<2x1xf32>
    %cst_46 = arith.constant 2.000000e+00 : f32
    %79 = vector.broadcast %cst_46 : f32 to vector<2x1xf32>
    %80 = arith.subf %79, %78 : vector<2x1xf32>
    %81 = arith.mulf %77, %80 : vector<2x1xf32>
    %82 = vector.broadcast %81 : vector<2x1xf32> to vector<2x4xf32>
    %83 = arith.mulf %74, %82 : vector<2x4xf32>
    %c0_47 = arith.constant 0 : index
    %c0_48 = arith.constant 0 : index
    %84 = vector.load %arg14[%c0_47, %c0_48] : memref<6x120xf32, #tpu.memory_space<vmem>>, vector<6x120xf32>
    %cst_49 = arith.constant dense<0.000000e+00> : vector<2x120xf32>
    %85 = tpu.matmul %27, %84, %cst_49 {dimension_numbers = #tpu.dot_dimension_numbers<[1], [0], [0], [1], [0, 0, 1, 1], [], []>} : vector<2x6xf32>, vector<6x120xf32>, vector<2x120xf32> -> vector<2x120xf32>
    %c0_50 = arith.constant 0 : index
    %c0_51 = arith.constant 0 : index
    %86 = vector.load %arg15[%c0_50, %c0_51] : memref<5x120xf32, #tpu.memory_space<vmem>>, vector<5x120xf32>
    %cst_52 = arith.constant dense<0.000000e+00> : vector<2x120xf32>
    %87 = tpu.matmul %55, %86, %cst_52 {dimension_numbers = #tpu.dot_dimension_numbers<[1], [0], [0], [1], [0, 0, 1, 1], [], []>} : vector<2x5xf32>, vector<5x120xf32>, vector<2x120xf32> -> vector<2x120xf32>
    %88 = arith.mulf %85, %87 : vector<2x120xf32>
    %c0_53 = arith.constant 0 : index
    %c0_54 = arith.constant 0 : index
    %89 = vector.load %arg16[%c0_53, %c0_54] : memref<4x120xf32, #tpu.memory_space<vmem>>, vector<4x120xf32>
    %cst_55 = arith.constant dense<0.000000e+00> : vector<2x120xf32>
    %90 = tpu.matmul %83, %89, %cst_55 {dimension_numbers = #tpu.dot_dimension_numbers<[1], [0], [0], [1], [0, 0, 1, 1], [], []>} : vector<2x4xf32>, vector<4x120xf32>, vector<2x120xf32> -> vector<2x120xf32>
    %91 = arith.mulf %88, %90 : vector<2x120xf32>
    %c0_56 = arith.constant 0 : index
    %c0_57 = arith.constant 0 : index
    %92 = vector.load %arg17[%c0_56, %c0_57] : memref<120x11xf32, #tpu.memory_space<vmem>>, vector<120x11xf32>
    %cst_58 = arith.constant dense<0.000000e+00> : vector<2x11xf32>
    %93 = tpu.matmul %91, %92, %cst_58 {dimension_numbers = #tpu.dot_dimension_numbers<[1], [0], [0], [1], [0, 0, 1, 1], [], []>} : vector<2x120xf32>, vector<120x11xf32>, vector<2x11xf32> -> vector<2x11xf32>
    %c0_59 = arith.constant 0 : index
    %c0_60 = arith.constant 0 : index
    %94 = vector.load %arg18[%c0_59, %c0_60] : memref<2x11xf32, #tpu.memory_space<vmem>>, vector<2x11xf32>
    tpu.vector_store %arg18[%c0_59, %c0_60], %93 {strides = array<i32>} : memref<2x11xf32, #tpu.memory_space<vmem>>, vector<2x11xf32>,
    return
  }
  func.func @transform_0(%arg0: i32) -> (i32, i32, i32) {
    %c0_i32 = arith.constant 0 : i32
    %c0_i32_0 = arith.constant 0 : i32
    %c0_i32_1 = arith.constant 0 : i32
    %c0_i32_2 = arith.constant 0 : i32
    return %c0_i32, %c0_i32_0, %c0_i32_1 : i32, i32, i32
  }
  func.func @transform_1(%arg0: i32) -> (i32, i32) {
    %c0_i32 = arith.constant 0 : i32
    %c0_i32_0 = arith.constant 0 : i32
    %c0_i32_1 = arith.constant 0 : i32
    return %c0_i32, %c0_i32_0 : i32, i32
  }
  func.func @transform_2(%arg0: i32) -> (i32, i32) {
    %c0_i32 = arith.constant 0 : i32
    %c0_i32_0 = arith.constant 0 : i32
    %c0_i32_1 = arith.constant 0 : i32
    return %c0_i32, %c0_i32_0 : i32, i32
  }
  func.func @transform_3(%arg0: i32) -> (i32, i32) {
    %c0_i32 = arith.constant 0 : i32
    %c0_i32_0 = arith.constant 0 : i32
    %c0_i32_1 = arith.constant 0 : i32
    return %c0_i32, %c0_i32_0 : i32, i32
  }
  func.func @transform_4(%arg0: i32) -> (i32, i32) {
    %c0_i32 = arith.constant 0 : i32
    %c0_i32_0 = arith.constant 0 : i32
    %c0_i32_1 = arith.constant 0 : i32
    return %c0_i32, %c0_i32_0 : i32, i32
  }
  func.func @transform_5(%arg0: i32) -> (i32, i32) {
    %c0_i32 = arith.constant 0 : i32
    %c0_i32_0 = arith.constant 0 : i32
    %c0_i32_1 = arith.constant 0 : i32
    return %c0_i32, %c0_i32_0 : i32, i32
  }
  func.func @transform_6(%arg0: i32) -> (i32, i32) {
    %c0_i32 = arith.constant 0 : i32
    %c0_i32_0 = arith.constant 0 : i32
    %c0_i32_1 = arith.constant 0 : i32
    return %c0_i32, %c0_i32_0 : i32, i32
  }
  func.func @transform_7(%arg0: i32) -> (i32, i32) {
    %c0_i32 = arith.constant 0 : i32
    %c0_i32_0 = arith.constant 0 : i32
    %c0_i32_1 = arith.constant 0 : i32
    return %c0_i32, %c0_i32_0 : i32, i32
  }
  func.func @transform_8(%arg0: i32) -> (i32, i32) {
    %c0_i32 = arith.constant 0 : i32
    %c0_i32_0 = arith.constant 0 : i32
    %c0_i32_1 = arith.constant 0 : i32
    return %c0_i32, %c0_i32_0 : i32, i32
  }
  func.func @transform_9(%arg0: i32) -> (i32, i32) {
    %c0_i32 = arith.constant 0 : i32
    %c0_i32_0 = arith.constant 0 : i32
    %c0_i32_1 = arith.constant 0 : i32
    return %c0_i32, %c0_i32_0 : i32, i32
  }
  func.func @transform_10(%arg0: i32) -> (i32, i32) {
    %c0_i32 = arith.constant 0 : i32
    %c0_i32_0 = arith.constant 0 : i32
    %c0_i32_1 = arith.constant 0 : i32
    return %c0_i32, %c0_i32_0 : i32, i32
  }
  func.func @transform_11(%arg0: i32) -> (i32, i32) {
    %c0_i32 = arith.constant 0 : i32
    %c0_i32_0 = arith.constant 0 : i32
    %c0_i32_1 = arith.constant 0 : i32
    return %c0_i32, %c0_i32_0 : i32, i32
  }
  func.func @transform_12(%arg0: i32) -> (i32, i32) {
    %c0_i32 = arith.constant 0 : i32
    %c0_i32_0 = arith.constant 0 : i32
    %c0_i32_1 = arith.constant 0 : i32
    return %c0_i32, %c0_i32_0 : i32, i32
  }
  func.func @transform_13(%arg0: i32) -> (i32, i32) {
    %c0_i32 = arith.constant 0 : i32
    %c0_i32_0 = arith.constant 0 : i32
    %c0_i32_1 = arith.constant 0 : i32
    return %c0_i32, %c0_i32_0 : i32, i32
  }
  func.func @transform_14(%arg0: i32) -> (i32, i32) {
    %c0_i32 = arith.constant 0 : i32
    %c0_i32_0 = arith.constant 0 : i32
    %c0_i32_1 = arith.constant 0 : i32
    return %c0_i32, %c0_i32_0 : i32, i32
  }
  func.func @transform_15(%arg0: i32) -> (i32, i32) {
    %c0_i32 = arith.constant 0 : i32
    %c0_i32_0 = arith.constant 0 : i32
    %c0_i32_1 = arith.constant 0 : i32
    return %c0_i32, %c0_i32_0 : i32, i32
  }
  func.func @transform_16(%arg0: i32) -> (i32, i32) {
    %c0_i32 = arith.constant 0 : i32
    %c0_i32_0 = arith.constant 0 : i32
    %c0_i32_1 = arith.constant 0 : i32
    return %c0_i32, %c0_i32_0 : i32, i32
  }
  func.func @transform_17(%arg0: i32) -> (i32, i32) {
    %c0_i32 = arith.constant 0 : i32
    %c0_i32_0 = arith.constant 0 : i32
    %c0_i32_1 = arith.constant 0 : i32
    return %c0_i32, %c0_i32_0 : i32, i32
  }
}

</mosaic_0001>

<llo_original>
// kernel: leaves_net_forward.4
$region0: #{leaves_net_forward.4}
  #allocation0 [shape = 'u32[]', space=smem, size = 0x4, offset = 0x4, fixed_abs, tag = 'smem constant byte address 0x4 - core index']
  #allocation1 [shape = 'u32[144,128]{1,0:T(1,128)}', space=vmem, size = 0x12000, scoped, tag = 'internal scratch']
  #allocation2 [shape = 'f32[57,96]{1,0:T(8,128)}', space=vmem, size = 0x8000, scoped, tag = 'scratch operand']
  %s0 = inlined_call_operand.vmem [shape: f32[2,57,57,300], index: 0, kind: input, shape index: {}]
  %s1 = inlined_call_operand.vmem [shape: f32[300,96], index: 1, kind: input, shape index: {}]
  %s2 = inlined_call_operand.vmem [shape: f32[1,96], index: 2, kind: input, shape index: {}]
  %s3 = inlined_call_operand.vmem [shape: f32[3,2,19,19,32], index: 3, kind: output, shape index: {}]
  %s4 = sld [smem:[#allocation0]]
  $region79: #{leaves_net_forward.4} parent=0
    _
  %s6 = ssub.s32 1, %s4
  %s7 = scalar_select 0, %s6, %s4
  $region1: #{leaves_net_forward.4} parent=0
    #allocation3 [shape = 'u8[73728]{0}', space=vmem, size = 0x12000, scoped, tag = 'output window, operand 0']
    loop: start=0, step=1, limit=40
    $region2: #{leaves_net_forward.4} parent=1 // loop_pre_header
      _
    $region3: #{leaves_net_forward.4} parent=1 // loop_header
      %s9 = sphi 0, %s13
      %p10 = scmp.ge.s32.totalorder %s9, 40
      %s16 = sphi 0, %s28
      %s17 = sphi 0, %s24
      %s18 = sphi 0, %s16
      %s19 = sphi 0, %s17
      %s20 = sphi 0, %s18
      %s21 = sphi 0, %s19
      %s33 = sphi 0, %s35
      %s36 = sphi 0, %s33
      %s37 = sphi 0, %s36
      %s53 = sphi 0, %s37
      %s57 = sphi 0, %s57
      %s59 = sphi 0, %s57
      %s60 = sphi 0, %s59
      %s74 = sphi 0, %s60
      %s78 = sphi 0, %s78
      %s80 = sphi 0, %s78
      %s81 = sphi 0, %s80
      %s95 = sphi 0, %s81
      %s103 = sphi 0, %s105
      %s106 = sphi 0, %s103
      %s107 = sphi 0, %s106
      %s123 = sphi 0, %s107
    $region4: #{leaves_net_forward.4} parent=1 // loop_header_branch
      %12 = sbr.rel (%p10) target = $region8
    $region5: #{leaves_net_forward.4} parent=1 // loop_body
      %s14 = ssub.s32 %s9, 1
      %s15 = ssub.s32 %s9, 2
      %s22 = sadd.s32 1, %s17
      %p23 = scmp.ge.s32.totalorder %s22, 19
      %s24 = scalar_select %p23, 0, %s22
      %s25 = sadd.s32 1, %s16
      %s26 = scalar_select %p23, %s25, %s16
      %p27 = scmp.ge.s32.totalorder %s26, 2
      %s28 = scalar_select %p27, 0, %s26
      %s29 = ssub.s32 %s16, %s28
      %s30 = ssub.s32 %s17, %s24
      %s31 = sor.u32 %s29, %s30
      %p32 = scmp.eq.s32.totalorder %s31, 0
      %s34 = sadd.s32 %s33, 1
      %s35 = scalar_select %p32, %s33, %s34
      %p38 = pneg %p32
      %p39 = scmp.eq.s32.totalorder %s9, 37
      %p40 = por %p38, %p39
      %p41 = scmp.ne.s32.totalorder %s33, %s36
      %p42 = scmp.eq.s32.totalorder %s9, 0
      %p43 = por %p41, %p42
      %p44 = scmp.ne.s32.totalorder %s33, %s36
      %p45 = scmp.eq.s32.totalorder %s14, 37
      %p46 = por %p44, %p45
      %p47 = scmp.ne.s32.totalorder %s36, %s37
      %p48 = scmp.eq.s32.totalorder %s14, 0
      %p49 = por %p47, %p48
      %p50 = scmp.ne.s32.totalorder %s36, %s37
      %p51 = scmp.eq.s32.totalorder %s15, 37
      %p52 = por %p50, %p51
      %p54 = scmp.ne.s32.totalorder %s37, %s53
      %p55 = scmp.eq.s32.totalorder %s15, 0
      %p56 = por %p54, %p55
      %s58 = sadd.s32 %s57, 1
      %p61 = scmp.eq.s32.totalorder %s9, 37
      %p62 = scmp.ne.s32.totalorder %s57, %s59
      %p63 = scmp.eq.s32.totalorder %s9, 0
      %p64 = por %p62, %p63
      %p65 = scmp.ne.s32.totalorder %s57, %s59
      %p66 = scmp.eq.s32.totalorder %s14, 37
      %p67 = por %p65, %p66
      %p68 = scmp.ne.s32.totalorder %s59, %s60
      %p69 = scmp.eq.s32.totalorder %s14, 0
      %p70 = por %p68, %p69
      %p71 = scmp.ne.s32.totalorder %s59, %s60
      %p72 = scmp.eq.s32.totalorder %s15, 37
      %p73 = por %p71, %p72
      %p75 = scmp.ne.s32.totalorder %s60, %s74
      %p76 = scmp.eq.s32.totalorder %s15, 0
      %p77 = por %p75, %p76
      %s79 = sadd.s32 %s78, 1
      %p82 = scmp.eq.s32.totalorder %s9, 37
      %p83 = scmp.ne.s32.totalorder %s78, %s80
      %p84 = scmp.eq.s32.totalorder %s9, 0
      %p85 = por %p83, %p84
      %p86 = scmp.ne.s32.totalorder %s78, %s80
      %p87 = scmp.eq.s32.totalorder %s14, 37
      %p88 = por %p86, %p87
      %p89 = scmp.ne.s32.totalorder %s80, %s81
      %p90 = scmp.eq.s32.totalorder %s14, 0
      %p91 = por %p89, %p90
      %p92 = scmp.ne.s32.totalorder %s80, %s81
      %p93 = scmp.eq.s32.totalorder %s15, 37
      %p94 = por %p92, %p93
      %p96 = scmp.ne.s32.totalorder %s81, %s95
      %p97 = scmp.eq.s32.totalorder %s15, 0
      %p98 = por %p96, %p97
      %s99 = ssub.s32 %s16, %s28
      %s100 = ssub.s32 %s17, %s24
      %s101 = sor.u32 %s99, %s100
      %p102 = scmp.eq.s32.totalorder %s101, 0
      %s104 = sadd.s32 %s103, 1
      %s105 = scalar_select %p102, %s103, %s104
      %p108 = pneg %p102
      %p109 = scmp.eq.s32.totalorder %s9, 37
      %p110 = por %p108, %p109
      %p111 = scmp.ne.s32.totalorder %s103, %s106
      %p112 = scmp.eq.s32.totalorder %s9, 0
      %p113 = por %p111, %p112
      %p114 = scmp.ne.s32.totalorder %s103, %s106
      %p115 = scmp.eq.s32.totalorder %s14, 37
      %p116 = por %p114, %p115
      %p117 = scmp.ne.s32.totalorder %s106, %s107
      %p118 = scmp.eq.s32.totalorder %s14, 0
      %p119 = por %p117, %p118
      %p120 = scmp.ne.s32.totalorder %s106, %s107
      %p121 = scmp.eq.s32.totalorder %s15, 37
      %p122 = por %p120, %p121
      %p124 = scmp.ne.s32.totalorder %s107, %s123
      %p125 = scmp.eq.s32.totalorder %s15, 0
      %p126 = por %p124, %p125
      %p127 = scmp.le.s32.totalorder 1, %s9
      %p128 = scmp.lt.s32.totalorder %s9, 39
      %p129 = pnand %p127, %p128
      %p130 = pneg %p129
      // Predicated region
      $region9: #{leaves_net_forward.4} parent=5 // pred_check
        _
      $region10: #{leaves_net_forward.4} parent=5 // pred_check_branch
        %132 = sbr.rel (%p129) target = $region12
      $region11: #{leaves_net_forward.4} parent=5 // pred_region
        %s133 = ssub.s32 %s9, 1
        // Predicated region
        $region13: #{leaves_net_forward.4} parent=11 // pred_check
          %p134 = pneg %p70
        $region14: #{leaves_net_forward.4} parent=11 // pred_check_branch
          %136 = sbr.rel (%p134) target = $region16
        $region15: #{leaves_net_forward.4} parent=11 // pred_region
          _
        $region16: #{leaves_net_forward.4} parent=11 // pred_fallthru
          _
        // Predicated region
        $region17: #{leaves_net_forward.4} parent=11 // pred_check
          %p137 = pneg %p91
        $region18: #{leaves_net_forward.4} parent=11 // pred_check_branch
          %139 = sbr.rel (%p137) target = $region20
        $region19: #{leaves_net_forward.4} parent=11 // pred_region
          _
        $region20: #{leaves_net_forward.4} parent=11 // pred_fallthru
          _
      $region12: #{leaves_net_forward.4} parent=5 // pred_fallthru
        _
      %p140 = scmp.lt.s32.totalorder %s9, 38
      // Predicated region
      $region21: #{leaves_net_forward.4} parent=5 // pred_check
        %p141 = pneg %p140
      $region22: #{leaves_net_forward.4} parent=5 // pred_check_branch
        %143 = sbr.rel (%p141) target = $region24
      $region23: #{leaves_net_forward.4} parent=5 // pred_region
        // Predicated region
        $region25: #{leaves_net_forward.4} parent=23 // pred_check
          %p144 = pneg %p43
        $region26: #{leaves_net_forward.4} parent=23 // pred_check_branch
          %146 = sbr.rel (%p144) target = $region28
        $region27: #{leaves_net_forward.4} parent=23 // pred_region
          %s147 = smul.u32 3, %s17
          %p148 = scmp.lt.s32.totalorder %s16, 1
          %s149 = scalar_select %p148, %s16, 1
          %p150 = scmp.lt.s32.totalorder %s147, 56
          %s151 = scalar_select %p150, %s147, 56
          %s152 = smul.addr %s151, 24
          %s153 = smul.addr %s149, 1368
          %s154 = sadd.s32 %s152, %s153
          %s155 = smul.addr %s154, 8
          %s156 = scalar_lea.vmem %s0, %s155
          %s157 = smul.u32 3, %s17
        $region28: #{leaves_net_forward.4} parent=23 // pred_fallthru
          _
      $region24: #{leaves_net_forward.4} parent=5 // pred_fallthru
        _
      %p158 = scmp.le.s32.totalorder 1, %s9
      %p159 = scmp.lt.s32.totalorder %s9, 39
      %p160 = pnand %p158, %p159
      %p161 = pneg %p160
      // Predicated region
      $region29: #{leaves_net_forward.4} parent=5 // pred_check
        _
      $region30: #{leaves_net_forward.4} parent=5 // pred_check_branch
        %163 = sbr.rel (%p160) target = $region32
      $region31: #{leaves_net_forward.4} parent=5 // pred_region
        %s164 = ssub.s32 %s9, 1
        %s165 = smul.u32 3, %s19
        %p166 = scmp.lt.s32.totalorder %s18, 1
        %s167 = scalar_select %p166, %s18, 1
        %p168 = scmp.lt.s32.totalorder %s165, 56
        %s169 = scalar_select %p168, %s165, 56
        %s170 = smul.addr %s169, 24
        %s171 = smul.addr %s167, 1368
        %s172 = sadd.s32 %s170, %s171
        %s173 = smul.addr %s172, 8
        %s174 = scalar_lea.vmem %s0, %s173
        %p175 = pneg %p49
        %p176 = pneg %p46
        %p177 = pneg %p70
        %p178 = pneg %p67
        %p179 = pneg %p91
        %p180 = pneg %p88
        %p181 = pneg %p119
        %p182 = pneg %p116
        %s183 = sand.u32 %s106, 1
        %s184 = sand.u32 %s106, 1
        %s185 = smul.addr %s184, 72
        %s186 = scalar_lea.vmem [#allocation3], %s185
        %s187 = smul.u32 3, %s19
        %p188 = scmp.lt.s32.totalorder %s18, 1
        %s189 = scalar_select %p188, %s18, 1
        %p190 = scmp.lt.s32.totalorder %s187, 56
        %s191 = scalar_select %p190, %s187, 56
        %s192 = smul.addr %s191, 24
        %s193 = smul.addr %s189, 1368
        %s194 = sadd.s32 %s192, %s193
        %s195 = smul.addr %s194, 8
        %s196 = scalar_lea.vmem %s0, %s195
        %s197 = smul.u32 3, %s19
        %v198 = vld [vmem:[%s1] sm:$0xff]
        %v199 = vld [vmem:[%s1 + $0x8] sm:$0xff]
        %v200 = vld [vmem:[%s1 + $0x10] sm:$0xff]
        %v201 = vld [vmem:[%s1 + $0x18] sm:$0xff]
        %v202 = vld [vmem:[%s1 + $0x20] sm:$0xff]
        %v203 = vld [vmem:[%s1 + $0x28] sm:$0xff]
        %v204 = vld [vmem:[%s1 + $0x30] sm:$0xff]
        %v205 = vld [vmem:[%s1 + $0x38] sm:$0xff]
        %v206 = vld [vmem:[%s1 + $0x40] sm:$0xff]
        %v207 = vld [vmem:[%s1 + $0x48] sm:$0xff]
        %v208 = vld [vmem:[%s1 + $0x50] sm:$0xff]
        %v209 = vld [vmem:[%s1 + $0x58] sm:$0xff]
        %v210 = vld [vmem:[%s1 + $0x60] sm:$0xff]
        %v211 = vld [vmem:[%s1 + $0x68] sm:$0xff]
        %v212 = vld [vmem:[%s1 + $0x70] sm:$0xff]
        %v213 = vld [vmem:[%s1 + $0x78] sm:$0xff]
        %v214 = vld [vmem:[%s1 + $0x80] sm:$0xff]
        %v215 = vld [vmem:[%s1 + $0x88] sm:$0xff]
        %v216 = vld [vmem:[%s1 + $0x90] sm:$0xff]
        %v217 = vld [vmem:[%s1 + $0x98] sm:$0xff]
        %v218 = vld [vmem:[%s1 + $0xa0] sm:$0xff]
        %v219 = vld [vmem:[%s1 + $0xa8] sm:$0xff]
        %v220 = vld [vmem:[%s1 + $0xb0] sm:$0xff]
        %v221 = vld [vmem:[%s1 + $0xb8] sm:$0xff]
        %v222 = vld [vmem:[%s1 + $0xc0] sm:$0xff]
        %v223 = vld [vmem:[%s1 + $0xc8] sm:$0xff]
        %v224 = vld [vmem:[%s1 + $0xd0] sm:$0xff]
        %v225 = vld [vmem:[%s1 + $0xd8] sm:$0xff]
        %v226 = vld [vmem:[%s1 + $0xe0] sm:$0xff]
        %v227 = vld [vmem:[%s1 + $0xe8] sm:$0xff]
        %v228 = vld [vmem:[%s1 + $0xf0] sm:$0xff]
        %v229 = vld [vmem:[%s1 + $0xf8] sm:$0xff]
        %v230 = vld [vmem:[%s1 + $0x100] sm:$0xff]
        %v231 = vld [vmem:[%s1 + $0x108] sm:$0xff]
        %v232 = vld [vmem:[%s1 + $0x110] sm:$0xff]
        %v233 = vld [vmem:[%s1 + $0x118] sm:$0xff]
        %v234 = vld [vmem:[%s1 + $0x120] sm:$0xff]
        %v235 = vld [vmem:[%s1 + $0x128] sm:$0xf]
        %v236 = vld [vmem:[%s196] sm:$0xff]
        %v237 = vld [vmem:[%s196 + $0x8] sm:$0xff]
        %v238 = vld [vmem:[%s196 + $0x10] sm:$0xff]
        %v239 = vld [vmem:[%s196 + $0x18] sm:$0xff]
        %v240 = vld [vmem:[%s196 + $0x20] sm:$0xff]
        %v241 = vld [vmem:[%s196 + $0x28] sm:$0xff]
        %v242 = vld [vmem:[%s196 + $0x30] sm:$0xff]
        %v243 = vld [vmem:[%s196 + $0x38] sm:$0xff]
        %v244 = vld [vmem:[%s196 + $0x40] sm:$0xff]
        %v245 = vld [vmem:[%s196 + $0x48] sm:$0xff]
        %v246 = vld [vmem:[%s196 + $0x50] sm:$0xff]
        %v247 = vld [vmem:[%s196 + $0x58] sm:$0xff]
        %v248 = vld [vmem:[%s196 + $0x60] sm:$0xff]
        %v249 = vld [vmem:[%s196 + $0x68] sm:$0xff]
        %v250 = vld [vmem:[%s196 + $0x70] sm:$0xff]
        %v251 = vld [vmem:[%s196 + $0x78] sm:$0xff]
        %v252 = vld [vmem:[%s196 + $0x80] sm:$0xff]
        %v253 = vld [vmem:[%s196 + $0x88] sm:$0xff]
        %v254 = vld [vmem:[%s196 + $0x90] sm:$0xff]
        %v255 = vld [vmem:[%s196 + $0x98] sm:$0xff]
        %v256 = vld [vmem:[%s196 + $0xa0] sm:$0xff]
        %v257 = vld [vmem:[%s196 + $0xa8] sm:$0x1]
        %v258 = vld [vmem:[%s196 + $0xb0] sm:$0x1]
        %v259 = vld [vmem:[%s196 + $0xb8] sm:$0x1]
        %vm260 = vcmask 359424
        %v262 = vsel %vm260, %v238, 0
        %v265 = vsel %vm260, %v241, 0
        %v268 = vsel %vm260, %v244, 0
        %v271 = vsel %vm260, %v247, 0
        %v274 = vsel %vm260, %v250, 0
        %v277 = vsel %vm260, %v253, 0
        %v280 = vsel %vm260, %v256, 0
        %v283 = vsel %vm260, %v259, 0
        %vm285 = vcmask 1043456
        %v287 = vsel %vm285, %v235, 0
        %289 = vmatprep.subr.mxu0 0.0
        %290 = vmatpush1.msra.mxu0 %v198
        %291 = vmatprep.subr.mxu0 0.0
        %292 = vmatpush1.msra.mxu0 %v199
        %293 = vmatprep.subr.mxu0 0.0
        %294 = vmatpush1.msra.mxu0 %v200
        %295 = vmatprep.subr.mxu0 0.0
        %296 = vmatpush1.msra.mxu0 %v201
        %297 = vmatprep.subr.mxu0 0.0
        %298 = vmatpush1.msra.mxu0 %v202
        %299 = vmatprep.subr.mxu0 0.0
        %300 = vmatpush1.msra.mxu0 %v203
        %301 = vmatprep.subr.mxu0 0.0
        %302 = vmatpush1.msra.mxu0 %v204
        %303 = vmatprep.subr.mxu0 0.0
        %304 = vmatpush1.msra.mxu0 %v205
        %305 = vmatprep.subr.mxu0 0.0
        %306 = vmatpush1.msra.mxu0 %v206
        %307 = vmatprep.subr.mxu0 0.0
        %308 = vmatpush1.msra.mxu0 %v207
        %309 = vmatprep.subr.mxu0 0.0
        %310 = vmatpush1.msra.mxu0 %v208
        %311 = vmatprep.subr.mxu0 0.0
        %312 = vmatpush1.msra.mxu0 %v209
        %313 = vmatprep.subr.mxu0 0.0
        %314 = vmatpush1.msra.mxu0 %v210
        %315 = vmatprep.subr.mxu0 0.0
        %316 = vmatpush1.msra.mxu0 %v211
        %317 = vmatprep.subr.mxu0 0.0
        %318 = vmatpush1.msra.mxu0 %v212
        %319 = vmatprep.subr.mxu0 0.0
        %320 = vmatpush1.msra.mxu0 %v213
        %321 = vmatprep.subr.mxu0 0.0
        %322 = vmatpush1.msra.mxu0 %v214
        %323 = vmatprep.subr.mxu0 0.0
        %324 = vmatpush1.msra.mxu0 %v215
        %325 = vmatprep.subr.mxu0 0.0
        %326 = vmatpush1.msra.mxu0 %v216
        %327 = vmatprep.subr.mxu0 0.0
        %328 = vmatpush1.msra.mxu0 %v217
        %329 = vmatprep.subr.mxu0 0.0
        %330 = vmatpush1.msra.mxu0 %v218
        %331 = vmatprep.subr.mxu0 0.0
        %332 = vmatpush1.msra.mxu0 %v219
        %333 = vmatprep.subr.mxu0 0.0
        %334 = vmatpush1.msra.mxu0 %v220
        %335 = vmatprep.subr.mxu0 0.0
        %336 = vmatpush1.msra.mxu0 %v221
        %337 = vmatprep.subr.mxu0 0.0
        %338 = vmatpush1.msra.mxu0 %v222
        %339 = vmatprep.subr.mxu0 0.0
        %340 = vmatpush1.msra.mxu0 %v223
        %341 = vmatprep.subr.mxu0 0.0
        %342 = vmatpush1.msra.mxu0 %v224
        %343 = vmatprep.subr.mxu0 0.0
        %344 = vmatpush1.msra.mxu0 %v225
        %345 = vmatprep.subr.mxu0 0.0
        %346 = vmatpush1.msra.mxu0 %v226
        %347 = vmatprep.subr.mxu0 0.0
        %348 = vmatpush1.msra.mxu0 %v227
        %349 = vmatprep.subr.mxu0 0.0
        %350 = vmatpush1.msra.mxu0 %v228
        %351 = vmatprep.subr.mxu0 0.0
        %352 = vmatpush1.msra.mxu0 %v229
        %353 = vmatprep.mubr.f32.mxu0 %v237
        %354 = vmatmul.mubr.f32.gmra.mrb[0].mxu0 %v236
        %v355 = vpop.f32.mrb[0].mxu0
        %v356 = vadd.f32 0.0, %v355
        %v357 = vpop.f32.mrb[0].mxu0
        %358 = vmatprep.mubr.f32.mxu0 %v240
        %359 = vmatmul.mubr.f32.gmra.mrb[0].mxu0 %v239
        %v360 = vpop.f32.mrb[0].mxu0
        %v361 = vadd.f32 0.0, %v360
        %v362 = vpop.f32.mrb[0].mxu0
        %363 = vmatprep.mubr.f32.mxu0 %v243
        %364 = vmatmul.mubr.f32.gmra.mrb[0].mxu0 %v242
        %v365 = vpop.f32.mrb[0].mxu0
        %v366 = vadd.f32 0.0, %v365
        %v367 = vpop.f32.mrb[0].mxu0
        %368 = vmatprep.mubr.f32.mxu0 %v246
        %369 = vmatmul.mubr.f32.gmra.mrb[0].mxu0 %v245
        %v370 = vpop.f32.mrb[0].mxu0
        %v371 = vadd.f32 0.0, %v370
        %v372 = vpop.f32.mrb[0].mxu0
        %373 = vmatprep.mubr.f32.mxu0 %v249
        %374 = vmatmul.mubr.f32.gmra.mrb[0].mxu0 %v248
        %v375 = vpop.f32.mrb[0].mxu0
        %v376 = vadd.f32 0.0, %v375
        %v377 = vpop.f32.mrb[0].mxu0
        %378 = vmatprep.mubr.f32.mxu0 %v252
        %379 = vmatmul.mubr.f32.gmra.mrb[0].mxu0 %v251
        %v380 = vpop.f32.mrb[0].mxu0
        %v381 = vadd.f32 0.0, %v380
        %v382 = vpop.f32.mrb[0].mxu0
        %383 = vmatprep.mubr.f32.mxu0 %v255
        %384 = vmatmul.mubr.f32.gmra.mrb[0].mxu0 %v254
        %v385 = vpop.f32.mrb[0].mxu0
        %v386 = vadd.f32 0.0, %v385
        %v387 = vpop.f32.mrb[0].mxu0
        %388 = vmatprep.mubr.f32.mxu0 %v258
        %389 = vmatmul.mubr.f32.gmra.mrb[0].mxu0 %v257
        %v390 = vpop.f32.mrb[0].mxu0
        %v391 = vadd.f32 0.0, %v390
        %v392 = vpop.f32.mrb[0].mxu0
        %393 = vdwg.mxu0
        %394 = vmatprep.subr.mxu0 0.0
        %395 = vmatpush1.msra.mxu0 %v230
        %396 = vmatprep.subr.mxu0 0.0
        %397 = vmatpush1.msra.mxu0 %v231
        %398 = vmatprep.subr.mxu0 0.0
        %399 = vmatpush1.msra.mxu0 %v232
        %400 = vmatprep.subr.mxu0 0.0
        %401 = vmatpush1.msra.mxu0 %v233
        %402 = vmatprep.subr.mxu0 0.0
        %403 = vmatpush1.msra.mxu0 %v234
        %404 = vmatprep.subr.mxu0 0.0
        %405 = vmatpush1.msra.mxu0 %v287
        %406 = vmatprep.subr.mxu0 0.0
        %407 = vmatpush1.msra.mxu0 0.0
        %408 = vmatprep.subr.mxu0 0.0
        %409 = vmatpush1.msra.mxu0 0.0
        %410 = vmatprep.subr.mxu0 0.0
        %411 = vmatpush1.msra.mxu0 0.0
        %412 = vmatprep.subr.mxu0 0.0
        %413 = vmatpush1.msra.mxu0 0.0
        %414 = vmatprep.subr.mxu0 0.0
        %415 = vmatpush1.msra.mxu0 0.0
        %416 = vmatprep.subr.mxu0 0.0
        %417 = vmatpush1.msra.mxu0 0.0
        %418 = vmatprep.subr.mxu0 0.0
        %419 = vmatpush1.msra.mxu0 0.0
        %420 = vmatprep.subr.mxu0 0.0
        %421 = vmatpush1.msra.mxu0 0.0
        %422 = vmatprep.subr.mxu0 0.0
        %423 = vmatpush1.msra.mxu0 0.0
        %424 = vmatprep.subr.mxu0 0.0
        %425 = vmatpush1.msra.mxu0 0.0
        %426 = vmatprep.subr.mxu0 0.0
        %427 = vmatpush1.msra.mxu0 0.0
        %428 = vmatprep.subr.mxu0 0.0
        %429 = vmatpush1.msra.mxu0 0.0
        %430 = vmatprep.subr.mxu0 0.0
        %431 = vmatpush1.msra.mxu0 0.0
        %432 = vmatprep.subr.mxu0 0.0
        %433 = vmatpush1.msra.mxu0 0.0
        %434 = vmatprep.subr.mxu0 0.0
        %435 = vmatpush1.msra.mxu0 0.0
        %436 = vmatprep.subr.mxu0 0.0
        %437 = vmatpush1.msra.mxu0 0.0
        %438 = vmatprep.subr.mxu0 0.0
        %439 = vmatpush1.msra.mxu0 0.0
        %440 = vmatprep.subr.mxu0 0.0
        %441 = vmatpush1.msra.mxu0 0.0
        %442 = vmatprep.subr.mxu0 0.0
        %443 = vmatpush1.msra.mxu0 0.0
        %444 = vmatprep.subr.mxu0 0.0
        %445 = vmatpush1.msra.mxu0 0.0
        %446 = vmatprep.subr.mxu0 0.0
        %447 = vmatpush1.msra.mxu0 0.0
        %448 = vmatprep.subr.mxu0 0.0
        %449 = vmatpush1.msra.mxu0 0.0
        %450 = vmatprep.subr.mxu0 0.0
        %451 = vmatpush1.msra.mxu0 0.0
        %452 = vmatprep.subr.mxu0 0.0
        %453 = vmatpush1.msra.mxu0 0.0
        %454 = vmatprep.subr.mxu0 0.0
        %455 = vmatpush1.msra.mxu0 0.0
        %456 = vmatprep.subr.mxu0 0.0
        %457 = vmatpush1.msra.mxu0 0.0
        %458 = vmatprep.mubr.f32.mxu0 0.0
        %459 = vmatmul.mubr.f32.gmra.mrb[0].mxu0 %v262
        %v460 = vpop.f32.mrb[0].mxu0
        %v461 = vadd.f32 %v356, %v460
        %v462 = vpop.f32.mrb[0].mxu0
        %463 = vmatprep.mubr.f32.mxu0 0.0
        %464 = vmatmul.mubr.f32.gmra.mrb[0].mxu0 %v265
        %v465 = vpop.f32.mrb[0].mxu0
        %v466 = vadd.f32 %v361, %v465
        %v467 = vpop.f32.mrb[0].mxu0
        %468 = vmatprep.mubr.f32.mxu0 0.0
        %469 = vmatmul.mubr.f32.gmra.mrb[0].mxu0 %v268
        %v470 = vpop.f32.mrb[0].mxu0
        %v471 = vadd.f32 %v366, %v470
        %v472 = vpop.f32.mrb[0].mxu0
        %473 = vmatprep.mubr.f32.mxu0 0.0
        %474 = vmatmul.mubr.f32.gmra.mrb[0].mxu0 %v271
        %v475 = vpop.f32.mrb[0].mxu0
        %v476 = vadd.f32 %v371, %v475
        %v477 = vpop.f32.mrb[0].mxu0
        %478 = vmatprep.mubr.f32.mxu0 0.0
        %479 = vmatmul.mubr.f32.gmra.mrb[0].mxu0 %v274
        %v480 = vpop.f32.mrb[0].mxu0
        %v481 = vadd.f32 %v376, %v480
        %v482 = vpop.f32.mrb[0].mxu0
        %483 = vmatprep.mubr.f32.mxu0 0.0
        %484 = vmatmul.mubr.f32.gmra.mrb[0].mxu0 %v277
        %v485 = vpop.f32.mrb[0].mxu0
        %v486 = vadd.f32 %v381, %v485
        %v487 = vpop.f32.mrb[0].mxu0
        %488 = vmatprep.mubr.f32.mxu0 0.0
        %489 = vmatmul.mubr.f32.gmra.mrb[0].mxu0 %v280
        %v490 = vpop.f32.mrb[0].mxu0
        %v491 = vadd.f32 %v386, %v490
        %v492 = vpop.f32.mrb[0].mxu0
        %493 = vmatprep.mubr.f32.mxu0 0.0
        %494 = vmatmul.mubr.f32.gmra.mrb[0].mxu0 %v283
        %v495 = vpop.f32.mrb[0].mxu0
        %v496 = vadd.f32 %v391, %v495
        %v497 = vpop.f32.mrb[0].mxu0
        %498 = vdwg.mxu0
        %s499 = scalar_lea.vmem %s196, 192
        %v500 = vld [vmem:[%s499] sm:$0xff]
        %v501 = vld [vmem:[%s499 + $0x8] sm:$0xff]
        %v502 = vld [vmem:[%s499 + $0x10] sm:$0xff]
        %v503 = vld [vmem:[%s499 + $0x18] sm:$0xff]
        %v504 = vld [vmem:[%s499 + $0x20] sm:$0xff]
        %v505 = vld [vmem:[%s499 + $0x28] sm:$0xff]
        %v506 = vld [vmem:[%s499 + $0x30] sm:$0xff]
        %v507 = vld [vmem:[%s499 + $0x38] sm:$0xff]
        %v508 = vld [vmem:[%s499 + $0x40] sm:$0xff]
        %v509 = vld [vmem:[%s499 + $0x48] sm:$0xff]
        %v510 = vld [vmem:[%s499 + $0x50] sm:$0xff]
        %v511 = vld [vmem:[%s499 + $0x58] sm:$0xff]
        %v512 = vld [vmem:[%s499 + $0x60] sm:$0xff]
        %v513 = vld [vmem:[%s499 + $0x68] sm:$0xff]
        %v514 = vld [vmem:[%s499 + $0x70] sm:$0xff]
        %v515 = vld [vmem:[%s499 + $0x78] sm:$0xff]
        %v516 = vld [vmem:[%s499 + $0x80] sm:$0xff]
        %v517 = vld [vmem:[%s499 + $0x88] sm:$0xff]
        %v518 = vld [vmem:[%s499 + $0x90] sm:$0xff]
        %v519 = vld [vmem:[%s499 + $0x98] sm:$0xff]
        %v520 = vld [vmem:[%s499 + $0xa0] sm:$0xff]
        %v521 = vld [vmem:[%s499 + $0xa8] sm:$0x1]
        %v522 = vld [vmem:[%s499 + $0xb0] sm:$0x1]
        %v523 = vld [vmem:[%s499 + $0xb8] sm:$0x1]
        %v525 = vsel %vm260, %v502, 0
        %v528 = vsel %vm260, %v505, 0
        %v531 = vsel %vm260, %v508, 0
        %v534 = vsel %vm260, %v511, 0
        %v537 = vsel %vm260, %v514, 0
        %v540 = vsel %vm260, %v517, 0
        %v543 = vsel %vm260, %v520, 0
        %v546 = vsel %vm260, %v523, 0
        %548 = vmatprep.subr.mxu0 0.0
        %549 = vmatpush1.msra.mxu0 %v198
        %550 = vmatprep.subr.mxu0 0.0
        %551 = vmatpush1.msra.mxu0 %v199
        %552 = vmatprep.subr.mxu0 0.0
        %553 = vmatpush1.msra.mxu0 %v200
        %554 = vmatprep.subr.mxu0 0.0
        %555 = vmatpush1.msra.mxu0 %v201
        %556 = vmatprep.subr.mxu0 0.0
        %557 = vmatpush1.msra.mxu0 %v202
        %558 = vmatprep.subr.mxu0 0.0
        %559 = vmatpush1.msra.mxu0 %v203
        %560 = vmatprep.subr.mxu0 0.0
        %561 = vmatpush1.msra.mxu0 %v204
        %562 = vmatprep.subr.mxu0 0.0
        %563 = vmatpush1.msra.mxu0 %v205
        %564 = vmatprep.subr.mxu0 0.0
        %565 = vmatpush1.msra.mxu0 %v206
        %566 = vmatprep.subr.mxu0 0.0
        %567 = vmatpush1.msra.mxu0 %v207
        %568 = vmatprep.subr.mxu0 0.0
        %569 = vmatpush1.msra.mxu0 %v208
        %570 = vmatprep.subr.mxu0 0.0
        %571 = vmatpush1.msra.mxu0 %v209
        %572 = vmatprep.subr.mxu0 0.0
        %573 = vmatpush1.msra.mxu0 %v210
        %574 = vmatprep.subr.mxu0 0.0
        %575 = vmatpush1.msra.mxu0 %v211
        %576 = vmatprep.subr.mxu0 0.0
        %577 = vmatpush1.msra.mxu0 %v212
        %578 = vmatprep.subr.mxu0 0.0
        %579 = vmatpush1.msra.mxu0 %v213
        %580 = vmatprep.subr.mxu0 0.0
        %581 = vmatpush1.msra.mxu0 %v214
        %582 = vmatprep.subr.mxu0 0.0
        %583 = vmatpush1.msra.mxu0 %v215
        %584 = vmatprep.subr.mxu0 0.0
        %585 = vmatpush1.msra.mxu0 %v216
        %586 = vmatprep.subr.mxu0 0.0
        %587 = vmatpush1.msra.mxu0 %v217
        %588 = vmatprep.subr.mxu0 0.0
        %589 = vmatpush1.msra.mxu0 %v218
        %590 = vmatprep.subr.mxu0 0.0
        %591 = vmatpush1.msra.mxu0 %v219
        %592 = vmatprep.subr.mxu0 0.0
        %593 = vmatpush1.msra.mxu0 %v220
        %594 = vmatprep.subr.mxu0 0.0
        %595 = vmatpush1.msra.mxu0 %v221
        %596 = vmatprep.subr.mxu0 0.0
        %597 = vmatpush1.msra.mxu0 %v222
        %598 = vmatprep.subr.mxu0 0.0
        %599 = vmatpush1.msra.mxu0 %v223
        %600 = vmatprep.subr.mxu0 0.0
        %601 = vmatpush1.msra.mxu0 %v224
        %602 = vmatprep.subr.mxu0 0.0
        %603 = vmatpush1.msra.mxu0 %v225
        %604 = vmatprep.subr.mxu0 0.0
        %605 = vmatpush1.msra.mxu0 %v226
        %606 = vmatprep.subr.mxu0 0.0
        %607 = vmatpush1.msra.mxu0 %v227
        %608 = vmatprep.subr.mxu0 0.0
        %609 = vmatpush1.msra.mxu0 %v228
        %610 = vmatprep.subr.mxu0 0.0
        %611 = vmatpush1.msra.mxu0 %v229
        %612 = vmatprep.mubr.f32.mxu0 %v501
        %613 = vmatmul.mubr.f32.gmra.mrb[0].mxu0 %v500
        %v614 = vpop.f32.mrb[0].mxu0
        %v615 = vadd.f32 0.0, %v614
        %v616 = vpop.f32.mrb[0].mxu0
        %617 = vmatprep.mubr.f32.mxu0 %v504
        %618 = vmatmul.mubr.f32.gmra.mrb[0].mxu0 %v503
        %v619 = vpop.f32.mrb[0].mxu0
        %v620 = vadd.f32 0.0, %v619
        %v621 = vpop.f32.mrb[0].mxu0
        %622 = vmatprep.mubr.f32.mxu0 %v507
        %623 = vmatmul.mubr.f32.gmra.mrb[0].mxu0 %v506
        %v624 = vpop.f32.mrb[0].mxu0
        %v625 = vadd.f32 0.0, %v624
        %v626 = vpop.f32.mrb[0].mxu0
        %627 = vmatprep.mubr.f32.mxu0 %v510
        %628 = vmatmul.mubr.f32.gmra.mrb[0].mxu0 %v509
        %v629 = vpop.f32.mrb[0].mxu0
        %v630 = vadd.f32 0.0, %v629
        %v631 = vpop.f32.mrb[0].mxu0
        %632 = vmatprep.mubr.f32.mxu0 %v513
        %633 = vmatmul.mubr.f32.gmra.mrb[0].mxu0 %v512
        %v634 = vpop.f32.mrb[0].mxu0
        %v635 = vadd.f32 0.0, %v634
        %v636 = vpop.f32.mrb[0].mxu0
        %637 = vmatprep.mubr.f32.mxu0 %v516
        %638 = vmatmul.mubr.f32.gmra.mrb[0].mxu0 %v515
        %v639 = vpop.f32.mrb[0].mxu0
        %v640 = vadd.f32 0.0, %v639
        %v641 = vpop.f32.mrb[0].mxu0
        %642 = vmatprep.mubr.f32.mxu0 %v519
        %643 = vmatmul.mubr.f32.gmra.mrb[0].mxu0 %v518
        %v644 = vpop.f32.mrb[0].mxu0
        %v645 = vadd.f32 0.0, %v644
        %v646 = vpop.f32.mrb[0].mxu0
        %647 = vmatprep.mubr.f32.mxu0 %v522
        %648 = vmatmul.mubr.f32.gmra.mrb[0].mxu0 %v521
        %v649 = vpop.f32.mrb[0].mxu0
        %v650 = vadd.f32 0.0, %v649
        %v651 = vpop.f32.mrb[0].mxu0
        %652 = vdwg.mxu0
        %653 = vmatprep.subr.mxu0 0.0
        %654 = vmatpush1.msra.mxu0 %v230
        %655 = vmatprep.subr.mxu0 0.0
        %656 = vmatpush1.msra.mxu0 %v231
        %657 = vmatprep.subr.mxu0 0.0
        %658 = vmatpush1.msra.mxu0 %v232
        %659 = vmatprep.subr.mxu0 0.0
        %660 = vmatpush1.msra.mxu0 %v233
        %661 = vmatprep.subr.mxu0 0.0
        %662 = vmatpush1.msra.mxu0 %v234
        %663 = vmatprep.subr.mxu0 0.0
        %664 = vmatpush1.msra.mxu0 %v287
        %665 = vmatprep.subr.mxu0 0.0
        %666 = vmatpush1.msra.mxu0 0.0
        %667 = vmatprep.subr.mxu0 0.0
        %668 = vmatpush1.msra.mxu0 0.0
        %669 = vmatprep.subr.mxu0 0.0
        %670 = vmatpush1.msra.mxu0 0.0
        %671 = vmatprep.subr.mxu0 0.0
        %672 = vmatpush1.msra.mxu0 0.0
        %673 = vmatprep.subr.mxu0 0.0
        %674 = vmatpush1.msra.mxu0 0.0
        %675 = vmatprep.subr.mxu0 0.0
        %676 = vmatpush1.msra.mxu0 0.0
        %677 = vmatprep.subr.mxu0 0.0
        %678 = vmatpush1.msra.mxu0 0.0
        %679 = vmatprep.subr.mxu0 0.0
        %680 = vmatpush1.msra.mxu0 0.0
        %681 = vmatprep.subr.mxu0 0.0
        %682 = vmatpush1.msra.mxu0 0.0
        %683 = vmatprep.subr.mxu0 0.0
        %684 = vmatpush1.msra.mxu0 0.0
        %685 = vmatprep.subr.mxu0 0.0
        %686 = vmatpush1.msra.mxu0 0.0
        %687 = vmatprep.subr.mxu0 0.0
        %688 = vmatpush1.msra.mxu0 0.0
        %689 = vmatprep.subr.mxu0 0.0
        %690 = vmatpush1.msra.mxu0 0.0
        %691 = vmatprep.subr.mxu0 0.0
        %692 = vmatpush1.msra.mxu0 0.0
        %693 = vmatprep.subr.mxu0 0.0
        %694 = vmatpush1.msra.mxu0 0.0
        %695 = vmatprep.subr.mxu0 0.0
        %696 = vmatpush1.msra.mxu0 0.0
        %697 = vmatprep.subr.mxu0 0.0
        %698 = vmatpush1.msra.mxu0 0.0
        %699 = vmatprep.subr.mxu0 0.0
        %700 = vmatpush1.msra.mxu0 0.0
        %701 = vmatprep.subr.mxu0 0.0
        %702 = vmatpush1.msra.mxu0 0.0
        %703 = vmatprep.subr.mxu0 0.0
        %704 = vmatpush1.msra.mxu0 0.0
        %705 = vmatprep.subr.mxu0 0.0
        %706 = vmatpush1.msra.mxu0 0.0
        %707 = vmatprep.subr.mxu0 0.0
        %708 = vmatpush1.msra.mxu0 0.0
        %709 = vmatprep.subr.mxu0 0.0
        %710 = vmatpush1.msra.mxu0 0.0
        %711 = vmatprep.subr.mxu0 0.0
        %712 = vmatpush1.msra.mxu0 0.0
        %713 = vmatprep.subr.mxu0 0.0
        %714 = vmatpush1.msra.mxu0 0.0
        %715 = vmatprep.subr.mxu0 0.0
        %716 = vmatpush1.msra.mxu0 0.0
        %717 = vmatprep.mubr.f32.mxu0 0.0
        %718 = vmatmul.mubr.f32.gmra.mrb[0].mxu0 %v525
        %v719 = vpop.f32.mrb[0].mxu0
        %v720 = vadd.f32 %v615, %v719
        %v721 = vpop.f32.mrb[0].mxu0
        %722 = vmatprep.mubr.f32.mxu0 0.0
        %723 = vmatmul.mubr.f32.gmra.mrb[0].mxu0 %v528
        %v724 = vpop.f32.mrb[0].mxu0
        %v725 = vadd.f32 %v620, %v724
        %v726 = vpop.f32.mrb[0].mxu0
        %727 = vmatprep.mubr.f32.mxu0 0.0
        %728 = vmatmul.mubr.f32.gmra.mrb[0].mxu0 %v531
        %v729 = vpop.f32.mrb[0].mxu0
        %v730 = vadd.f32 %v625, %v729
        %v731 = vpop.f32.mrb[0].mxu0
        %732 = vmatprep.mubr.f32.mxu0 0.0
        %733 = vmatmul.mubr.f32.gmra.mrb[0].mxu0 %v534
        %v734 = vpop.f32.mrb[0].mxu0
        %v735 = vadd.f32 %v630, %v734
        %v736 = vpop.f32.mrb[0].mxu0
        %737 = vmatprep.mubr.f32.mxu0 0.0
        %738 = vmatmul.mubr.f32.gmra.mrb[0].mxu0 %v537
        %v739 = vpop.f32.mrb[0].mxu0
        %v740 = vadd.f32 %v635, %v739
        %v741 = vpop.f32.mrb[0].mxu0
        %742 = vmatprep.mubr.f32.mxu0 0.0
        %743 = vmatmul.mubr.f32.gmra.mrb[0].mxu0 %v540
        %v744 = vpop.f32.mrb[0].mxu0
        %v745 = vadd.f32 %v640, %v744
        %v746 = vpop.f32.mrb[0].mxu0
        %747 = vmatprep.mubr.f32.mxu0 0.0
        %748 = vmatmul.mubr.f32.gmra.mrb[0].mxu0 %v543
        %v749 = vpop.f32.mrb[0].mxu0
        %v750 = vadd.f32 %v645, %v749
        %v751 = vpop.f32.mrb[0].mxu0
        %752 = vmatprep.mubr.f32.mxu0 0.0
        %753 = vmatmul.mubr.f32.gmra.mrb[0].mxu0 %v546
        %v754 = vpop.f32.mrb[0].mxu0
        %v755 = vadd.f32 %v650, %v754
        %v756 = vpop.f32.mrb[0].mxu0
        %757 = vdwg.mxu0
        %v758 = vmax.f32 %v461, %v720
        %v759 = vmax.f32 %v466, %v725
        %v760 = vmax.f32 %v471, %v730
        %v761 = vmax.f32 %v476, %v735
        %v762 = vmax.f32 %v481, %v740
        %v763 = vmax.f32 %v486, %v745
        %v764 = vmax.f32 %v491, %v750
        %v765 = vmax.f32 %v496, %v755
        %s766 = scalar_lea.vmem %s196, 384
        %v767 = vld [vmem:[%s766] sm:$0xff]
        %v768 = vld [vmem:[%s766 + $0x8] sm:$0xff]
        %v769 = vld [vmem:[%s766 + $0x10] sm:$0xff]
        %v770 = vld [vmem:[%s766 + $0x18] sm:$0xff]
        %v771 = vld [vmem:[%s766 + $0x20] sm:$0xff]
        %v772 = vld [vmem:[%s766 + $0x28] sm:$0xff]
        %v773 = vld [vmem:[%s766 + $0x30] sm:$0xff]
        %v774 = vld [vmem:[%s766 + $0x38] sm:$0xff]
        %v775 = vld [vmem:[%s766 + $0x40] sm:$0xff]
        %v776 = vld [vmem:[%s766 + $0x48] sm:$0xff]
        %v777 = vld [vmem:[%s766 + $0x50] sm:$0xff]
        %v778 = vld [vmem:[%s766 + $0x58] sm:$0xff]
        %v779 = vld [vmem:[%s766 + $0x60] sm:$0xff]
        %v780 = vld [vmem:[%s766 + $0x68] sm:$0xff]
        %v781 = vld [vmem:[%s766 + $0x70] sm:$0xff]
        %v782 = vld [vmem:[%s766 + $0x78] sm:$0xff]
        %v783 = vld [vmem:[%s766 + $0x80] sm:$0xff]
        %v784 = vld [vmem:[%s766 + $0x88] sm:$0xff]
        %v785 = vld [vmem:[%s766 + $0x90] sm:$0xff]
        %v786 = vld [vmem:[%s766 + $0x98] sm:$0xff]
        %v787 = vld [vmem:[%s766 + $0xa0] sm:$0xff]
        %v788 = vld [vmem:[%s766 + $0xa8] sm:$0x1]
        %v789 = vld [vmem:[%s766 + $0xb0] sm:$0x1]
        %v790 = vld [vmem:[%s766 + $0xb8] sm:$0x1]
        %v792 = vsel %vm260, %v769, 0
        %v795 = vsel %vm260, %v772, 0
        %v798 = vsel %vm260, %v775, 0
        %v801 = vsel %vm260, %v778, 0
        %v804 = vsel %vm260, %v781, 0
        %v807 = vsel %vm260, %v784, 0
        %v810 = vsel %vm260, %v787, 0
        %v813 = vsel %vm260, %v790, 0
        %815 = vmatprep.subr.mxu0 0.0
        %816 = vmatpush1.msra.mxu0 %v198
        %817 = vmatprep.subr.mxu0 0.0
        %818 = vmatpush1.msra.mxu0 %v199
        %819 = vmatprep.subr.mxu0 0.0
        %820 = vmatpush1.msra.mxu0 %v200
        %821 = vmatprep.subr.mxu0 0.0
        %822 = vmatpush1.msra.mxu0 %v201
        %823 = vmatprep.subr.mxu0 0.0
        %824 = vmatpush1.msra.mxu0 %v202
        %825 = vmatprep.subr.mxu0 0.0
        %826 = vmatpush1.msra.mxu0 %v203
        %827 = vmatprep.subr.mxu0 0.0
        %828 = vmatpush1.msra.mxu0 %v204
        %829 = vmatprep.subr.mxu0 0.0
        %830 = vmatpush1.msra.mxu0 %v205
        %831 = vmatprep.subr.mxu0 0.0
        %832 = vmatpush1.msra.mxu0 %v206
        %833 = vmatprep.subr.mxu0 0.0
        %834 = vmatpush1.msra.mxu0 %v207
        %835 = vmatprep.subr.mxu0 0.0
        %836 = vmatpush1.msra.mxu0 %v208
        %837 = vmatprep.subr.mxu0 0.0
        %838 = vmatpush1.msra.mxu0 %v209
        %839 = vmatprep.subr.mxu0 0.0
        %840 = vmatpush1.msra.mxu0 %v210
        %841 = vmatprep.subr.mxu0 0.0
        %842 = vmatpush1.msra.mxu0 %v211
        %843 = vmatprep.subr.mxu0 0.0
        %844 = vmatpush1.msra.mxu0 %v212
        %845 = vmatprep.subr.mxu0 0.0
        %846 = vmatpush1.msra.mxu0 %v213
        %847 = vmatprep.subr.mxu0 0.0
        %848 = vmatpush1.msra.mxu0 %v214
        %849 = vmatprep.subr.mxu0 0.0
        %850 = vmatpush1.msra.mxu0 %v215
        %851 = vmatprep.subr.mxu0 0.0
        %852 = vmatpush1.msra.mxu0 %v216
        %853 = vmatprep.subr.mxu0 0.0
        %854 = vmatpush1.msra.mxu0 %v217
        %855 = vmatprep.subr.mxu0 0.0
        %856 = vmatpush1.msra.mxu0 %v218
        %857 = vmatprep.subr.mxu0 0.0
        %858 = vmatpush1.msra.mxu0 %v219
        %859 = vmatprep.subr.mxu0 0.0
        %860 = vmatpush1.msra.mxu0 %v220
        %861 = vmatprep.subr.mxu0 0.0
        %862 = vmatpush1.msra.mxu0 %v221
        %863 = vmatprep.subr.mxu0 0.0
        %864 = vmatpush1.msra.mxu0 %v222
        %865 = vmatprep.subr.mxu0 0.0
        %866 = vmatpush1.msra.mxu0 %v223
        %867 = vmatprep.subr.mxu0 0.0
        %868 = vmatpush1.msra.mxu0 %v224
        %869 = vmatprep.subr.mxu0 0.0
        %870 = vmatpush1.msra.mxu0 %v225
        %871 = vmatprep.subr.mxu0 0.0
        %872 = vmatpush1.msra.mxu0 %v226
        %873 = vmatprep.subr.mxu0 0.0
        %874 = vmatpush1.msra.mxu0 %v227
        %875 = vmatprep.subr.mxu0 0.0
        %876 = vmatpush1.msra.mxu0 %v228
        %877 = vmatprep.subr.mxu0 0.0
        %878 = vmatpush1.msra.mxu0 %v229
        %879 = vmatprep.mubr.f32.mxu0 %v768
        %880 = vmatmul.mubr.f32.gmra.mrb[0].mxu0 %v767
        %v881 = vpop.f32.mrb[0].mxu0
        %v882 = vadd.f32 0.0, %v881
        %v883 = vpop.f32.mrb[0].mxu0
        %884 = vmatprep.mubr.f32.mxu0 %v771
        %885 = vmatmul.mubr.f32.gmra.mrb[0].mxu0 %v770
        %v886 = vpop.f32.mrb[0].mxu0
        %v887 = vadd.f32 0.0, %v886
        %v888 = vpop.f32.mrb[0].mxu0
        %889 = vmatprep.mubr.f32.mxu0 %v774
        %890 = vmatmul.mubr.f32.gmra.mrb[0].mxu0 %v773
        %v891 = vpop.f32.mrb[0].mxu0
        %v892 = vadd.f32 0.0, %v891
        %v893 = vpop.f32.mrb[0].mxu0
        %894 = vmatprep.mubr.f32.mxu0 %v777
        %895 = vmatmul.mubr.f32.gmra.mrb[0].mxu0 %v776
        %v896 = vpop.f32.mrb[0].mxu0
        %v897 = vadd.f32 0.0, %v896
        %v898 = vpop.f32.mrb[0].mxu0
        %899 = vmatprep.mubr.f32.mxu0 %v780
        %900 = vmatmul.mubr.f32.gmra.mrb[0].mxu0 %v779
        %v901 = vpop.f32.mrb[0].mxu0
        %v902 = vadd.f32 0.0, %v901
        %v903 = vpop.f32.mrb[0].mxu0
        %904 = vmatprep.mubr.f32.mxu0 %v783
        %905 = vmatmul.mubr.f32.gmra.mrb[0].mxu0 %v782
        %v906 = vpop.f32.mrb[0].mxu0
        %v907 = vadd.f32 0.0, %v906
        %v908 = vpop.f32.mrb[0].mxu0
        %909 = vmatprep.mubr.f32.mxu0 %v786
        %910 = vmatmul.mubr.f32.gmra.mrb[0].mxu0 %v785
        %v911 = vpop.f32.mrb[0].mxu0
        %v912 = vadd.f32 0.0, %v911
        %v913 = vpop.f32.mrb[0].mxu0
        %914 = vmatprep.mubr.f32.mxu0 %v789
        %915 = vmatmul.mubr.f32.gmra.mrb[0].mxu0 %v788
        %v916 = vpop.f32.mrb[0].mxu0
        %v917 = vadd.f32 0.0, %v916
        %v918 = vpop.f32.mrb[0].mxu0
        %919 = vdwg.mxu0
        %920 = vmatprep.subr.mxu0 0.0
        %921 = vmatpush1.msra.mxu0 %v230
        %922 = vmatprep.subr.mxu0 0.0
        %923 = vmatpush1.msra.mxu0 %v231
        %924 = vmatprep.subr.mxu0 0.0
        %925 = vmatpush1.msra.mxu0 %v232
        %926 = vmatprep.subr.mxu0 0.0
        %927 = vmatpush1.msra.mxu0 %v233
        %928 = vmatprep.subr.mxu0 0.0
        %929 = vmatpush1.msra.mxu0 %v234
        %930 = vmatprep.subr.mxu0 0.0
        %931 = vmatpush1.msra.mxu0 %v287
        %932 = vmatprep.subr.mxu0 0.0
        %933 = vmatpush1.msra.mxu0 0.0
        %934 = vmatprep.subr.mxu0 0.0
        %935 = vmatpush1.msra.mxu0 0.0
        %936 = vmatprep.subr.mxu0 0.0
        %937 = vmatpush1.msra.mxu0 0.0
        %938 = vmatprep.subr.mxu0 0.0
        %939 = vmatpush1.msra.mxu0 0.0
        %940 = vmatprep.subr.mxu0 0.0
        %941 = vmatpush1.msra.mxu0 0.0
        %942 = vmatprep.subr.mxu0 0.0
        %943 = vmatpush1.msra.mxu0 0.0
        %944 = vmatprep.subr.mxu0 0.0
        %945 = vmatpush1.msra.mxu0 0.0
        %946 = vmatprep.subr.mxu0 0.0
        %947 = vmatpush1.msra.mxu0 0.0
        %948 = vmatprep.subr.mxu0 0.0
        %949 = vmatpush1.msra.mxu0 0.0
        %950 = vmatprep.subr.mxu0 0.0
        %951 = vmatpush1.msra.mxu0 0.0
        %952 = vmatprep.subr.mxu0 0.0
        %953 = vmatpush1.msra.mxu0 0.0
        %954 = vmatprep.subr.mxu0 0.0
        %955 = vmatpush1.msra.mxu0 0.0
        %956 = vmatprep.subr.mxu0 0.0
        %957 = vmatpush1.msra.mxu0 0.0
        %958 = vmatprep.subr.mxu0 0.0
        %959 = vmatpush1.msra.mxu0 0.0
        %960 = vmatprep.subr.mxu0 0.0
        %961 = vmatpush1.msra.mxu0 0.0
        %962 = vmatprep.subr.mxu0 0.0
        %963 = vmatpush1.msra.mxu0 0.0
        %964 = vmatprep.subr.mxu0 0.0
        %965 = vmatpush1.msra.mxu0 0.0
        %966 = vmatprep.subr.mxu0 0.0
        %967 = vmatpush1.msra.mxu0 0.0
        %968 = vmatprep.subr.mxu0 0.0
        %969 = vmatpush1.msra.mxu0 0.0
        %970 = vmatprep.subr.mxu0 0.0
        %971 = vmatpush1.msra.mxu0 0.0
        %972 = vmatprep.subr.mxu0 0.0
        %973 = vmatpush1.msra.mxu0 0.0
        %974 = vmatprep.subr.mxu0 0.0
        %975 = vmatpush1.msra.mxu0 0.0
        %976 = vmatprep.subr.mxu0 0.0
        %977 = vmatpush1.msra.mxu0 0.0
        %978 = vmatprep.subr.mxu0 0.0
        %979 = vmatpush1.msra.mxu0 0.0
        %980 = vmatprep.subr.mxu0 0.0
        %981 = vmatpush1.msra.mxu0 0.0
        %982 = vmatprep.subr.mxu0 0.0
        %983 = vmatpush1.msra.mxu0 0.0
        %984 = vmatprep.mubr.f32.mxu0 0.0
        %985 = vmatmul.mubr.f32.gmra.mrb[0].mxu0 %v792
        %v986 = vpop.f32.mrb[0].mxu0
        %v987 = vadd.f32 %v882, %v986
        %v988 = vpop.f32.mrb[0].mxu0
        %989 = vmatprep.mubr.f32.mxu0 0.0
        %990 = vmatmul.mubr.f32.gmra.mrb[0].mxu0 %v795
        %v991 = vpop.f32.mrb[0].mxu0
        %v992 = vadd.f32 %v887, %v991
        %v993 = vpop.f32.mrb[0].mxu0
        %994 = vmatprep.mubr.f32.mxu0 0.0
        %995 = vmatmul.mubr.f32.gmra.mrb[0].mxu0 %v798
        %v996 = vpop.f32.mrb[0].mxu0
        %v997 = vadd.f32 %v892, %v996
        %v998 = vpop.f32.mrb[0].mxu0
        %999 = vmatprep.mubr.f32.mxu0 0.0
        %1000 = vmatmul.mubr.f32.gmra.mrb[0].mxu0 %v801
        %v1001 = vpop.f32.mrb[0].mxu0
        %v1002 = vadd.f32 %v897, %v1001
        %v1003 = vpop.f32.mrb[0].mxu0
        %1004 = vmatprep.mubr.f32.mxu0 0.0
        %1005 = vmatmul.mubr.f32.gmra.mrb[0].mxu0 %v804
        %v1006 = vpop.f32.mrb[0].mxu0
        %v1007 = vadd.f32 %v902, %v1006
        %v1008 = vpop.f32.mrb[0].mxu0
        %1009 = vmatprep.mubr.f32.mxu0 0.0
        %1010 = vmatmul.mubr.f32.gmra.mrb[0].mxu0 %v807
        %v1011 = vpop.f32.mrb[0].mxu0
        %v1012 = vadd.f32 %v907, %v1011
        %v1013 = vpop.f32.mrb[0].mxu0
        %1014 = vmatprep.mubr.f32.mxu0 0.0
        %1015 = vmatmul.mubr.f32.gmra.mrb[0].mxu0 %v810
        %v1016 = vpop.f32.mrb[0].mxu0
        %v1017 = vadd.f32 %v912, %v1016
        %v1018 = vpop.f32.mrb[0].mxu0
        %1019 = vmatprep.mubr.f32.mxu0 0.0
        %1020 = vmatmul.mubr.f32.gmra.mrb[0].mxu0 %v813
        %v1021 = vpop.f32.mrb[0].mxu0
        %v1022 = vadd.f32 %v917, %v1021
        %v1023 = vpop.f32.mrb[0].mxu0
        %1024 = vdwg.mxu0
        %v1025 = vmax.f32 %v758, %v987
        %v1026 = vmax.f32 %v759, %v992
        %v1027 = vmax.f32 %v760, %v997
        %v1028 = vmax.f32 %v761, %v1002
        %v1029 = vmax.f32 %v762, %v1007
        %v1030 = vmax.f32 %v763, %v1012
        %v1031 = vmax.f32 %v764, %v1017
        %v1032 = vmax.f32 %v765, %v1022
        %v1033 = vld [vmem:[%s2] sm:$0x1]
        %v1035 = vlaneseq
        %v1036 = vshrl.u32 %v1035, 7
        %v1037 = vsub.s32 0, %v1036
        %v1038 = vrot.slane %v1033, %v1037
        %v1040 = vadd.f32 %v1025, %v1038
        %v1041 = vadd.f32 %v1026, %v1038
        %v1042 = vadd.f32 %v1027, %v1038
        %v1043 = vadd.f32 %v1028, %v1038
        %v1044 = vadd.f32 %v1029, %v1038
        %v1045 = vadd.f32 %v1030, %v1038
        %v1046 = vadd.f32 %v1031, %v1038
        %v1047 = vadd.f32 %v1032, %v1038
        %v1048 = vmax.f32 %v1040, 0.0
        %v1049 = vmax.f32 %v1041, 0.0
        %v1050 = vmax.f32 %v1042, 0.0
        %v1051 = vmax.f32 %v1043, 0.0
        %v1052 = vmax.f32 %v1044, 0.0
        %v1053 = vmax.f32 %v1045, 0.0
        %v1054 = vmax.f32 %v1046, 0.0
        %v1055 = vmax.f32 %v1047, 0.0
        %vm1056 = vcmask 785408
        %1057 = vst.msk [vmem:[#allocation2] sm:$0xff] %vm1056, %v1048
        %1058 = vst.msk [vmem:[#allocation2 + $0x8] sm:$0xff] %vm1056, %v1049
        %1059 = vst.msk [vmem:[#allocation2 + $0x10] sm:$0xff] %vm1056, %v1050
        %1060 = vst.msk [vmem:[#allocation2 + $0x18] sm:$0xff] %vm1056, %v1051
        %1061 = vst.msk [vmem:[#allocation2 + $0x20] sm:$0xff] %vm1056, %v1052
        %1062 = vst.msk [vmem:[#allocation2 + $0x28] sm:$0xff] %vm1056, %v1053
        %1063 = vst.msk [vmem:[#allocation2 + $0x30] sm:$0xff] %vm1056, %v1054
        %vm1064 = vcmask 778240
        %1065 = vst.msk [vmem:[#allocation2 + $0x38] sm:$0x1] %vm1064, %v1055
        %v1066 = vld [vmem:[#allocation2] ss:$3 sm:$0xff]
        %s1067 = scalar_lea.vmem [#allocation2], 24
        %v1068 = vld [vmem:[%s1067] ss:$3 sm:$0xff]
        %s1069 = scalar_lea.vmem [#allocation2], 48
        %v1070 = vld [vmem:[%s1069] ss:$3 sm:$0x7]
        %s1071 = scalar_lea.vmem [#allocation2], 1
        %v1072 = vld [vmem:[%s1071] ss:$3 sm:$0xff]
        %s1073 = scalar_lea.vmem [#allocation2], 25
        %v1074 = vld [vmem:[%s1073] ss:$3 sm:$0xff]
        %s1075 = scalar_lea.vmem [#allocation2], 49
        %v1076 = vld [vmem:[%s1075] ss:$3 sm:$0x7]
        %v1077 = vmax.f32 %v1066, %v1072
        %v1078 = vmax.f32 %v1068, %v1074
        %v1079 = vmax.f32 %v1070, %v1076
        %s1080 = scalar_lea.vmem [#allocation2], 2
        %v1081 = vld [vmem:[%s1080] ss:$3 sm:$0xff]
        %s1082 = scalar_lea.vmem [#allocation2], 26
        %v1083 = vld [vmem:[%s1082] ss:$3 sm:$0xff]
        %s1084 = scalar_lea.vmem [#allocation2], 50
        %v1085 = vld [vmem:[%s1084] ss:$3 sm:$0x7]
        %v1086 = vmax.f32 %v1077, %v1081
        %v1087 = vmax.f32 %v1078, %v1083
        %v1088 = vmax.f32 %v1079, %v1085
        %vm1089 = vcmask 261120
        %1090 = vst.msk [vmem:[%s186] sm:$0xff] %vm1089, %v1086
        %1091 = vst.msk [vmem:[%s186 + $0x8] sm:$0xff] %vm1089, %v1087
        %vm1092 = vcmask 256000
        %1093 = vst.msk [vmem:[%s186 + $0x10] sm:$0x7] %vm1092, %v1088
        %1097 = vrot.lane.b32.xlu0 %v1086, 96
        %v1098 = vpop.permute.xlu0 %1097
        %1099 = vrot.lane.b32.xlu0 %v1087, 96
        %v1100 = vpop.permute.xlu0 %1099
        %1101 = vrot.lane.b32.xlu0 %v1088, 96
        %v1102 = vpop.permute.xlu0 %1101
        %s1106 = scalar_lea.vmem %s186, 24 [#allocation3]
        %1107 = vst.msk [vmem:[%s1106] sm:$0xff] %vm1089, %v1098
        %1108 = vst.msk [vmem:[%s1106 + $0x8] sm:$0xff] %vm1089, %v1100
        %1109 = vst.msk [vmem:[%s1106 + $0x10] sm:$0x7] %vm1092, %v1102
        %1110 = vrot.lane.b32.xlu0 %v1086, 64
        %v1111 = vpop.permute.xlu0 %1110
        %1112 = vrot.lane.b32.xlu0 %v1087, 64
        %v1113 = vpop.permute.xlu0 %1112
        %1114 = vrot.lane.b32.xlu0 %v1088, 64
        %v1115 = vpop.permute.xlu0 %1114
        %s1119 = scalar_lea.vmem %s186, 48 [#allocation3]
        %1120 = vst.msk [vmem:[%s1119] sm:$0xff] %vm1089, %v1111
        %1121 = vst.msk [vmem:[%s1119 + $0x8] sm:$0xff] %vm1089, %v1113
        %1122 = vst.msk [vmem:[%s1119 + $0x10] sm:$0x7] %vm1092, %v1115
        %s1123 = sand.u32 %s106, 1
        %s1124 = sand.u32 %s106, 1
        %s1125 = smul.addr %s1124, 72
        %s1126 = scalar_lea.vmem [#allocation3], %s1125
        // Predicated region
        $region33: #{leaves_net_forward.4} parent=31 // pred_check
          %p1127 = pneg %p116
        $region34: #{leaves_net_forward.4} parent=31 // pred_check_branch
          %1129 = sbr.rel (%p1127) target = $region36
        $region35: #{leaves_net_forward.4} parent=31 // pred_region
          %s1130 = smul.addr %s19, 3
          %s1131 = smul.addr %s18, 57
          %s1132 = sadd.s32 %s1130, %s1131
          %s1133 = smul.addr %s1132, 8
          %s1134 = scalar_lea.vmem %s3, %s1133
          // Predicated region
          $region37: #{leaves_net_forward.4} parent=35 // pred_check
            _
          $region38: #{leaves_net_forward.4} parent=35 // pred_check_branch
            %1136 = sbr.rel (0) target = $region40
          $region39: #{leaves_net_forward.4} parent=35 // pred_region
            // Predicated region
            $region41: #{leaves_net_forward.4} parent=39 // pred_check
              _
            $region42: #{leaves_net_forward.4} parent=39 // pred_check_branch
              %1138 = sbr.rel (0) target = $region44
            $region43: #{leaves_net_forward.4} parent=39 // pred_region
              // Predicated region
              $region56: #{leaves_net_forward.4} parent=43 // pred_check
                _
              $region57: #{leaves_net_forward.4} parent=43 // pred_check_branch
                %1169 = sbr.rel (0) target = $region59
              $region58: #{leaves_net_forward.4} parent=43 // pred_region
                loop: start=0, step=1, limit=1
                $region60: #{leaves_net_forward.4} parent=58 // loop_pre_header
                  _
                $region61: #{leaves_net_forward.4} parent=58 // loop_header
                  %s1171 = sphi 0, %s1175
                  %p1172 = scmp.ge.s32.totalorder %s1171, 1
                  %s1176 = sphi %s1126, %s1126
                  %s1177 = sphi %s1134, %s1134
                $region62: #{leaves_net_forward.4} parent=58 // loop_header_branch
                  %1174 = sbr.rel (%p1172) target = $region66
                $region63: #{leaves_net_forward.4} parent=58 // loop_body
                  %v1178 = vld [vmem:[%s1176] sm:$0xff]
                  %1179 = vst [vmem:[%s1177] sm:$0xff] %v1178
                  %v1180 = vld [vmem:[%s1176 + $0x8] sm:$0xff]
                  %1181 = vst [vmem:[%s1177 + $0x8] sm:$0xff] %v1180
                  %v1182 = vld [vmem:[%s1176 + $0x10] sm:$0xff]
                  %1183 = vst [vmem:[%s1177 + $0x10] sm:$0xff] %v1182
                  %v1184 = vld [vmem:[%s1176 + $0x18] sm:$0xff]
                  %1185 = vst [vmem:[%s1177 + $0x390] sm:$0xff] %v1184
                  %v1186 = vld [vmem:[%s1176 + $0x20] sm:$0xff]
                  %1187 = vst [vmem:[%s1177 + $0x398] sm:$0xff] %v1186
                  %v1188 = vld [vmem:[%s1176 + $0x28] sm:$0xff]
                  %1189 = vst [vmem:[%s1177 + $0x3a0] sm:$0xff] %v1188
                  %v1190 = vld [vmem:[%s1176 + $0x30] sm:$0xff]
                  %1191 = vst [vmem:[%s1177 + $0x720] sm:$0xff] %v1190
                  %v1192 = vld [vmem:[%s1176 + $0x38] sm:$0xff]
                  %1193 = vst [vmem:[%s1177 + $0x728] sm:$0xff] %v1192
                  %v1194 = vld [vmem:[%s1176 + $0x40] sm:$0xff]
                  %1195 = vst [vmem:[%s1177 + $0x730] sm:$0xff] %v1194
                $region64: #{leaves_net_forward.4} parent=58 // loop_footer
                  %s1175 = sadd.s32 1, %s1171
                $region65: #{leaves_net_forward.4} parent=58 // loop_footer_branch
                  %1170 = sbr.rel target = $region61
                $region66: #{leaves_net_forward.4} parent=58 // loop_exit
                  _
              $region59: #{leaves_net_forward.4} parent=43 // pred_fallthru
                _
              // Predicated region
              $region67: #{leaves_net_forward.4} parent=43 // pred_check
                _
              $region68: #{leaves_net_forward.4} parent=43 // pred_check_branch
                %1197 = sbr.rel target = $region70
              $region69: #{leaves_net_forward.4} parent=43 // pred_region
                _
              $region70: #{leaves_net_forward.4} parent=43 // pred_fallthru
                _
            $region44: #{leaves_net_forward.4} parent=39 // pred_fallthru
              _
            // Predicated region
            $region45: #{leaves_net_forward.4} parent=39 // pred_check
              _
            $region46: #{leaves_net_forward.4} parent=39 // pred_check_branch
              %1140 = sbr.rel target = $region48
            $region47: #{leaves_net_forward.4} parent=39 // pred_region
              loop: start=0, step=1, limit=1
              $region49: #{leaves_net_forward.4} parent=47 // loop_pre_header
                _
              $region50: #{leaves_net_forward.4} parent=47 // loop_header
                %s1143 = sphi 0, %s1147
                %p1144 = scmp.ge.s32.totalorder %s1143, 1
                %s1148 = sphi %s1126, %s1126
                %s1149 = sphi %s1134, %s1134
              $region51: #{leaves_net_forward.4} parent=47 // loop_header_branch
                %1146 = sbr.rel (%p1144) target = $region55
              $region52: #{leaves_net_forward.4} parent=47 // loop_body
                %v1150 = vld [vmem:[%s1148] sm:$0xff]
                %1151 = vst [vmem:[%s1149] sm:$0xff] %v1150
                %v1152 = vld [vmem:[%s1148 + $0x8] sm:$0xff]
                %1153 = vst [vmem:[%s1149 + $0x8] sm:$0xff] %v1152
                %v1154 = vld [vmem:[%s1148 + $0x10] sm:$0xff]
                %1155 = vst [vmem:[%s1149 + $0x10] sm:$0xff] %v1154
                %v1156 = vld [vmem:[%s1148 + $0x18] sm:$0xff]
                %1157 = vst [vmem:[%s1149 + $0x390] sm:$0xff] %v1156
                %v1158 = vld [vmem:[%s1148 + $0x20] sm:$0xff]
                %1159 = vst [vmem:[%s1149 + $0x398] sm:$0xff] %v1158
                %v1160 = vld [vmem:[%s1148 + $0x28] sm:$0xff]
                %1161 = vst [vmem:[%s1149 + $0x3a0] sm:$0xff] %v1160
                %v1162 = vld [vmem:[%s1148 + $0x30] sm:$0xff]
                %1163 = vst [vmem:[%s1149 + $0x720] sm:$0xff] %v1162
                %v1164 = vld [vmem:[%s1148 + $0x38] sm:$0xff]
                %1165 = vst [vmem:[%s1149 + $0x728] sm:$0xff] %v1164
                %v1166 = vld [vmem:[%s1148 + $0x40] sm:$0xff]
                %1167 = vst [vmem:[%s1149 + $0x730] sm:$0xff] %v1166
              $region53: #{leaves_net_forward.4} parent=47 // loop_footer
                %s1147 = sadd.s32 1, %s1143
              $region54: #{leaves_net_forward.4} parent=47 // loop_footer_branch
                %1142 = sbr.rel target = $region50
              $region55: #{leaves_net_forward.4} parent=47 // loop_exit
                _
            $region48: #{leaves_net_forward.4} parent=39 // pred_fallthru
              _
          $region40: #{leaves_net_forward.4} parent=35 // pred_fallthru
            _
          %1198 = vnop
        $region36: #{leaves_net_forward.4} parent=31 // pred_fallthru
          _
      $region32: #{leaves_net_forward.4} parent=5 // pred_fallthru
        _
      %p1199 = scmp.le.s32.totalorder 2, %s9
      // Predicated region
      $region71: #{leaves_net_forward.4} parent=5 // pred_check
        %p1200 = pneg %p1199
      $region72: #{leaves_net_forward.4} parent=5 // pred_check_branch
        %1202 = sbr.rel (%p1200) target = $region74
      $region73: #{leaves_net_forward.4} parent=5 // pred_region
        %s1203 = ssub.s32 %s9, 2
        // Predicated region
        $region75: #{leaves_net_forward.4} parent=73 // pred_check
          %p1204 = pneg %p122
        $region76: #{leaves_net_forward.4} parent=73 // pred_check_branch
          %1206 = sbr.rel (%p1204) target = $region78
        $region77: #{leaves_net_forward.4} parent=73 // pred_region
          %s1207 = sand.u32 %s107, 1
          %s1208 = sand.u32 %s107, 1
          %s1209 = smul.addr %s1208, 72
          %s1210 = scalar_lea.vmem [#allocation3], %s1209
        $region78: #{leaves_net_forward.4} parent=73 // pred_fallthru
          _
      $region74: #{leaves_net_forward.4} parent=5 // pred_fallthru
        _
    $region6: #{leaves_net_forward.4} parent=1 // loop_footer
      %s13 = sadd.s32 1, %s9
    $region7: #{leaves_net_forward.4} parent=1 // loop_footer_branch
      %8 = sbr.rel target = $region3
    $region8: #{leaves_net_forward.4} parent=1 // loop_exit
      _

// kernel: leaves_net_forward.5
$region0: #{leaves_net_forward.5}
  #allocation0 [shape = 'u32[]', space=smem, size = 0x4, offset = 0x4, fixed_abs, tag = 'smem constant byte address 0x4 - core index']
  #allocation1 [shape = 'u32[144,128]{1,0:T(1,128)}', space=vmem, size = 0x12000, scoped, tag = 'internal scratch']
  #allocation2 [shape = 'f32[15,64]{1,0:T(8,128)}', space=vmem, size = 0x2000, scoped, tag = 'scratch operand']
  %s0 = inlined_call_operand.vmem [shape: f32[3,2,15,15,800], index: 0, kind: input, shape index: {}]
  %s1 = inlined_call_operand.vmem [shape: f32[3,800,64], index: 1, kind: input, shape index: {}]
  %s2 = inlined_call_operand.vmem [shape: f32[3,1,64], index: 2, kind: input, shape index: {}]
  %s3 = inlined_call_operand.vmem [shape: f32[3,2,5,5,64], index: 3, kind: output, shape index: {}]
  %s4 = sld [smem:[#allocation0]]
  $region45: #{leaves_net_forward.5} parent=0
    _
  %s6 = ssub.s32 1, %s4
  %s7 = scalar_select 0, %s6, %s4
  loop: start=0, step=1, limit=32
  $region2: #{leaves_net_forward.5} parent=0 // loop_pre_header
    _
  $region3: #{leaves_net_forward.5} parent=0 // loop_header
    %s9 = sphi 0, %s13
    %p10 = scmp.ge.s32.totalorder %s9, 32
    %s16 = sphi 0, %s35
    %s17 = sphi 0, %s31
    %s18 = sphi 0, %s27
    %s19 = sphi 0, %s16
    %s20 = sphi 0, %s17
    %s21 = sphi 0, %s18
    %s22 = sphi 0, %s19
    %s23 = sphi 0, %s20
    %s24 = sphi 0, %s21
    %s42 = sphi 0, %s44
    %s45 = sphi 0, %s42
    %s46 = sphi 0, %s45
    %s62 = sphi 0, %s46
    %s68 = sphi 0, %s70
    %s71 = sphi 0, %s68
    %s72 = sphi 0, %s71
    %s88 = sphi 0, %s72
    %s94 = sphi 0, %s96
    %s97 = sphi 0, %s94
    %s98 = sphi 0, %s97
    %s114 = sphi 0, %s98
    %s124 = sphi 0, %s126
    %s127 = sphi 0, %s124
    %s128 = sphi 0, %s127
    %s144 = sphi 0, %s128
  $region4: #{leaves_net_forward.5} parent=0 // loop_header_branch
    %12 = sbr.rel (%p10) target = $region8
  $region5: #{leaves_net_forward.5} parent=0 // loop_body
    %s14 = ssub.s32 %s9, 1
    %s15 = ssub.s32 %s9, 2
    %s25 = sadd.s32 1, %s18
    %p26 = scmp.ge.s32.totalorder %s25, 5
    %s27 = scalar_select %p26, 0, %s25
    %s28 = sadd.s32 1, %s17
    %s29 = scalar_select %p26, %s28, %s17
    %p30 = scmp.ge.s32.totalorder %s29, 3
    %s31 = scalar_select %p30, 0, %s29
    %s32 = sadd.s32 1, %s16
    %s33 = scalar_select %p30, %s32, %s16
    %p34 = scmp.ge.s32.totalorder %s33, 2
    %s35 = scalar_select %p34, 0, %s33
    %s36 = ssub.s32 %s17, %s31
    %s37 = ssub.s32 %s16, %s35
    %s38 = sor.u32 %s36, %s37
    %s39 = ssub.s32 %s18, %s27
    %s40 = sor.u32 %s38, %s39
    %p41 = scmp.eq.s32.totalorder %s40, 0
    %s43 = sadd.s32 %s42, 1
    %s44 = scalar_select %p41, %s42, %s43
    %p47 = pneg %p41
    %p48 = scmp.eq.s32.totalorder %s9, 29
    %p49 = por %p47, %p48
    %p50 = scmp.ne.s32.totalorder %s42, %s45
    %p51 = scmp.eq.s32.totalorder %s9, 0
    %p52 = por %p50, %p51
    %p53 = scmp.ne.s32.totalorder %s42, %s45
    %p54 = scmp.eq.s32.totalorder %s14, 29
    %p55 = por %p53, %p54
    %p56 = scmp.ne.s32.totalorder %s45, %s46
    %p57 = scmp.eq.s32.totalorder %s14, 0
    %p58 = por %p56, %p57
    %p59 = scmp.ne.s32.totalorder %s45, %s46
    %p60 = scmp.eq.s32.totalorder %s15, 29
    %p61 = por %p59, %p60
    %p63 = scmp.ne.s32.totalorder %s46, %s62
    %p64 = scmp.eq.s32.totalorder %s15, 0
    %p65 = por %p63, %p64
    %s66 = ssub.s32 %s17, %s31
    %p67 = scmp.eq.s32.totalorder %s66, 0
    %s69 = sadd.s32 %s68, 1
    %s70 = scalar_select %p67, %s68, %s69
    %p73 = pneg %p67
    %p74 = scmp.eq.s32.totalorder %s9, 29
    %p75 = por %p73, %p74
    %p76 = scmp.ne.s32.totalorder %s68, %s71
    %p77 = scmp.eq.s32.totalorder %s9, 0
    %p78 = por %p76, %p77
    %p79 = scmp.ne.s32.totalorder %s68, %s71
    %p80 = scmp.eq.s32.totalorder %s14, 29
    %p81 = por %p79, %p80
    %p82 = scmp.ne.s32.totalorder %s71, %s72
    %p83 = scmp.eq.s32.totalorder %s14, 0
    %p84 = por %p82, %p83
    %p85 = scmp.ne.s32.totalorder %s71, %s72
    %p86 = scmp.eq.s32.totalorder %s15, 29
    %p87 = por %p85, %p86
    %p89 = scmp.ne.s32.totalorder %s72, %s88
    %p90 = scmp.eq.s32.totalorder %s15, 0
    %p91 = por %p89, %p90
    %s92 = ssub.s32 %s17, %s31
    %p93 = scmp.eq.s32.totalorder %s92, 0
    %s95 = sadd.s32 %s94, 1
    %s96 = scalar_select %p93, %s94, %s95
    %p99 = pneg %p93
    %p100 = scmp.eq.s32.totalorder %s9, 29
    %p101 = por %p99, %p100
    %p102 = scmp.ne.s32.totalorder %s94, %s97
    %p103 = scmp.eq.s32.totalorder %s9, 0
    %p104 = por %p102, %p103
    %p105 = scmp.ne.s32.totalorder %s94, %s97
    %p106 = scmp.eq.s32.totalorder %s14, 29
    %p107 = por %p105, %p106
    %p108 = scmp.ne.s32.totalorder %s97, %s98
    %p109 = scmp.eq.s32.totalorder %s14, 0
    %p110 = por %p108, %p109
    %p111 = scmp.ne.s32.totalorder %s97, %s98
    %p112 = scmp.eq.s32.totalorder %s15, 29
    %p113 = por %p111, %p112
    %p115 = scmp.ne.s32.totalorder %s98, %s114
    %p116 = scmp.eq.s32.totalorder %s15, 0
    %p117 = por %p115, %p116
    %s118 = ssub.s32 %s17, %s31
    %s119 = ssub.s32 %s16, %s35
    %s120 = sor.u32 %s118, %s119
    %s121 = ssub.s32 %s18, %s27
    %s122 = sor.u32 %s120, %s121
    %p123 = scmp.eq.s32.totalorder %s122, 0
    %s125 = sadd.s32 %s124, 1
    %s126 = scalar_select %p123, %s124, %s125
    %p129 = pneg %p123
    %p130 = scmp.eq.s32.totalorder %s9, 29
    %p131 = por %p129, %p130
    %p132 = scmp.ne.s32.totalorder %s124, %s127
    %p133 = scmp.eq.s32.totalorder %s9, 0
    %p134 = por %p132, %p133
    %p135 = scmp.ne.s32.totalorder %s124, %s127
    %p136 = scmp.eq.s32.totalorder %s14, 29
    %p137 = por %p135, %p136
    %p138 = scmp.ne.s32.totalorder %s127, %s128
    %p139 = scmp.eq.s32.totalorder %s14, 0
    %p140 = por %p138, %p139
    %p141 = scmp.ne.s32.totalorder %s127, %s128
    %p142 = scmp.eq.s32.totalorder %s15, 29
    %p143 = por %p141, %p142
    %p145 = scmp.ne.s32.totalorder %s128, %s144
    %p146 = scmp.eq.s32.totalorder %s15, 0
    %p147 = por %p145, %p146
    %p148 = scmp.le.s32.totalorder 1, %s9
    %p149 = scmp.lt.s32.totalorder %s9, 31
    %p150 = pnand %p148, %p149
    %p151 = pneg %p150
    // Predicated region
    $region9: #{leaves_net_forward.5} parent=5 // pred_check
      _
    $region10: #{leaves_net_forward.5} parent=5 // pred_check_branch
      %153 = sbr.rel (%p150) target = $region12
    $region11: #{leaves_net_forward.5} parent=5 // pred_region
      %s154 = ssub.s32 %s9, 1
    $region12: #{leaves_net_forward.5} parent=5 // pred_fallthru
      _
    %p155 = scmp.lt.s32.totalorder %s9, 30
    // Predicated region
    $region13: #{leaves_net_forward.5} parent=5 // pred_check
      %p156 = pneg %p155
    $region14: #{leaves_net_forward.5} parent=5 // pred_check_branch
      %158 = sbr.rel (%p156) target = $region16
    $region15: #{leaves_net_forward.5} parent=5 // pred_region
      // Predicated region
      $region17: #{leaves_net_forward.5} parent=15 // pred_check
        %p159 = pneg %p52
      $region18: #{leaves_net_forward.5} parent=15 // pred_check_branch
        %161 = sbr.rel (%p159) target = $region20
      $region19: #{leaves_net_forward.5} parent=15 // pred_region
        %s162 = smul.u32 3, %s18
        %p163 = scmp.lt.s32.totalorder %s17, 2
        %s164 = scalar_select %p163, %s17, 2
        %p165 = scmp.lt.s32.totalorder %s16, 1
        %s166 = scalar_select %p165, %s16, 1
        %p167 = scmp.lt.s32.totalorder %s162, 14
        %s168 = scalar_select %p167, %s162, 14
        %s169 = smul.addr %s168, 14
        %s170 = smul.addr %s166, 210
        %s171 = sadd.s32 %s169, %s170
        %s172 = smul.addr %s164, 420
        %s173 = sadd.s32 %s171, %s172
        %s174 = smul.addr %s173, 8
        %s175 = scalar_lea.vmem %s0, %s174
        %s176 = smul.u32 3, %s18
      $region20: #{leaves_net_forward.5} parent=15 // pred_fallthru
        _
      // Predicated region
      $region21: #{leaves_net_forward.5} parent=15 // pred_check
        %p177 = pneg %p78
      $region22: #{leaves_net_forward.5} parent=15 // pred_check_branch
        %179 = sbr.rel (%p177) target = $region24
      $region23: #{leaves_net_forward.5} parent=15 // pred_region
        %p180 = scmp.lt.s32.totalorder %s17, 2
        %s181 = scalar_select %p180, %s17, 2
        %s182 = smul.addr %s181, 100
        %s183 = smul.addr %s182, 8
        %s184 = scalar_lea.vmem %s1, %s183
      $region24: #{leaves_net_forward.5} parent=15 // pred_fallthru
        _
      // Predicated region
      $region25: #{leaves_net_forward.5} parent=15 // pred_check
        %p185 = pneg %p104
      $region26: #{leaves_net_forward.5} parent=15 // pred_check_branch
        %187 = sbr.rel (%p185) target = $region28
      $region27: #{leaves_net_forward.5} parent=15 // pred_region
        %p188 = scmp.lt.s32.totalorder %s17, 2
        %s189 = scalar_select %p188, %s17, 2
        %s190 = scalar_lea.vmem %s2, %s189
      $region28: #{leaves_net_forward.5} parent=15 // pred_fallthru
        _
    $region16: #{leaves_net_forward.5} parent=5 // pred_fallthru
      _
    %p191 = scmp.le.s32.totalorder 1, %s9
    %p192 = scmp.lt.s32.totalorder %s9, 31
    %p193 = pnand %p191, %p192
    %p194 = pneg %p193
    // Predicated region
    $region29: #{leaves_net_forward.5} parent=5 // pred_check
      _
    $region30: #{leaves_net_forward.5} parent=5 // pred_check_branch
      %196 = sbr.rel (%p193) target = $region32
    $region31: #{leaves_net_forward.5} parent=5 // pred_region
      %s197 = ssub.s32 %s9, 1
      %s198 = smul.u32 3, %s21
      %p199 = scmp.lt.s32.totalorder %s20, 2
      %s200 = scalar_select %p199, %s20, 2
      %p201 = scmp.lt.s32.totalorder %s19, 1
      %s202 = scalar_select %p201, %s19, 1
      %p203 = scmp.lt.s32.totalorder %s198, 14
      %s204 = scalar_select %p203, %s198, 14
      %s205 = smul.addr %s204, 14
      %s206 = smul.addr %s202, 210
      %s207 = sadd.s32 %s205, %s206
      %s208 = smul.addr %s200, 420
      %s209 = sadd.s32 %s207, %s208
      %s210 = smul.addr %s209, 8
      %s211 = scalar_lea.vmem %s0, %s210
      %p212 = pneg %p58
      %p213 = pneg %p55
      %p214 = scmp.lt.s32.totalorder %s20, 2
      %s215 = scalar_select %p214, %s20, 2
      %s216 = smul.addr %s215, 100
      %s217 = smul.addr %s216, 8
      %s218 = scalar_lea.vmem %s1, %s217
      %p219 = pneg %p84
      %p220 = pneg %p81
      %p221 = scmp.lt.s32.totalorder %s20, 2
      %s222 = scalar_select %p221, %s20, 2
      %s223 = scalar_lea.vmem %s2, %s222
      %p224 = pneg %p110
      %p225 = pneg %p107
      %p226 = pneg %p140
      %p227 = pneg %p137
      %p228 = scmp.lt.s32.totalorder %s20, 2
      %s229 = scalar_select %p228, %s20, 2
      %p230 = scmp.lt.s32.totalorder %s19, 1
      %s231 = scalar_select %p230, %s19, 1
      %p232 = scmp.lt.s32.totalorder %s21, 4
      %s233 = scalar_select %p232, %s21, 4
      %s234 = smul.addr %s231, 5
      %s235 = sadd.s32 %s233, %s234
      %s236 = smul.addr %s229, 10
      %s237 = sadd.s32 %s235, %s236
      %s238 = smul.addr %s237, 8
      %s239 = scalar_lea.vmem %s3, %s238
      %s240 = smul.u32 3, %s21
      %p241 = scmp.lt.s32.totalorder %s20, 2
      %s242 = scalar_select %p241, %s20, 2
      %p243 = scmp.lt.s32.totalorder %s19, 1
      %s244 = scalar_select %p243, %s19, 1
      %p245 = scmp.lt.s32.totalorder %s240, 14
      %s246 = scalar_select %p245, %s240, 14
      %s247 = smul.addr %s246, 14
      %s248 = smul.addr %s244, 210
      %s249 = sadd.s32 %s247, %s248
      %s250 = smul.addr %s242, 420
      %s251 = sadd.s32 %s249, %s250
      %s252 = smul.addr %s251, 8
      %s253 = scalar_lea.vmem %s0, %s252
      %s254 = smul.u32 3, %s21
      %p255 = scmp.lt.s32.totalorder %s20, 2
      %s256 = scalar_select %p255, %s20, 2
      %s257 = smul.addr %s256, 100
      %s258 = smul.addr %s257, 8
      %s259 = scalar_lea.vmem %s1, %s258
      %p260 = scmp.lt.s32.totalorder %s20, 2
      %s261 = scalar_select %p260, %s20, 2
      %s262 = scalar_lea.vmem %s2, %s261
      %p263 = scmp.lt.s32.totalorder %s20, 2
      %s264 = scalar_select %p263, %s20, 2
      %p265 = scmp.lt.s32.totalorder %s19, 1
      %s266 = scalar_select %p265, %s19, 1
      %p267 = scmp.lt.s32.totalorder %s21, 4
      %s268 = scalar_select %p267, %s21, 4
      %s269 = smul.addr %s266, 5
      %s270 = sadd.s32 %s268, %s269
      %s271 = smul.addr %s264, 10
      %s272 = sadd.s32 %s270, %s271
      %s273 = smul.addr %s272, 8
      %s274 = scalar_lea.vmem %s3, %s273
      %v275 = vld [vmem:[%s259] sm:$0xff]
      %v276 = vld [vmem:[%s259 + $0x8] sm:$0xff]
      %v277 = vld [vmem:[%s259 + $0x10] sm:$0xff]
      %v278 = vld [vmem:[%s259 + $0x18] sm:$0xff]
      %v279 = vld [vmem:[%s259 + $0x20] sm:$0xff]
      %v280 = vld [vmem:[%s259 + $0x28] sm:$0xff]
      %v281 = vld [vmem:[%s259 + $0x30] sm:$0xff]
      %v282 = vld [vmem:[%s259 + $0x38] sm:$0xff]
      %v283 = vld [vmem:[%s259 + $0x40] sm:$0xff]
      %v284 = vld [vmem:[%s259 + $0x48] sm:$0xff]
      %v285 = vld [vmem:[%s259 + $0x50] sm:$0xff]
      %v286 = vld [vmem:[%s259 + $0x58] sm:$0xff]
      %v287 = vld [vmem:[%s259 + $0x60] sm:$0xff]
      %v288 = vld [vmem:[%s259 + $0x68] sm:$0xff]
      %v289 = vld [vmem:[%s259 + $0x70] sm:$0xff]
      %v290 = vld [vmem:[%s259 + $0x78] sm:$0xff]
      %v291 = vld [vmem:[%s259 + $0x80] sm:$0xff]
      %v292 = vld [vmem:[%s259 + $0x88] sm:$0xff]
      %v293 = vld [vmem:[%s259 + $0x90] sm:$0xff]
      %v294 = vld [vmem:[%s259 + $0x98] sm:$0xff]
      %v295 = vld [vmem:[%s259 + $0xa0] sm:$0xff]
      %v296 = vld [vmem:[%s259 + $0xa8] sm:$0xff]
      %v297 = vld [vmem:[%s259 + $0xb0] sm:$0xff]
      %v298 = vld [vmem:[%s259 + $0xb8] sm:$0xff]
      %v299 = vld [vmem:[%s259 + $0xc0] sm:$0xff]
      %v300 = vld [vmem:[%s259 + $0xc8] sm:$0xff]
      %v301 = vld [vmem:[%s259 + $0xd0] sm:$0xff]
      %v302 = vld [vmem:[%s259 + $0xd8] sm:$0xff]
      %v303 = vld [vmem:[%s259 + $0xe0] sm:$0xff]
      %v304 = vld [vmem:[%s259 + $0xe8] sm:$0xff]
      %v305 = vld [vmem:[%s259 + $0xf0] sm:$0xff]
      %v306 = vld [vmem:[%s259 + $0xf8] sm:$0xff]
      %v307 = vld [vmem:[%s259 + $0x100] sm:$0xff]
      %v308 = vld [vmem:[%s259 + $0x108] sm:$0xff]
      %v309 = vld [vmem:[%s259 + $0x110] sm:$0xff]
      %v310 = vld [vmem:[%s259 + $0x118] sm:$0xff]
      %v311 = vld [vmem:[%s259 + $0x120] sm:$0xff]
      %v312 = vld [vmem:[%s259 + $0x128] sm:$0xff]
      %v313 = vld [vmem:[%s259 + $0x130] sm:$0xff]
      %v314 = vld [vmem:[%s259 + $0x138] sm:$0xff]
      %v315 = vld [vmem:[%s259 + $0x140] sm:$0xff]
      %v316 = vld [vmem:[%s259 + $0x148] sm:$0xff]
      %v317 = vld [vmem:[%s259 + $0x150] sm:$0xff]
      %v318 = vld [vmem:[%s259 + $0x158] sm:$0xff]
      %v319 = vld [vmem:[%s259 + $0x160] sm:$0xff]
      %v320 = vld [vmem:[%s259 + $0x168] sm:$0xff]
      %v321 = vld [vmem:[%s259 + $0x170] sm:$0xff]
      %v322 = vld [vmem:[%s259 + $0x178] sm:$0xff]
      %v323 = vld [vmem:[%s259 + $0x180] sm:$0xff]
      %v324 = vld [vmem:[%s259 + $0x188] sm:$0xff]
      %v325 = vld [vmem:[%s259 + $0x190] sm:$0xff]
      %v326 = vld [vmem:[%s259 + $0x198] sm:$0xff]
      %v327 = vld [vmem:[%s259 + $0x1a0] sm:$0xff]
      %v328 = vld [vmem:[%s259 + $0x1a8] sm:$0xff]
      %v329 = vld [vmem:[%s259 + $0x1b0] sm:$0xff]
      %v330 = vld [vmem:[%s259 + $0x1b8] sm:$0xff]
      %v331 = vld [vmem:[%s259 + $0x1c0] sm:$0xff]
      %v332 = vld [vmem:[%s259 + $0x1c8] sm:$0xff]
      %v333 = vld [vmem:[%s259 + $0x1d0] sm:$0xff]
      %v334 = vld [vmem:[%s259 + $0x1d8] sm:$0xff]
      %v335 = vld [vmem:[%s259 + $0x1e0] sm:$0xff]
      %v336 = vld [vmem:[%s259 + $0x1e8] sm:$0xff]
      %v337 = vld [vmem:[%s259 + $0x1f0] sm:$0xff]
      %v338 = vld [vmem:[%s259 + $0x1f8] sm:$0xff]
      %v339 = vld [vmem:[%s259 + $0x200] sm:$0xff]
      %v340 = vld [vmem:[%s259 + $0x208] sm:$0xff]
      %v341 = vld [vmem:[%s259 + $0x210] sm:$0xff]
      %v342 = vld [vmem:[%s259 + $0x218] sm:$0xff]
      %v343 = vld [vmem:[%s259 + $0x220] sm:$0xff]
      %v344 = vld [vmem:[%s259 + $0x228] sm:$0xff]
      %v345 = vld [vmem:[%s259 + $0x230] sm:$0xff]
      %v346 = vld [vmem:[%s259 + $0x238] sm:$0xff]
      %v347 = vld [vmem:[%s259 + $0x240] sm:$0xff]
      %v348 = vld [vmem:[%s259 + $0x248] sm:$0xff]
      %v349 = vld [vmem:[%s259 + $0x250] sm:$0xff]
      %v350 = vld [vmem:[%s259 + $0x258] sm:$0xff]
      %v351 = vld [vmem:[%s259 + $0x260] sm:$0xff]
      %v352 = vld [vmem:[%s259 + $0x268] sm:$0xff]
      %v353 = vld [vmem:[%s259 + $0x270] sm:$0xff]
      %v354 = vld [vmem:[%s259 + $0x278] sm:$0xff]
      %v355 = vld [vmem:[%s259 + $0x280] sm:$0xff]
      %v356 = vld [vmem:[%s259 + $0x288] sm:$0xff]
      %v357 = vld [vmem:[%s259 + $0x290] sm:$0xff]
      %v358 = vld [vmem:[%s259 + $0x298] sm:$0xff]
      %v359 = vld [vmem:[%s259 + $0x2a0] sm:$0xff]
      %v360 = vld [vmem:[%s259 + $0x2a8] sm:$0xff]
      %v361 = vld [vmem:[%s259 + $0x2b0] sm:$0xff]
      %v362 = vld [vmem:[%s259 + $0x2b8] sm:$0xff]
      %v363 = vld [vmem:[%s259 + $0x2c0] sm:$0xff]
      %v364 = vld [vmem:[%s259 + $0x2c8] sm:$0xff]
      %v365 = vld [vmem:[%s259 + $0x2d0] sm:$0xff]
      %v366 = vld [vmem:[%s259 + $0x2d8] sm:$0xff]
      %v367 = vld [vmem:[%s259 + $0x2e0] sm:$0xff]
      %v368 = vld [vmem:[%s259 + $0x2e8] sm:$0xff]
      %v369 = vld [vmem:[%s259 + $0x2f0] sm:$0xff]
      %v370 = vld [vmem:[%s259 + $0x2f8] sm:$0xff]
      %v371 = vld [vmem:[%s259 + $0x300] sm:$0xff]
      %v372 = vld [vmem:[%s259 + $0x308] sm:$0xff]
      %v373 = vld [vmem:[%s259 + $0x310] sm:$0xff]
      %v374 = vld [vmem:[%s259 + $0x318] sm:$0xff]
      %v375 = vld [vmem:[%s253] sm:$0xff]
      %v376 = vld [vmem:[%s253 + $0x8] sm:$0xff]
      %v377 = vld [vmem:[%s253 + $0x10] sm:$0xff]
      %v378 = vld [vmem:[%s253 + $0x18] sm:$0xff]
      %v379 = vld [vmem:[%s253 + $0x20] sm:$0xff]
      %v380 = vld [vmem:[%s253 + $0x28] sm:$0xff]
      %v381 = vld [vmem:[%s253 + $0x30] sm:$0xff]
      %v382 = vld [vmem:[%s253 + $0x38] sm:$0x7f]
      %v383 = vld [vmem:[%s253 + $0x40] sm:$0x7f]
      %v384 = vld [vmem:[%s253 + $0x48] sm:$0x7f]
      %v385 = vld [vmem:[%s253 + $0x50] sm:$0x7f]
      %v386 = vld [vmem:[%s253 + $0x58] sm:$0x7f]
      %v387 = vld [vmem:[%s253 + $0x60] sm:$0x7f]
      %v388 = vld [vmem:[%s253 + $0x68] sm:$0x7f]
      %vm389 = vcmask 261120
      %v391 = vsel %vm389, %v381, 0
      %v394 = vsel %vm389, %v388, 0
      %396 = vmatprep.subr.mxu0 0.0
      %397 = vmatpush1.msra.mxu0 %v275
      %398 = vmatprep.subr.mxu0 0.0
      %399 = vmatpush1.msra.mxu0 %v276
      %400 = vmatprep.subr.mxu0 0.0
      %401 = vmatpush1.msra.mxu0 %v277
      %402 = vmatprep.subr.mxu0 0.0
      %403 = vmatpush1.msra.mxu0 %v278
      %404 = vmatprep.subr.mxu0 0.0
      %405 = vmatpush1.msra.mxu0 %v279
      %406 = vmatprep.subr.mxu0 0.0
      %407 = vmatpush1.msra.mxu0 %v280
      %408 = vmatprep.subr.mxu0 0.0
      %409 = vmatpush1.msra.mxu0 %v281
      %410 = vmatprep.subr.mxu0 0.0
      %411 = vmatpush1.msra.mxu0 %v282
      %412 = vmatprep.subr.mxu0 0.0
      %413 = vmatpush1.msra.mxu0 %v283
      %414 = vmatprep.subr.mxu0 0.0
      %415 = vmatpush1.msra.mxu0 %v284
      %416 = vmatprep.subr.mxu0 0.0
      %417 = vmatpush1.msra.mxu0 %v285
      %418 = vmatprep.subr.mxu0 0.0
      %419 = vmatpush1.msra.mxu0 %v286
      %420 = vmatprep.subr.mxu0 0.0
      %421 = vmatpush1.msra.mxu0 %v287
      %422 = vmatprep.subr.mxu0 0.0
      %423 = vmatpush1.msra.mxu0 %v288
      %424 = vmatprep.subr.mxu0 0.0
      %425 = vmatpush1.msra.mxu0 %v289
      %426 = vmatprep.subr.mxu0 0.0
      %427 = vmatpush1.msra.mxu0 %v290
      %428 = vmatprep.subr.mxu0 0.0
      %429 = vmatpush1.msra.mxu0 %v291
      %430 = vmatprep.subr.mxu0 0.0
      %431 = vmatpush1.msra.mxu0 %v292
      %432 = vmatprep.subr.mxu0 0.0
      %433 = vmatpush1.msra.mxu0 %v293
      %434 = vmatprep.subr.mxu0 0.0
      %435 = vmatpush1.msra.mxu0 %v294
      %436 = vmatprep.subr.mxu0 0.0
      %437 = vmatpush1.msra.mxu0 %v295
      %438 = vmatprep.subr.mxu0 0.0
      %439 = vmatpush1.msra.mxu0 %v296
      %440 = vmatprep.subr.mxu0 0.0
      %441 = vmatpush1.msra.mxu0 %v297
      %442 = vmatprep.subr.mxu0 0.0
      %443 = vmatpush1.msra.mxu0 %v298
      %444 = vmatprep.subr.mxu0 0.0
      %445 = vmatpush1.msra.mxu0 %v299
      %446 = vmatprep.subr.mxu0 0.0
      %447 = vmatpush1.msra.mxu0 %v300
      %448 = vmatprep.subr.mxu0 0.0
      %449 = vmatpush1.msra.mxu0 %v301
      %450 = vmatprep.subr.mxu0 0.0
      %451 = vmatpush1.msra.mxu0 %v302
      %452 = vmatprep.subr.mxu0 0.0
      %453 = vmatpush1.msra.mxu0 %v303
      %454 = vmatprep.subr.mxu0 0.0
      %455 = vmatpush1.msra.mxu0 %v304
      %456 = vmatprep.subr.mxu0 0.0
      %457 = vmatpush1.msra.mxu0 %v305
      %458 = vmatprep.subr.mxu0 0.0
      %459 = vmatpush1.msra.mxu0 %v306
      %460 = vmatprep.mubr.f32.mxu0 %v376
      %461 = vmatmul.mubr.f32.gmra.mrb[0].mxu0 %v375
      %v462 = vpop.f32.mrb[0].mxu0
      %v463 = vadd.f32 0.0, %v462
      %v464 = vpop.f32.mrb[0].mxu0
      %465 = vmatprep.mubr.f32.mxu0 %v383
      %466 = vmatmul.mubr.f32.gmra.mrb[0].mxu0 %v382
      %v467 = vpop.f32.mrb[0].mxu0
      %v468 = vadd.f32 0.0, %v467
      %v469 = vpop.f32.mrb[0].mxu0
      %470 = vdwg.mxu0
      %471 = vmatprep.subr.mxu0 0.0
      %472 = vmatpush1.msra.mxu0 %v307
      %473 = vmatprep.subr.mxu0 0.0
      %474 = vmatpush1.msra.mxu0 %v308
      %475 = vmatprep.subr.mxu0 0.0
      %476 = vmatpush1.msra.mxu0 %v309
      %477 = vmatprep.subr.mxu0 0.0
      %478 = vmatpush1.msra.mxu0 %v310
      %479 = vmatprep.subr.mxu0 0.0
      %480 = vmatpush1.msra.mxu0 %v311
      %481 = vmatprep.subr.mxu0 0.0
      %482 = vmatpush1.msra.mxu0 %v312
      %483 = vmatprep.subr.mxu0 0.0
      %484 = vmatpush1.msra.mxu0 %v313
      %485 = vmatprep.subr.mxu0 0.0
      %486 = vmatpush1.msra.mxu0 %v314
      %487 = vmatprep.subr.mxu0 0.0
      %488 = vmatpush1.msra.mxu0 %v315
      %489 = vmatprep.subr.mxu0 0.0
      %490 = vmatpush1.msra.mxu0 %v316
      %491 = vmatprep.subr.mxu0 0.0
      %492 = vmatpush1.msra.mxu0 %v317
      %493 = vmatprep.subr.mxu0 0.0
      %494 = vmatpush1.msra.mxu0 %v318
      %495 = vmatprep.subr.mxu0 0.0
      %496 = vmatpush1.msra.mxu0 %v319
      %497 = vmatprep.subr.mxu0 0.0
      %498 = vmatpush1.msra.mxu0 %v320
      %499 = vmatprep.subr.mxu0 0.0
      %500 = vmatpush1.msra.mxu0 %v321
      %501 = vmatprep.subr.mxu0 0.0
      %502 = vmatpush1.msra.mxu0 %v322
      %503 = vmatprep.subr.mxu0 0.0
      %504 = vmatpush1.msra.mxu0 %v323
      %505 = vmatprep.subr.mxu0 0.0
      %506 = vmatpush1.msra.mxu0 %v324
      %507 = vmatprep.subr.mxu0 0.0
      %508 = vmatpush1.msra.mxu0 %v325
      %509 = vmatprep.subr.mxu0 0.0
      %510 = vmatpush1.msra.mxu0 %v326
      %511 = vmatprep.subr.mxu0 0.0
      %512 = vmatpush1.msra.mxu0 %v327
      %513 = vmatprep.subr.mxu0 0.0
      %514 = vmatpush1.msra.mxu0 %v328
      %515 = vmatprep.subr.mxu0 0.0
      %516 = vmatpush1.msra.mxu0 %v329
      %517 = vmatprep.subr.mxu0 0.0
      %518 = vmatpush1.msra.mxu0 %v330
      %519 = vmatprep.subr.mxu0 0.0
      %520 = vmatpush1.msra.mxu0 %v331
      %521 = vmatprep.subr.mxu0 0.0
      %522 = vmatpush1.msra.mxu0 %v332
      %523 = vmatprep.subr.mxu0 0.0
      %524 = vmatpush1.msra.mxu0 %v333
      %525 = vmatprep.subr.mxu0 0.0
      %526 = vmatpush1.msra.mxu0 %v334
      %527 = vmatprep.subr.mxu0 0.0
      %528 = vmatpush1.msra.mxu0 %v335
      %529 = vmatprep.subr.mxu0 0.0
      %530 = vmatpush1.msra.mxu0 %v336
      %531 = vmatprep.subr.mxu0 0.0
      %532 = vmatpush1.msra.mxu0 %v337
      %533 = vmatprep.subr.mxu0 0.0
      %534 = vmatpush1.msra.mxu0 %v338
      %535 = vmatprep.mubr.f32.mxu0 %v378
      %536 = vmatmul.mubr.f32.gmra.mrb[0].mxu0 %v377
      %v537 = vpop.f32.mrb[0].mxu0
      %v538 = vadd.f32 %v463, %v537
      %v539 = vpop.f32.mrb[0].mxu0
      %540 = vmatprep.mubr.f32.mxu0 %v385
      %541 = vmatmul.mubr.f32.gmra.mrb[0].mxu0 %v384
      %v542 = vpop.f32.mrb[0].mxu0
      %v543 = vadd.f32 %v468, %v542
      %v544 = vpop.f32.mrb[0].mxu0
      %545 = vdwg.mxu0
      %546 = vmatprep.subr.mxu0 0.0
      %547 = vmatpush1.msra.mxu0 %v339
      %548 = vmatprep.subr.mxu0 0.0
      %549 = vmatpush1.msra.mxu0 %v340
      %550 = vmatprep.subr.mxu0 0.0
      %551 = vmatpush1.msra.mxu0 %v341
      %552 = vmatprep.subr.mxu0 0.0
      %553 = vmatpush1.msra.mxu0 %v342
      %554 = vmatprep.subr.mxu0 0.0
      %555 = vmatpush1.msra.mxu0 %v343
      %556 = vmatprep.subr.mxu0 0.0
      %557 = vmatpush1.msra.mxu0 %v344
      %558 = vmatprep.subr.mxu0 0.0
      %559 = vmatpush1.msra.mxu0 %v345
      %560 = vmatprep.subr.mxu0 0.0
      %561 = vmatpush1.msra.mxu0 %v346
      %562 = vmatprep.subr.mxu0 0.0
      %563 = vmatpush1.msra.mxu0 %v347
      %564 = vmatprep.subr.mxu0 0.0
      %565 = vmatpush1.msra.mxu0 %v348
      %566 = vmatprep.subr.mxu0 0.0
      %567 = vmatpush1.msra.mxu0 %v349
      %568 = vmatprep.subr.mxu0 0.0
      %569 = vmatpush1.msra.mxu0 %v350
      %570 = vmatprep.subr.mxu0 0.0
      %571 = vmatpush1.msra.mxu0 %v351
      %572 = vmatprep.subr.mxu0 0.0
      %573 = vmatpush1.msra.mxu0 %v352
      %574 = vmatprep.subr.mxu0 0.0
      %575 = vmatpush1.msra.mxu0 %v353
      %576 = vmatprep.subr.mxu0 0.0
      %577 = vmatpush1.msra.mxu0 %v354
      %578 = vmatprep.subr.mxu0 0.0
      %579 = vmatpush1.msra.mxu0 %v355
      %580 = vmatprep.subr.mxu0 0.0
      %581 = vmatpush1.msra.mxu0 %v356
      %582 = vmatprep.subr.mxu0 0.0
      %583 = vmatpush1.msra.mxu0 %v357
      %584 = vmatprep.subr.mxu0 0.0
      %585 = vmatpush1.msra.mxu0 %v358
      %586 = vmatprep.subr.mxu0 0.0
      %587 = vmatpush1.msra.mxu0 %v359
      %588 = vmatprep.subr.mxu0 0.0
      %589 = vmatpush1.msra.mxu0 %v360
      %590 = vmatprep.subr.mxu0 0.0
      %591 = vmatpush1.msra.mxu0 %v361
      %592 = vmatprep.subr.mxu0 0.0
      %593 = vmatpush1.msra.mxu0 %v362
      %594 = vmatprep.subr.mxu0 0.0
      %595 = vmatpush1.msra.mxu0 %v363
      %596 = vmatprep.subr.mxu0 0.0
      %597 = vmatpush1.msra.mxu0 %v364
      %598 = vmatprep.subr.mxu0 0.0
      %599 = vmatpush1.msra.mxu0 %v365
      %600 = vmatprep.subr.mxu0 0.0
      %601 = vmatpush1.msra.mxu0 %v366
      %602 = vmatprep.subr.mxu0 0.0
      %603 = vmatpush1.msra.mxu0 %v367
      %604 = vmatprep.subr.mxu0 0.0
      %605 = vmatpush1.msra.mxu0 %v368
      %606 = vmatprep.subr.mxu0 0.0
      %607 = vmatpush1.msra.mxu0 %v369
      %608 = vmatprep.subr.mxu0 0.0
      %609 = vmatpush1.msra.mxu0 %v370
      %610 = vmatprep.mubr.f32.mxu0 %v380
      %611 = vmatmul.mubr.f32.gmra.mrb[0].mxu0 %v379
      %v612 = vpop.f32.mrb[0].mxu0
      %v613 = vadd.f32 %v538, %v612
      %v614 = vpop.f32.mrb[0].mxu0
      %615 = vmatprep.mubr.f32.mxu0 %v387
      %616 = vmatmul.mubr.f32.gmra.mrb[0].mxu0 %v386
      %v617 = vpop.f32.mrb[0].mxu0
      %v618 = vadd.f32 %v543, %v617
      %v619 = vpop.f32.mrb[0].mxu0
      %620 = vdwg.mxu0
      %621 = vmatprep.subr.mxu0 0.0
      %622 = vmatpush1.msra.mxu0 %v371
      %623 = vmatprep.subr.mxu0 0.0
      %624 = vmatpush1.msra.mxu0 %v372
      %625 = vmatprep.subr.mxu0 0.0
      %626 = vmatpush1.msra.mxu0 %v373
      %627 = vmatprep.subr.mxu0 0.0
      %628 = vmatpush1.msra.mxu0 %v374
      %629 = vmatprep.subr.mxu0 0.0
      %630 = vmatpush1.msra.mxu0 0.0
      %631 = vmatprep.subr.mxu0 0.0
      %632 = vmatpush1.msra.mxu0 0.0
      %633 = vmatprep.subr.mxu0 0.0
      %634 = vmatpush1.msra.mxu0 0.0
      %635 = vmatprep.subr.mxu0 0.0
      %636 = vmatpush1.msra.mxu0 0.0
      %637 = vmatprep.subr.mxu0 0.0
      %638 = vmatpush1.msra.mxu0 0.0
      %639 = vmatprep.subr.mxu0 0.0
      %640 = vmatpush1.msra.mxu0 0.0
      %641 = vmatprep.subr.mxu0 0.0
      %642 = vmatpush1.msra.mxu0 0.0
      %643 = vmatprep.subr.mxu0 0.0
      %644 = vmatpush1.msra.mxu0 0.0
      %645 = vmatprep.subr.mxu0 0.0
      %646 = vmatpush1.msra.mxu0 0.0
      %647 = vmatprep.subr.mxu0 0.0
      %648 = vmatpush1.msra.mxu0 0.0
      %649 = vmatprep.subr.mxu0 0.0
      %650 = vmatpush1.msra.mxu0 0.0
      %651 = vmatprep.subr.mxu0 0.0
      %652 = vmatpush1.msra.mxu0 0.0
      %653 = vmatprep.subr.mxu0 0.0
      %654 = vmatpush1.msra.mxu0 0.0
      %655 = vmatprep.subr.mxu0 0.0
      %656 = vmatpush1.msra.mxu0 0.0
      %657 = vmatprep.subr.mxu0 0.0
      %658 = vmatpush1.msra.mxu0 0.0
      %659 = vmatprep.subr.mxu0 0.0
      %660 = vmatpush1.msra.mxu0 0.0
      %661 = vmatprep.subr.mxu0 0.0
      %662 = vmatpush1.msra.mxu0 0.0
      %663 = vmatprep.subr.mxu0 0.0
      %664 = vmatpush1.msra.mxu0 0.0
      %665 = vmatprep.subr.mxu0 0.0
      %666 = vmatpush1.msra.mxu0 0.0
      %667 = vmatprep.subr.mxu0 0.0
      %668 = vmatpush1.msra.mxu0 0.0
      %669 = vmatprep.subr.mxu0 0.0
      %670 = vmatpush1.msra.mxu0 0.0
      %671 = vmatprep.subr.mxu0 0.0
      %672 = vmatpush1.msra.mxu0 0.0
      %673 = vmatprep.subr.mxu0 0.0
      %674 = vmatpush1.msra.mxu0 0.0
      %675 = vmatprep.subr.mxu0 0.0
      %676 = vmatpush1.msra.mxu0 0.0
      %677 = vmatprep.subr.mxu0 0.0
      %678 = vmatpush1.msra.mxu0 0.0
      %679 = vmatprep.subr.mxu0 0.0
      %680 = vmatpush1.msra.mxu0 0.0
      %681 = vmatprep.subr.mxu0 0.0
      %682 = vmatpush1.msra.mxu0 0.0
      %683 = vmatprep.subr.mxu0 0.0
      %684 = vmatpush1.msra.mxu0 0.0
      %685 = vmatprep.mubr.f32.mxu0 0.0
      %686 = vmatmul.mubr.f32.gmra.mrb[0].mxu0 %v391
      %v687 = vpop.f32.mrb[0].mxu0
      %v688 = vadd.f32 %v613, %v687
      %v689 = vpop.f32.mrb[0].mxu0
      %690 = vmatprep.mubr.f32.mxu0 0.0
      %691 = vmatmul.mubr.f32.gmra.mrb[0].mxu0 %v394
      %v692 = vpop.f32.mrb[0].mxu0
      %v693 = vadd.f32 %v618, %v692
      %v694 = vpop.f32.mrb[0].mxu0
      %695 = vdwg.mxu0
      %s696 = scalar_lea.vmem %s253, 112
      %v697 = vld [vmem:[%s696] sm:$0xff]
      %v698 = vld [vmem:[%s696 + $0x8] sm:$0xff]
      %v699 = vld [vmem:[%s696 + $0x10] sm:$0xff]
      %v700 = vld [vmem:[%s696 + $0x18] sm:$0xff]
      %v701 = vld [vmem:[%s696 + $0x20] sm:$0xff]
      %v702 = vld [vmem:[%s696 + $0x28] sm:$0xff]
      %v703 = vld [vmem:[%s696 + $0x30] sm:$0xff]
      %v704 = vld [vmem:[%s696 + $0x38] sm:$0x7f]
      %v705 = vld [vmem:[%s696 + $0x40] sm:$0x7f]
      %v706 = vld [vmem:[%s696 + $0x48] sm:$0x7f]
      %v707 = vld [vmem:[%s696 + $0x50] sm:$0x7f]
      %v708 = vld [vmem:[%s696 + $0x58] sm:$0x7f]
      %v709 = vld [vmem:[%s696 + $0x60] sm:$0x7f]
      %v710 = vld [vmem:[%s696 + $0x68] sm:$0x7f]
      %v712 = vsel %vm389, %v703, 0
      %v715 = vsel %vm389, %v710, 0
      %717 = vmatprep.subr.mxu0 0.0
      %718 = vmatpush1.msra.mxu0 %v275
      %719 = vmatprep.subr.mxu0 0.0
      %720 = vmatpush1.msra.mxu0 %v276
      %721 = vmatprep.subr.mxu0 0.0
      %722 = vmatpush1.msra.mxu0 %v277
      %723 = vmatprep.subr.mxu0 0.0
      %724 = vmatpush1.msra.mxu0 %v278
      %725 = vmatprep.subr.mxu0 0.0
      %726 = vmatpush1.msra.mxu0 %v279
      %727 = vmatprep.subr.mxu0 0.0
      %728 = vmatpush1.msra.mxu0 %v280
      %729 = vmatprep.subr.mxu0 0.0
      %730 = vmatpush1.msra.mxu0 %v281
      %731 = vmatprep.subr.mxu0 0.0
      %732 = vmatpush1.msra.mxu0 %v282
      %733 = vmatprep.subr.mxu0 0.0
      %734 = vmatpush1.msra.mxu0 %v283
      %735 = vmatprep.subr.mxu0 0.0
      %736 = vmatpush1.msra.mxu0 %v284
      %737 = vmatprep.subr.mxu0 0.0
      %738 = vmatpush1.msra.mxu0 %v285
      %739 = vmatprep.subr.mxu0 0.0
      %740 = vmatpush1.msra.mxu0 %v286
      %741 = vmatprep.subr.mxu0 0.0
      %742 = vmatpush1.msra.mxu0 %v287
      %743 = vmatprep.subr.mxu0 0.0
      %744 = vmatpush1.msra.mxu0 %v288
      %745 = vmatprep.subr.mxu0 0.0
      %746 = vmatpush1.msra.mxu0 %v289
      %747 = vmatprep.subr.mxu0 0.0
      %748 = vmatpush1.msra.mxu0 %v290
      %749 = vmatprep.subr.mxu0 0.0
      %750 = vmatpush1.msra.mxu0 %v291
      %751 = vmatprep.subr.mxu0 0.0
      %752 = vmatpush1.msra.mxu0 %v292
      %753 = vmatprep.subr.mxu0 0.0
      %754 = vmatpush1.msra.mxu0 %v293
      %755 = vmatprep.subr.mxu0 0.0
      %756 = vmatpush1.msra.mxu0 %v294
      %757 = vmatprep.subr.mxu0 0.0
      %758 = vmatpush1.msra.mxu0 %v295
      %759 = vmatprep.subr.mxu0 0.0
      %760 = vmatpush1.msra.mxu0 %v296
      %761 = vmatprep.subr.mxu0 0.0
      %762 = vmatpush1.msra.mxu0 %v297
      %763 = vmatprep.subr.mxu0 0.0
      %764 = vmatpush1.msra.mxu0 %v298
      %765 = vmatprep.subr.mxu0 0.0
      %766 = vmatpush1.msra.mxu0 %v299
      %767 = vmatprep.subr.mxu0 0.0
      %768 = vmatpush1.msra.mxu0 %v300
      %769 = vmatprep.subr.mxu0 0.0
      %770 = vmatpush1.msra.mxu0 %v301
      %771 = vmatprep.subr.mxu0 0.0
      %772 = vmatpush1.msra.mxu0 %v302
      %773 = vmatprep.subr.mxu0 0.0
      %774 = vmatpush1.msra.mxu0 %v303
      %775 = vmatprep.subr.mxu0 0.0
      %776 = vmatpush1.msra.mxu0 %v304
      %777 = vmatprep.subr.mxu0 0.0
      %778 = vmatpush1.msra.mxu0 %v305
      %779 = vmatprep.subr.mxu0 0.0
      %780 = vmatpush1.msra.mxu0 %v306
      %781 = vmatprep.mubr.f32.mxu0 %v698
      %782 = vmatmul.mubr.f32.gmra.mrb[0].mxu0 %v697
      %v783 = vpop.f32.mrb[0].mxu0
      %v784 = vadd.f32 0.0, %v783
      %v785 = vpop.f32.mrb[0].mxu0
      %786 = vmatprep.mubr.f32.mxu0 %v705
      %787 = vmatmul.mubr.f32.gmra.mrb[0].mxu0 %v704
      %v788 = vpop.f32.mrb[0].mxu0
      %v789 = vadd.f32 0.0, %v788
      %v790 = vpop.f32.mrb[0].mxu0
      %791 = vdwg.mxu0
      %792 = vmatprep.subr.mxu0 0.0
      %793 = vmatpush1.msra.mxu0 %v307
      %794 = vmatprep.subr.mxu0 0.0
      %795 = vmatpush1.msra.mxu0 %v308
      %796 = vmatprep.subr.mxu0 0.0
      %797 = vmatpush1.msra.mxu0 %v309
      %798 = vmatprep.subr.mxu0 0.0
      %799 = vmatpush1.msra.mxu0 %v310
      %800 = vmatprep.subr.mxu0 0.0
      %801 = vmatpush1.msra.mxu0 %v311
      %802 = vmatprep.subr.mxu0 0.0
      %803 = vmatpush1.msra.mxu0 %v312
      %804 = vmatprep.subr.mxu0 0.0
      %805 = vmatpush1.msra.mxu0 %v313
      %806 = vmatprep.subr.mxu0 0.0
      %807 = vmatpush1.msra.mxu0 %v314
      %808 = vmatprep.subr.mxu0 0.0
      %809 = vmatpush1.msra.mxu0 %v315
      %810 = vmatprep.subr.mxu0 0.0
      %811 = vmatpush1.msra.mxu0 %v316
      %812 = vmatprep.subr.mxu0 0.0
      %813 = vmatpush1.msra.mxu0 %v317
      %814 = vmatprep.subr.mxu0 0.0
      %815 = vmatpush1.msra.mxu0 %v318
      %816 = vmatprep.subr.mxu0 0.0
      %817 = vmatpush1.msra.mxu0 %v319
      %818 = vmatprep.subr.mxu0 0.0
      %819 = vmatpush1.msra.mxu0 %v320
      %820 = vmatprep.subr.mxu0 0.0
      %821 = vmatpush1.msra.mxu0 %v321
      %822 = vmatprep.subr.mxu0 0.0
      %823 = vmatpush1.msra.mxu0 %v322
      %824 = vmatprep.subr.mxu0 0.0
      %825 = vmatpush1.msra.mxu0 %v323
      %826 = vmatprep.subr.mxu0 0.0
      %827 = vmatpush1.msra.mxu0 %v324
      %828 = vmatprep.subr.mxu0 0.0
      %829 = vmatpush1.msra.mxu0 %v325
      %830 = vmatprep.subr.mxu0 0.0
      %831 = vmatpush1.msra.mxu0 %v326
      %832 = vmatprep.subr.mxu0 0.0
      %833 = vmatpush1.msra.mxu0 %v327
      %834 = vmatprep.subr.mxu0 0.0
      %835 = vmatpush1.msra.mxu0 %v328
      %836 = vmatprep.subr.mxu0 0.0
      %837 = vmatpush1.msra.mxu0 %v329
      %838 = vmatprep.subr.mxu0 0.0
      %839 = vmatpush1.msra.mxu0 %v330
      %840 = vmatprep.subr.mxu0 0.0
      %841 = vmatpush1.msra.mxu0 %v331
      %842 = vmatprep.subr.mxu0 0.0
      %843 = vmatpush1.msra.mxu0 %v332
      %844 = vmatprep.subr.mxu0 0.0
      %845 = vmatpush1.msra.mxu0 %v333
      %846 = vmatprep.subr.mxu0 0.0
      %847 = vmatpush1.msra.mxu0 %v334
      %848 = vmatprep.subr.mxu0 0.0
      %849 = vmatpush1.msra.mxu0 %v335
      %850 = vmatprep.subr.mxu0 0.0
      %851 = vmatpush1.msra.mxu0 %v336
      %852 = vmatprep.subr.mxu0 0.0
      %853 = vmatpush1.msra.mxu0 %v337
      %854 = vmatprep.subr.mxu0 0.0
      %855 = vmatpush1.msra.mxu0 %v338
      %856 = vmatprep.mubr.f32.mxu0 %v700
      %857 = vmatmul.mubr.f32.gmra.mrb[0].mxu0 %v699
      %v858 = vpop.f32.mrb[0].mxu0
      %v859 = vadd.f32 %v784, %v858
      %v860 = vpop.f32.mrb[0].mxu0
      %861 = vmatprep.mubr.f32.mxu0 %v707
      %862 = vmatmul.mubr.f32.gmra.mrb[0].mxu0 %v706
      %v863 = vpop.f32.mrb[0].mxu0
      %v864 = vadd.f32 %v789, %v863
      %v865 = vpop.f32.mrb[0].mxu0
      %866 = vdwg.mxu0
      %867 = vmatprep.subr.mxu0 0.0
      %868 = vmatpush1.msra.mxu0 %v339
      %869 = vmatprep.subr.mxu0 0.0
      %870 = vmatpush1.msra.mxu0 %v340
      %871 = vmatprep.subr.mxu0 0.0
      %872 = vmatpush1.msra.mxu0 %v341
      %873 = vmatprep.subr.mxu0 0.0
      %874 = vmatpush1.msra.mxu0 %v342
      %875 = vmatprep.subr.mxu0 0.0
      %876 = vmatpush1.msra.mxu0 %v343
      %877 = vmatprep.subr.mxu0 0.0
      %878 = vmatpush1.msra.mxu0 %v344
      %879 = vmatprep.subr.mxu0 0.0
      %880 = vmatpush1.msra.mxu0 %v345
      %881 = vmatprep.subr.mxu0 0.0
      %882 = vmatpush1.msra.mxu0 %v346
      %883 = vmatprep.subr.mxu0 0.0
      %884 = vmatpush1.msra.mxu0 %v347
      %885 = vmatprep.subr.mxu0 0.0
      %886 = vmatpush1.msra.mxu0 %v348
      %887 = vmatprep.subr.mxu0 0.0
      %888 = vmatpush1.msra.mxu0 %v349
      %889 = vmatprep.subr.mxu0 0.0
      %890 = vmatpush1.msra.mxu0 %v350
      %891 = vmatprep.subr.mxu0 0.0
      %892 = vmatpush1.msra.mxu0 %v351
      %893 = vmatprep.subr.mxu0 0.0
      %894 = vmatpush1.msra.mxu0 %v352
      %895 = vmatprep.subr.mxu0 0.0
      %896 = vmatpush1.msra.mxu0 %v353
      %897 = vmatprep.subr.mxu0 0.0
      %898 = vmatpush1.msra.mxu0 %v354
      %899 = vmatprep.subr.mxu0 0.0
      %900 = vmatpush1.msra.mxu0 %v355
      %901 = vmatprep.subr.mxu0 0.0
      %902 = vmatpush1.msra.mxu0 %v356
      %903 = vmatprep.subr.mxu0 0.0
      %904 = vmatpush1.msra.mxu0 %v357
      %905 = vmatprep.subr.mxu0 0.0
      %906 = vmatpush1.msra.mxu0 %v358
      %907 = vmatprep.subr.mxu0 0.0
      %908 = vmatpush1.msra.mxu0 %v359
      %909 = vmatprep.subr.mxu0 0.0
      %910 = vmatpush1.msra.mxu0 %v360
      %911 = vmatprep.subr.mxu0 0.0
      %912 = vmatpush1.msra.mxu0 %v361
      %913 = vmatprep.subr.mxu0 0.0
      %914 = vmatpush1.msra.mxu0 %v362
      %915 = vmatprep.subr.mxu0 0.0
      %916 = vmatpush1.msra.mxu0 %v363
      %917 = vmatprep.subr.mxu0 0.0
      %918 = vmatpush1.msra.mxu0 %v364
      %919 = vmatprep.subr.mxu0 0.0
      %920 = vmatpush1.msra.mxu0 %v365
      %921 = vmatprep.subr.mxu0 0.0
      %922 = vmatpush1.msra.mxu0 %v366
      %923 = vmatprep.subr.mxu0 0.0
      %924 = vmatpush1.msra.mxu0 %v367
      %925 = vmatprep.subr.mxu0 0.0
      %926 = vmatpush1.msra.mxu0 %v368
      %927 = vmatprep.subr.mxu0 0.0
      %928 = vmatpush1.msra.mxu0 %v369
      %929 = vmatprep.subr.mxu0 0.0
      %930 = vmatpush1.msra.mxu0 %v370
      %931 = vmatprep.mubr.f32.mxu0 %v702
      %932 = vmatmul.mubr.f32.gmra.mrb[0].mxu0 %v701
      %v933 = vpop.f32.mrb[0].mxu0
      %v934 = vadd.f32 %v859, %v933
      %v935 = vpop.f32.mrb[0].mxu0
      %936 = vmatprep.mubr.f32.mxu0 %v709
      %937 = vmatmul.mubr.f32.gmra.mrb[0].mxu0 %v708
      %v938 = vpop.f32.mrb[0].mxu0
      %v939 = vadd.f32 %v864, %v938
      %v940 = vpop.f32.mrb[0].mxu0
      %941 = vdwg.mxu0
      %942 = vmatprep.subr.mxu0 0.0
      %943 = vmatpush1.msra.mxu0 %v371
      %944 = vmatprep.subr.mxu0 0.0
      %945 = vmatpush1.msra.mxu0 %v372
      %946 = vmatprep.subr.mxu0 0.0
      %947 = vmatpush1.msra.mxu0 %v373
      %948 = vmatprep.subr.mxu0 0.0
      %949 = vmatpush1.msra.mxu0 %v374
      %950 = vmatprep.subr.mxu0 0.0
      %951 = vmatpush1.msra.mxu0 0.0
      %952 = vmatprep.subr.mxu0 0.0
      %953 = vmatpush1.msra.mxu0 0.0
      %954 = vmatprep.subr.mxu0 0.0
      %955 = vmatpush1.msra.mxu0 0.0
      %956 = vmatprep.subr.mxu0 0.0
      %957 = vmatpush1.msra.mxu0 0.0
      %958 = vmatprep.subr.mxu0 0.0
      %959 = vmatpush1.msra.mxu0 0.0
      %960 = vmatprep.subr.mxu0 0.0
      %961 = vmatpush1.msra.mxu0 0.0
      %962 = vmatprep.subr.mxu0 0.0
      %963 = vmatpush1.msra.mxu0 0.0
      %964 = vmatprep.subr.mxu0 0.0
      %965 = vmatpush1.msra.mxu0 0.0
      %966 = vmatprep.subr.mxu0 0.0
      %967 = vmatpush1.msra.mxu0 0.0
      %968 = vmatprep.subr.mxu0 0.0
      %969 = vmatpush1.msra.mxu0 0.0
      %970 = vmatprep.subr.mxu0 0.0
      %971 = vmatpush1.msra.mxu0 0.0
      %972 = vmatprep.subr.mxu0 0.0
      %973 = vmatpush1.msra.mxu0 0.0
      %974 = vmatprep.subr.mxu0 0.0
      %975 = vmatpush1.msra.mxu0 0.0
      %976 = vmatprep.subr.mxu0 0.0
      %977 = vmatpush1.msra.mxu0 0.0
      %978 = vmatprep.subr.mxu0 0.0
      %979 = vmatpush1.msra.mxu0 0.0
      %980 = vmatprep.subr.mxu0 0.0
      %981 = vmatpush1.msra.mxu0 0.0
      %982 = vmatprep.subr.mxu0 0.0
      %983 = vmatpush1.msra.mxu0 0.0
      %984 = vmatprep.subr.mxu0 0.0
      %985 = vmatpush1.msra.mxu0 0.0
      %986 = vmatprep.subr.mxu0 0.0
      %987 = vmatpush1.msra.mxu0 0.0
      %988 = vmatprep.subr.mxu0 0.0
      %989 = vmatpush1.msra.mxu0 0.0
      %990 = vmatprep.subr.mxu0 0.0
      %991 = vmatpush1.msra.mxu0 0.0
      %992 = vmatprep.subr.mxu0 0.0
      %993 = vmatpush1.msra.mxu0 0.0
      %994 = vmatprep.subr.mxu0 0.0
      %995 = vmatpush1.msra.mxu0 0.0
      %996 = vmatprep.subr.mxu0 0.0
      %997 = vmatpush1.msra.mxu0 0.0
      %998 = vmatprep.subr.mxu0 0.0
      %999 = vmatpush1.msra.mxu0 0.0
      %1000 = vmatprep.subr.mxu0 0.0
      %1001 = vmatpush1.msra.mxu0 0.0
      %1002 = vmatprep.subr.mxu0 0.0
      %1003 = vmatpush1.msra.mxu0 0.0
      %1004 = vmatprep.subr.mxu0 0.0
      %1005 = vmatpush1.msra.mxu0 0.0
      %1006 = vmatprep.mubr.f32.mxu0 0.0
      %1007 = vmatmul.mubr.f32.gmra.mrb[0].mxu0 %v712
      %v1008 = vpop.f32.mrb[0].mxu0
      %v1009 = vadd.f32 %v934, %v1008
      %v1010 = vpop.f32.mrb[0].mxu0
      %1011 = vmatprep.mubr.f32.mxu0 0.0
      %1012 = vmatmul.mubr.f32.gmra.mrb[0].mxu0 %v715
      %v1013 = vpop.f32.mrb[0].mxu0
      %v1014 = vadd.f32 %v939, %v1013
      %v1015 = vpop.f32.mrb[0].mxu0
      %1016 = vdwg.mxu0
      %v1017 = vmax.f32 %v688, %v1009
      %v1018 = vmax.f32 %v693, %v1014
      %s1019 = scalar_lea.vmem %s253, 224
      %v1020 = vld [vmem:[%s1019] sm:$0xff]
      %v1021 = vld [vmem:[%s1019 + $0x8] sm:$0xff]
      %v1022 = vld [vmem:[%s1019 + $0x10] sm:$0xff]
      %v1023 = vld [vmem:[%s1019 + $0x18] sm:$0xff]
      %v1024 = vld [vmem:[%s1019 + $0x20] sm:$0xff]
      %v1025 = vld [vmem:[%s1019 + $0x28] sm:$0xff]
      %v1026 = vld [vmem:[%s1019 + $0x30] sm:$0xff]
      %v1027 = vld [vmem:[%s1019 + $0x38] sm:$0x7f]
      %v1028 = vld [vmem:[%s1019 + $0x40] sm:$0x7f]
      %v1029 = vld [vmem:[%s1019 + $0x48] sm:$0x7f]
      %v1030 = vld [vmem:[%s1019 + $0x50] sm:$0x7f]
      %v1031 = vld [vmem:[%s1019 + $0x58] sm:$0x7f]
      %v1032 = vld [vmem:[%s1019 + $0x60] sm:$0x7f]
      %v1033 = vld [vmem:[%s1019 + $0x68] sm:$0x7f]
      %v1035 = vsel %vm389, %v1026, 0
      %v1038 = vsel %vm389, %v1033, 0
      %1040 = vmatprep.subr.mxu0 0.0
      %1041 = vmatpush1.msra.mxu0 %v275
      %1042 = vmatprep.subr.mxu0 0.0
      %1043 = vmatpush1.msra.mxu0 %v276
      %1044 = vmatprep.subr.mxu0 0.0
      %1045 = vmatpush1.msra.mxu0 %v277
      %1046 = vmatprep.subr.mxu0 0.0
      %1047 = vmatpush1.msra.mxu0 %v278
      %1048 = vmatprep.subr.mxu0 0.0
      %1049 = vmatpush1.msra.mxu0 %v279
      %1050 = vmatprep.subr.mxu0 0.0
      %1051 = vmatpush1.msra.mxu0 %v280
      %1052 = vmatprep.subr.mxu0 0.0
      %1053 = vmatpush1.msra.mxu0 %v281
      %1054 = vmatprep.subr.mxu0 0.0
      %1055 = vmatpush1.msra.mxu0 %v282
      %1056 = vmatprep.subr.mxu0 0.0
      %1057 = vmatpush1.msra.mxu0 %v283
      %1058 = vmatprep.subr.mxu0 0.0
      %1059 = vmatpush1.msra.mxu0 %v284
      %1060 = vmatprep.subr.mxu0 0.0
      %1061 = vmatpush1.msra.mxu0 %v285
      %1062 = vmatprep.subr.mxu0 0.0
      %1063 = vmatpush1.msra.mxu0 %v286
      %1064 = vmatprep.subr.mxu0 0.0
      %1065 = vmatpush1.msra.mxu0 %v287
      %1066 = vmatprep.subr.mxu0 0.0
      %1067 = vmatpush1.msra.mxu0 %v288
      %1068 = vmatprep.subr.mxu0 0.0
      %1069 = vmatpush1.msra.mxu0 %v289
      %1070 = vmatprep.subr.mxu0 0.0
      %1071 = vmatpush1.msra.mxu0 %v290
      %1072 = vmatprep.subr.mxu0 0.0
      %1073 = vmatpush1.msra.mxu0 %v291
      %1074 = vmatprep.subr.mxu0 0.0
      %1075 = vmatpush1.msra.mxu0 %v292
      %1076 = vmatprep.subr.mxu0 0.0
      %1077 = vmatpush1.msra.mxu0 %v293
      %1078 = vmatprep.subr.mxu0 0.0
      %1079 = vmatpush1.msra.mxu0 %v294
      %1080 = vmatprep.subr.mxu0 0.0
      %1081 = vmatpush1.msra.mxu0 %v295
      %1082 = vmatprep.subr.mxu0 0.0
      %1083 = vmatpush1.msra.mxu0 %v296
      %1084 = vmatprep.subr.mxu0 0.0
      %1085 = vmatpush1.msra.mxu0 %v297
      %1086 = vmatprep.subr.mxu0 0.0
      %1087 = vmatpush1.msra.mxu0 %v298
      %1088 = vmatprep.subr.mxu0 0.0
      %1089 = vmatpush1.msra.mxu0 %v299
      %1090 = vmatprep.subr.mxu0 0.0
      %1091 = vmatpush1.msra.mxu0 %v300
      %1092 = vmatprep.subr.mxu0 0.0
      %1093 = vmatpush1.msra.mxu0 %v301
      %1094 = vmatprep.subr.mxu0 0.0
      %1095 = vmatpush1.msra.mxu0 %v302
      %1096 = vmatprep.subr.mxu0 0.0
      %1097 = vmatpush1.msra.mxu0 %v303
      %1098 = vmatprep.subr.mxu0 0.0
      %1099 = vmatpush1.msra.mxu0 %v304
      %1100 = vmatprep.subr.mxu0 0.0
      %1101 = vmatpush1.msra.mxu0 %v305
      %1102 = vmatprep.subr.mxu0 0.0
      %1103 = vmatpush1.msra.mxu0 %v306
      %1104 = vmatprep.mubr.f32.mxu0 %v1021
      %1105 = vmatmul.mubr.f32.gmra.mrb[0].mxu0 %v1020
      %v1106 = vpop.f32.mrb[0].mxu0
      %v1107 = vadd.f32 0.0, %v1106
      %v1108 = vpop.f32.mrb[0].mxu0
      %1109 = vmatprep.mubr.f32.mxu0 %v1028
      %1110 = vmatmul.mubr.f32.gmra.mrb[0].mxu0 %v1027
      %v1111 = vpop.f32.mrb[0].mxu0
      %v1112 = vadd.f32 0.0, %v1111
      %v1113 = vpop.f32.mrb[0].mxu0
      %1114 = vdwg.mxu0
      %1115 = vmatprep.subr.mxu0 0.0
      %1116 = vmatpush1.msra.mxu0 %v307
      %1117 = vmatprep.subr.mxu0 0.0
      %1118 = vmatpush1.msra.mxu0 %v308
      %1119 = vmatprep.subr.mxu0 0.0
      %1120 = vmatpush1.msra.mxu0 %v309
      %1121 = vmatprep.subr.mxu0 0.0
      %1122 = vmatpush1.msra.mxu0 %v310
      %1123 = vmatprep.subr.mxu0 0.0
      %1124 = vmatpush1.msra.mxu0 %v311
      %1125 = vmatprep.subr.mxu0 0.0
      %1126 = vmatpush1.msra.mxu0 %v312
      %1127 = vmatprep.subr.mxu0 0.0
      %1128 = vmatpush1.msra.mxu0 %v313
      %1129 = vmatprep.subr.mxu0 0.0
      %1130 = vmatpush1.msra.mxu0 %v314
      %1131 = vmatprep.subr.mxu0 0.0
      %1132 = vmatpush1.msra.mxu0 %v315
      %1133 = vmatprep.subr.mxu0 0.0
      %1134 = vmatpush1.msra.mxu0 %v316
      %1135 = vmatprep.subr.mxu0 0.0
      %1136 = vmatpush1.msra.mxu0 %v317
      %1137 = vmatprep.subr.mxu0 0.0
      %1138 = vmatpush1.msra.mxu0 %v318
      %1139 = vmatprep.subr.mxu0 0.0
      %1140 = vmatpush1.msra.mxu0 %v319
      %1141 = vmatprep.subr.mxu0 0.0
      %1142 = vmatpush1.msra.mxu0 %v320
      %1143 = vmatprep.subr.mxu0 0.0
      %1144 = vmatpush1.msra.mxu0 %v321
      %1145 = vmatprep.subr.mxu0 0.0
      %1146 = vmatpush1.msra.mxu0 %v322
      %1147 = vmatprep.subr.mxu0 0.0
      %1148 = vmatpush1.msra.mxu0 %v323
      %1149 = vmatprep.subr.mxu0 0.0
      %1150 = vmatpush1.msra.mxu0 %v324
      %1151 = vmatprep.subr.mxu0 0.0
      %1152 = vmatpush1.msra.mxu0 %v325
      %1153 = vmatprep.subr.mxu0 0.0
      %1154 = vmatpush1.msra.mxu0 %v326
      %1155 = vmatprep.subr.mxu0 0.0
      %1156 = vmatpush1.msra.mxu0 %v327
      %1157 = vmatprep.subr.mxu0 0.0
      %1158 = vmatpush1.msra.mxu0 %v328
      %1159 = vmatprep.subr.mxu0 0.0
      %1160 = vmatpush1.msra.mxu0 %v329
      %1161 = vmatprep.subr.mxu0 0.0
      %1162 = vmatpush1.msra.mxu0 %v330
      %1163 = vmatprep.subr.mxu0 0.0
      %1164 = vmatpush1.msra.mxu0 %v331
      %1165 = vmatprep.subr.mxu0 0.0
      %1166 = vmatpush1.msra.mxu0 %v332
      %1167 = vmatprep.subr.mxu0 0.0
      %1168 = vmatpush1.msra.mxu0 %v333
      %1169 = vmatprep.subr.mxu0 0.0
      %1170 = vmatpush1.msra.mxu0 %v334
      %1171 = vmatprep.subr.mxu0 0.0
      %1172 = vmatpush1.msra.mxu0 %v335
      %1173 = vmatprep.subr.mxu0 0.0
      %1174 = vmatpush1.msra.mxu0 %v336
      %1175 = vmatprep.subr.mxu0 0.0
      %1176 = vmatpush1.msra.mxu0 %v337
      %1177 = vmatprep.subr.mxu0 0.0
      %1178 = vmatpush1.msra.mxu0 %v338
      %1179 = vmatprep.mubr.f32.mxu0 %v1023
      %1180 = vmatmul.mubr.f32.gmra.mrb[0].mxu0 %v1022
      %v1181 = vpop.f32.mrb[0].mxu0
      %v1182 = vadd.f32 %v1107, %v1181
      %v1183 = vpop.f32.mrb[0].mxu0
      %1184 = vmatprep.mubr.f32.mxu0 %v1030
      %1185 = vmatmul.mubr.f32.gmra.mrb[0].mxu0 %v1029
      %v1186 = vpop.f32.mrb[0].mxu0
      %v1187 = vadd.f32 %v1112, %v1186
      %v1188 = vpop.f32.mrb[0].mxu0
      %1189 = vdwg.mxu0
      %1190 = vmatprep.subr.mxu0 0.0
      %1191 = vmatpush1.msra.mxu0 %v339
      %1192 = vmatprep.subr.mxu0 0.0
      %1193 = vmatpush1.msra.mxu0 %v340
      %1194 = vmatprep.subr.mxu0 0.0
      %1195 = vmatpush1.msra.mxu0 %v341
      %1196 = vmatprep.subr.mxu0 0.0
      %1197 = vmatpush1.msra.mxu0 %v342
      %1198 = vmatprep.subr.mxu0 0.0
      %1199 = vmatpush1.msra.mxu0 %v343
      %1200 = vmatprep.subr.mxu0 0.0
      %1201 = vmatpush1.msra.mxu0 %v344
      %1202 = vmatprep.subr.mxu0 0.0
      %1203 = vmatpush1.msra.mxu0 %v345
      %1204 = vmatprep.subr.mxu0 0.0
      %1205 = vmatpush1.msra.mxu0 %v346
      %1206 = vmatprep.subr.mxu0 0.0
      %1207 = vmatpush1.msra.mxu0 %v347
      %1208 = vmatprep.subr.mxu0 0.0
      %1209 = vmatpush1.msra.mxu0 %v348
      %1210 = vmatprep.subr.mxu0 0.0
      %1211 = vmatpush1.msra.mxu0 %v349
      %1212 = vmatprep.subr.mxu0 0.0
      %1213 = vmatpush1.msra.mxu0 %v350
      %1214 = vmatprep.subr.mxu0 0.0
      %1215 = vmatpush1.msra.mxu0 %v351
      %1216 = vmatprep.subr.mxu0 0.0
      %1217 = vmatpush1.msra.mxu0 %v352
      %1218 = vmatprep.subr.mxu0 0.0
      %1219 = vmatpush1.msra.mxu0 %v353
      %1220 = vmatprep.subr.mxu0 0.0
      %1221 = vmatpush1.msra.mxu0 %v354
      %1222 = vmatprep.subr.mxu0 0.0
      %1223 = vmatpush1.msra.mxu0 %v355
      %1224 = vmatprep.subr.mxu0 0.0
      %1225 = vmatpush1.msra.mxu0 %v356
      %1226 = vmatprep.subr.mxu0 0.0
      %1227 = vmatpush1.msra.mxu0 %v357
      %1228 = vmatprep.subr.mxu0 0.0
      %1229 = vmatpush1.msra.mxu0 %v358
      %1230 = vmatprep.subr.mxu0 0.0
      %1231 = vmatpush1.msra.mxu0 %v359
      %1232 = vmatprep.subr.mxu0 0.0
      %1233 = vmatpush1.msra.mxu0 %v360
      %1234 = vmatprep.subr.mxu0 0.0
      %1235 = vmatpush1.msra.mxu0 %v361
      %1236 = vmatprep.subr.mxu0 0.0
      %1237 = vmatpush1.msra.mxu0 %v362
      %1238 = vmatprep.subr.mxu0 0.0
      %1239 = vmatpush1.msra.mxu0 %v363
      %1240 = vmatprep.subr.mxu0 0.0
      %1241 = vmatpush1.msra.mxu0 %v364
      %1242 = vmatprep.subr.mxu0 0.0
      %1243 = vmatpush1.msra.mxu0 %v365
      %1244 = vmatprep.subr.mxu0 0.0
      %1245 = vmatpush1.msra.mxu0 %v366
      %1246 = vmatprep.subr.mxu0 0.0
      %1247 = vmatpush1.msra.mxu0 %v367
      %1248 = vmatprep.subr.mxu0 0.0
      %1249 = vmatpush1.msra.mxu0 %v368
      %1250 = vmatprep.subr.mxu0 0.0
      %1251 = vmatpush1.msra.mxu0 %v369
      %1252 = vmatprep.subr.mxu0 0.0
      %1253 = vmatpush1.msra.mxu0 %v370
      %1254 = vmatprep.mubr.f32.mxu0 %v1025
      %1255 = vmatmul.mubr.f32.gmra.mrb[0].mxu0 %v1024
      %v1256 = vpop.f32.mrb[0].mxu0
      %v1257 = vadd.f32 %v1182, %v1256
      %v1258 = vpop.f32.mrb[0].mxu0
      %1259 = vmatprep.mubr.f32.mxu0 %v1032
      %1260 = vmatmul.mubr.f32.gmra.mrb[0].mxu0 %v1031
      %v1261 = vpop.f32.mrb[0].mxu0
      %v1262 = vadd.f32 %v1187, %v1261
      %v1263 = vpop.f32.mrb[0].mxu0
      %1264 = vdwg.mxu0
      %1265 = vmatprep.subr.mxu0 0.0
      %1266 = vmatpush1.msra.mxu0 %v371
      %1267 = vmatprep.subr.mxu0 0.0
      %1268 = vmatpush1.msra.mxu0 %v372
      %1269 = vmatprep.subr.mxu0 0.0
      %1270 = vmatpush1.msra.mxu0 %v373
      %1271 = vmatprep.subr.mxu0 0.0
      %1272 = vmatpush1.msra.mxu0 %v374
      %1273 = vmatprep.subr.mxu0 0.0
      %1274 = vmatpush1.msra.mxu0 0.0
      %1275 = vmatprep.subr.mxu0 0.0
      %1276 = vmatpush1.msra.mxu0 0.0
      %1277 = vmatprep.subr.mxu0 0.0
      %1278 = vmatpush1.msra.mxu0 0.0
      %1279 = vmatprep.subr.mxu0 0.0
      %1280 = vmatpush1.msra.mxu0 0.0
      %1281 = vmatprep.subr.mxu0 0.0
      %1282 = vmatpush1.msra.mxu0 0.0
      %1283 = vmatprep.subr.mxu0 0.0
      %1284 = vmatpush1.msra.mxu0 0.0
      %1285 = vmatprep.subr.mxu0 0.0
      %1286 = vmatpush1.msra.mxu0 0.0
      %1287 = vmatprep.subr.mxu0 0.0
      %1288 = vmatpush1.msra.mxu0 0.0
      %1289 = vmatprep.subr.mxu0 0.0
      %1290 = vmatpush1.msra.mxu0 0.0
      %1291 = vmatprep.subr.mxu0 0.0
      %1292 = vmatpush1.msra.mxu0 0.0
      %1293 = vmatprep.subr.mxu0 0.0
      %1294 = vmatpush1.msra.mxu0 0.0
      %1295 = vmatprep.subr.mxu0 0.0
      %1296 = vmatpush1.msra.mxu0 0.0
      %1297 = vmatprep.subr.mxu0 0.0
      %1298 = vmatpush1.msra.mxu0 0.0
      %1299 = vmatprep.subr.mxu0 0.0
      %1300 = vmatpush1.msra.mxu0 0.0
      %1301 = vmatprep.subr.mxu0 0.0
      %1302 = vmatpush1.msra.mxu0 0.0
      %1303 = vmatprep.subr.mxu0 0.0
      %1304 = vmatpush1.msra.mxu0 0.0
      %1305 = vmatprep.subr.mxu0 0.0
      %1306 = vmatpush1.msra.mxu0 0.0
      %1307 = vmatprep.subr.mxu0 0.0
      %1308 = vmatpush1.msra.mxu0 0.0
      %1309 = vmatprep.subr.mxu0 0.0
      %1310 = vmatpush1.msra.mxu0 0.0
      %1311 = vmatprep.subr.mxu0 0.0
      %1312 = vmatpush1.msra.mxu0 0.0
      %1313 = vmatprep.subr.mxu0 0.0
      %1314 = vmatpush1.msra.mxu0 0.0
      %1315 = vmatprep.subr.mxu0 0.0
      %1316 = vmatpush1.msra.mxu0 0.0
      %1317 = vmatprep.subr.mxu0 0.0
      %1318 = vmatpush1.msra.mxu0 0.0
      %1319 = vmatprep.subr.mxu0 0.0
      %1320 = vmatpush1.msra.mxu0 0.0
      %1321 = vmatprep.subr.mxu0 0.0
      %1322 = vmatpush1.msra.mxu0 0.0
      %1323 = vmatprep.subr.mxu0 0.0
      %1324 = vmatpush1.msra.mxu0 0.0
      %1325 = vmatprep.subr.mxu0 0.0
      %1326 = vmatpush1.msra.mxu0 0.0
      %1327 = vmatprep.subr.mxu0 0.0
      %1328 = vmatpush1.msra.mxu0 0.0
      %1329 = vmatprep.mubr.f32.mxu0 0.0
      %1330 = vmatmul.mubr.f32.gmra.mrb[0].mxu0 %v1035
      %v1331 = vpop.f32.mrb[0].mxu0
      %v1332 = vadd.f32 %v1257, %v1331
      %v1333 = vpop.f32.mrb[0].mxu0
      %1334 = vmatprep.mubr.f32.mxu0 0.0
      %1335 = vmatmul.mubr.f32.gmra.mrb[0].mxu0 %v1038
      %v1336 = vpop.f32.mrb[0].mxu0
      %v1337 = vadd.f32 %v1262, %v1336
      %v1338 = vpop.f32.mrb[0].mxu0
      %1339 = vdwg.mxu0
      %v1340 = vmax.f32 %v1017, %v1332
      %v1341 = vmax.f32 %v1018, %v1337
      %v1342 = vld [vmem:[%s262] sm:$0x1]
      %v1344 = vlaneseq
      %v1345 = vshrl.u32 %v1344, 7
      %v1346 = vsub.s32 0, %v1345
      %v1347 = vrot.slane %v1342, %v1346
      %v1349 = vadd.f32 %v1340, %v1347
      %v1350 = vadd.f32 %v1341, %v1347
      %v1351 = vmax.f32 %v1349, 0.0
      %v1352 = vmax.f32 %v1350, 0.0
      %vm1353 = vcmask 523264
      %1354 = vst.msk [vmem:[#allocation2] sm:$0xff] %vm1353, %v1351
      %vm1355 = vcmask 522240
      %1356 = vst.msk [vmem:[#allocation2 + $0x8] sm:$0x7f] %vm1355, %v1352
      %v1357 = vld [vmem:[#allocation2] ss:$3 sm:$0x1f]
      %s1358 = scalar_lea.vmem [#allocation2], 1
      %v1359 = vld [vmem:[%s1358] ss:$3 sm:$0x1f]
      %v1360 = vmax.f32 %v1357, %v1359
      %s1361 = scalar_lea.vmem [#allocation2], 2
      %v1362 = vld [vmem:[%s1361] ss:$3 sm:$0x1f]
      %v1363 = vmax.f32 %v1360, %v1362
      %vm1364 = vcmask 520192
      %1365 = vst.msk [vmem:[%s274] sm:$0x1f] %vm1364, %v1363
      %p1366 = scmp.lt.s32.totalorder %s20, 2
      %s1367 = scalar_select %p1366, %s20, 2
      %p1368 = scmp.lt.s32.totalorder %s19, 1
      %s1369 = scalar_select %p1368, %s19, 1
      %p1370 = scmp.lt.s32.totalorder %s21, 4
      %s1371 = scalar_select %p1370, %s21, 4
      %s1372 = smul.addr %s1369, 5
      %s1373 = sadd.s32 %s1371, %s1372
      %s1374 = smul.addr %s1367, 10
      %s1375 = sadd.s32 %s1373, %s1374
      %s1376 = smul.addr %s1375, 8
      %s1377 = scalar_lea.vmem %s3, %s1376
      // Predicated region
      $region33: #{leaves_net_forward.5} parent=31 // pred_check
        %p1378 = pneg %p137
      $region34: #{leaves_net_forward.5} parent=31 // pred_check_branch
        %1380 = sbr.rel (%p1378) target = $region36
      $region35: #{leaves_net_forward.5} parent=31 // pred_region
        _
      $region36: #{leaves_net_forward.5} parent=31 // pred_fallthru
        _
    $region32: #{leaves_net_forward.5} parent=5 // pred_fallthru
      _
    %p1381 = scmp.le.s32.totalorder 2, %s9
    // Predicated region
    $region37: #{leaves_net_forward.5} parent=5 // pred_check
      %p1382 = pneg %p1381
    $region38: #{leaves_net_forward.5} parent=5 // pred_check_branch
      %1384 = sbr.rel (%p1382) target = $region40
    $region39: #{leaves_net_forward.5} parent=5 // pred_region
      %s1385 = ssub.s32 %s9, 2
      // Predicated region
      $region41: #{leaves_net_forward.5} parent=39 // pred_check
        %p1386 = pneg %p143
      $region42: #{leaves_net_forward.5} parent=39 // pred_check_branch
        %1388 = sbr.rel (%p1386) target = $region44
      $region43: #{leaves_net_forward.5} parent=39 // pred_region
        %p1389 = scmp.lt.s32.totalorder %s23, 2
        %s1390 = scalar_select %p1389, %s23, 2
        %p1391 = scmp.lt.s32.totalorder %s22, 1
        %s1392 = scalar_select %p1391, %s22, 1
        %p1393 = scmp.lt.s32.totalorder %s24, 4
        %s1394 = scalar_select %p1393, %s24, 4
        %s1395 = smul.addr %s1392, 5
        %s1396 = sadd.s32 %s1394, %s1395
        %s1397 = smul.addr %s1390, 10
        %s1398 = sadd.s32 %s1396, %s1397
        %s1399 = smul.addr %s1398, 8
        %s1400 = scalar_lea.vmem %s3, %s1399
      $region44: #{leaves_net_forward.5} parent=39 // pred_fallthru
        _
    $region40: #{leaves_net_forward.5} parent=5 // pred_fallthru
      _
  $region6: #{leaves_net_forward.5} parent=0 // loop_footer
    %s13 = sadd.s32 1, %s9
  $region7: #{leaves_net_forward.5} parent=0 // loop_footer_branch
    %8 = sbr.rel target = $region3
  $region8: #{leaves_net_forward.5} parent=0 // loop_exit
    _

// kernel: leaves_net_forward.6
$region0: #{leaves_net_forward.6}
  #allocation0 [shape = 'u32[]', space=smem, size = 0x4, offset = 0x4, fixed_abs, tag = 'smem constant byte address 0x4 - core index']
  #allocation1 [shape = 'u32[144,128]{1,0:T(1,128)}', space=vmem, size = 0x12000, scoped, tag = 'internal scratch']
  #allocation2 [shape = 'f32[3,128]{1,0:T(4,128)}', space=vmem, size = 0x800, scoped, tag = 'scratch operand']
  %s0 = inlined_call_operand.vmem [shape: f32[3,2,3,3,576], index: 0, kind: input, shape index: {}]
  %s1 = inlined_call_operand.vmem [shape: f32[3,576,128], index: 1, kind: input, shape index: {}]
  %s2 = inlined_call_operand.vmem [shape: f32[3,1,128], index: 2, kind: input, shape index: {}]
  %s3 = inlined_call_operand.vmem [shape: f32[3,2,1,1,128], index: 3, kind: output, shape index: {}]
  %s4 = sld [smem:[#allocation0]]
  $region45: #{leaves_net_forward.6} parent=0
    _
  %s6 = ssub.s32 1, %s4
  %s7 = scalar_select 0, %s6, %s4
  loop: start=0, step=1, limit=8
  $region2: #{leaves_net_forward.6} parent=0 // loop_pre_header
    _
  $region3: #{leaves_net_forward.6} parent=0 // loop_header
    %s9 = sphi 0, %s13
    %p10 = scmp.ge.s32.totalorder %s9, 8
    %s16 = sphi 0, %s35
    %s17 = sphi 0, %s31
    %s18 = sphi 0, %s27
    %s19 = sphi 0, %s16
    %s20 = sphi 0, %s17
    %s21 = sphi 0, %s18
    %s22 = sphi 0, %s19
    %s23 = sphi 0, %s20
    %s24 = sphi 0, %s21
    %s42 = sphi 0, %s44
    %s45 = sphi 0, %s42
    %s46 = sphi 0, %s45
    %s62 = sphi 0, %s46
    %s68 = sphi 0, %s70
    %s71 = sphi 0, %s68
    %s72 = sphi 0, %s71
    %s88 = sphi 0, %s72
    %s94 = sphi 0, %s96
    %s97 = sphi 0, %s94
    %s98 = sphi 0, %s97
    %s114 = sphi 0, %s98
    %s124 = sphi 0, %s126
    %s127 = sphi 0, %s124
    %s128 = sphi 0, %s127
    %s144 = sphi 0, %s128
  $region4: #{leaves_net_forward.6} parent=0 // loop_header_branch
    %12 = sbr.rel (%p10) target = $region8
  $region5: #{leaves_net_forward.6} parent=0 // loop_body
    %s14 = ssub.s32 %s9, 1
    %s15 = ssub.s32 %s9, 2
    %s25 = sadd.s32 1, %s18
    %p26 = scmp.ge.s32.totalorder %s25, 1
    %s27 = scalar_select %p26, 0, %s25
    %s28 = sadd.s32 1, %s17
    %s29 = scalar_select %p26, %s28, %s17
    %p30 = scmp.ge.s32.totalorder %s29, 3
    %s31 = scalar_select %p30, 0, %s29
    %s32 = sadd.s32 1, %s16
    %s33 = scalar_select %p30, %s32, %s16
    %p34 = scmp.ge.s32.totalorder %s33, 2
    %s35 = scalar_select %p34, 0, %s33
    %s36 = ssub.s32 %s17, %s31
    %s37 = ssub.s32 %s16, %s35
    %s38 = sor.u32 %s36, %s37
    %s39 = ssub.s32 %s18, %s27
    %s40 = sor.u32 %s38, %s39
    %p41 = scmp.eq.s32.totalorder %s40, 0
    %s43 = sadd.s32 %s42, 1
    %s44 = scalar_select %p41, %s42, %s43
    %p47 = pneg %p41
    %p48 = scmp.eq.s32.totalorder %s9, 5
    %p49 = por %p47, %p48
    %p50 = scmp.ne.s32.totalorder %s42, %s45
    %p51 = scmp.eq.s32.totalorder %s9, 0
    %p52 = por %p50, %p51
    %p53 = scmp.ne.s32.totalorder %s42, %s45
    %p54 = scmp.eq.s32.totalorder %s14, 5
    %p55 = por %p53, %p54
    %p56 = scmp.ne.s32.totalorder %s45, %s46
    %p57 = scmp.eq.s32.totalorder %s14, 0
    %p58 = por %p56, %p57
    %p59 = scmp.ne.s32.totalorder %s45, %s46
    %p60 = scmp.eq.s32.totalorder %s15, 5
    %p61 = por %p59, %p60
    %p63 = scmp.ne.s32.totalorder %s46, %s62
    %p64 = scmp.eq.s32.totalorder %s15, 0
    %p65 = por %p63, %p64
    %s66 = ssub.s32 %s17, %s31
    %p67 = scmp.eq.s32.totalorder %s66, 0
    %s69 = sadd.s32 %s68, 1
    %s70 = scalar_select %p67, %s68, %s69
    %p73 = pneg %p67
    %p74 = scmp.eq.s32.totalorder %s9, 5
    %p75 = por %p73, %p74
    %p76 = scmp.ne.s32.totalorder %s68, %s71
    %p77 = scmp.eq.s32.totalorder %s9, 0
    %p78 = por %p76, %p77
    %p79 = scmp.ne.s32.totalorder %s68, %s71
    %p80 = scmp.eq.s32.totalorder %s14, 5
    %p81 = por %p79, %p80
    %p82 = scmp.ne.s32.totalorder %s71, %s72
    %p83 = scmp.eq.s32.totalorder %s14, 0
    %p84 = por %p82, %p83
    %p85 = scmp.ne.s32.totalorder %s71, %s72
    %p86 = scmp.eq.s32.totalorder %s15, 5
    %p87 = por %p85, %p86
    %p89 = scmp.ne.s32.totalorder %s72, %s88
    %p90 = scmp.eq.s32.totalorder %s15, 0
    %p91 = por %p89, %p90
    %s92 = ssub.s32 %s17, %s31
    %p93 = scmp.eq.s32.totalorder %s92, 0
    %s95 = sadd.s32 %s94, 1
    %s96 = scalar_select %p93, %s94, %s95
    %p99 = pneg %p93
    %p100 = scmp.eq.s32.totalorder %s9, 5
    %p101 = por %p99, %p100
    %p102 = scmp.ne.s32.totalorder %s94, %s97
    %p103 = scmp.eq.s32.totalorder %s9, 0
    %p104 = por %p102, %p103
    %p105 = scmp.ne.s32.totalorder %s94, %s97
    %p106 = scmp.eq.s32.totalorder %s14, 5
    %p107 = por %p105, %p106
    %p108 = scmp.ne.s32.totalorder %s97, %s98
    %p109 = scmp.eq.s32.totalorder %s14, 0
    %p110 = por %p108, %p109
    %p111 = scmp.ne.s32.totalorder %s97, %s98
    %p112 = scmp.eq.s32.totalorder %s15, 5
    %p113 = por %p111, %p112
    %p115 = scmp.ne.s32.totalorder %s98, %s114
    %p116 = scmp.eq.s32.totalorder %s15, 0
    %p117 = por %p115, %p116
    %s118 = ssub.s32 %s17, %s31
    %s119 = ssub.s32 %s16, %s35
    %s120 = sor.u32 %s118, %s119
    %s121 = ssub.s32 %s18, %s27
    %s122 = sor.u32 %s120, %s121
    %p123 = scmp.eq.s32.totalorder %s122, 0
    %s125 = sadd.s32 %s124, 1
    %s126 = scalar_select %p123, %s124, %s125
    %p129 = pneg %p123
    %p130 = scmp.eq.s32.totalorder %s9, 5
    %p131 = por %p129, %p130
    %p132 = scmp.ne.s32.totalorder %s124, %s127
    %p133 = scmp.eq.s32.totalorder %s9, 0
    %p134 = por %p132, %p133
    %p135 = scmp.ne.s32.totalorder %s124, %s127
    %p136 = scmp.eq.s32.totalorder %s14, 5
    %p137 = por %p135, %p136
    %p138 = scmp.ne.s32.totalorder %s127, %s128
    %p139 = scmp.eq.s32.totalorder %s14, 0
    %p140 = por %p138, %p139
    %p141 = scmp.ne.s32.totalorder %s127, %s128
    %p142 = scmp.eq.s32.totalorder %s15, 5
    %p143 = por %p141, %p142
    %p145 = scmp.ne.s32.totalorder %s128, %s144
    %p146 = scmp.eq.s32.totalorder %s15, 0
    %p147 = por %p145, %p146
    %p148 = scmp.le.s32.totalorder 1, %s9
    %p149 = scmp.lt.s32.totalorder %s9, 7
    %p150 = pnand %p148, %p149
    %p151 = pneg %p150
    // Predicated region
    $region9: #{leaves_net_forward.6} parent=5 // pred_check
      _
    $region10: #{leaves_net_forward.6} parent=5 // pred_check_branch
      %153 = sbr.rel (%p150) target = $region12
    $region11: #{leaves_net_forward.6} parent=5 // pred_region
      %s154 = ssub.s32 %s9, 1
    $region12: #{leaves_net_forward.6} parent=5 // pred_fallthru
      _
    %p155 = scmp.lt.s32.totalorder %s9, 6
    // Predicated region
    $region13: #{leaves_net_forward.6} parent=5 // pred_check
      %p156 = pneg %p155
    $region14: #{leaves_net_forward.6} parent=5 // pred_check_branch
      %158 = sbr.rel (%p156) target = $region16
    $region15: #{leaves_net_forward.6} parent=5 // pred_region
      // Predicated region
      $region17: #{leaves_net_forward.6} parent=15 // pred_check
        %p159 = pneg %p52
      $region18: #{leaves_net_forward.6} parent=15 // pred_check_branch
        %161 = sbr.rel (%p159) target = $region20
      $region19: #{leaves_net_forward.6} parent=15 // pred_region
        %s162 = smul.u32 3, %s18
        %p163 = scmp.lt.s32.totalorder %s17, 2
        %s164 = scalar_select %p163, %s17, 2
        %p165 = scmp.lt.s32.totalorder %s16, 1
        %s166 = scalar_select %p165, %s16, 1
        %p167 = scmp.lt.s32.totalorder %s162, 2
        %s168 = scalar_select %p167, %s162, 2
        %s169 = smul.addr %s168, 5
        %s170 = smul.addr %s166, 15
        %s171 = sadd.s32 %s169, %s170
        %s172 = smul.addr %s164, 30
        %s173 = sadd.s32 %s171, %s172
        %s174 = smul.addr %s173, 4
        %s175 = scalar_lea.vmem %s0, %s174
        %s176 = smul.u32 3, %s18
      $region20: #{leaves_net_forward.6} parent=15 // pred_fallthru
        _
      // Predicated region
      $region21: #{leaves_net_forward.6} parent=15 // pred_check
        %p177 = pneg %p78
      $region22: #{leaves_net_forward.6} parent=15 // pred_check_branch
        %179 = sbr.rel (%p177) target = $region24
      $region23: #{leaves_net_forward.6} parent=15 // pred_region
        %p180 = scmp.lt.s32.totalorder %s17, 2
        %s181 = scalar_select %p180, %s17, 2
        %s182 = smul.addr %s181, 72
        %s183 = smul.addr %s182, 8
        %s184 = scalar_lea.vmem %s1, %s183
      $region24: #{leaves_net_forward.6} parent=15 // pred_fallthru
        _
      // Predicated region
      $region25: #{leaves_net_forward.6} parent=15 // pred_check
        %p185 = pneg %p104
      $region26: #{leaves_net_forward.6} parent=15 // pred_check_branch
        %187 = sbr.rel (%p185) target = $region28
      $region27: #{leaves_net_forward.6} parent=15 // pred_region
        %p188 = scmp.lt.s32.totalorder %s17, 2
        %s189 = scalar_select %p188, %s17, 2
        %s190 = scalar_lea.vmem %s2, %s189
      $region28: #{leaves_net_forward.6} parent=15 // pred_fallthru
        _
    $region16: #{leaves_net_forward.6} parent=5 // pred_fallthru
      _
    %p191 = scmp.le.s32.totalorder 1, %s9
    %p192 = scmp.lt.s32.totalorder %s9, 7
    %p193 = pnand %p191, %p192
    %p194 = pneg %p193
    // Predicated region
    $region29: #{leaves_net_forward.6} parent=5 // pred_check
      _
    $region30: #{leaves_net_forward.6} parent=5 // pred_check_branch
      %196 = sbr.rel (%p193) target = $region32
    $region31: #{leaves_net_forward.6} parent=5 // pred_region
      %s197 = ssub.s32 %s9, 1
      %s198 = smul.u32 3, %s21
      %p199 = scmp.lt.s32.totalorder %s20, 2
      %s200 = scalar_select %p199, %s20, 2
      %p201 = scmp.lt.s32.totalorder %s19, 1
      %s202 = scalar_select %p201, %s19, 1
      %p203 = scmp.lt.s32.totalorder %s198, 2
      %s204 = scalar_select %p203, %s198, 2
      %s205 = smul.addr %s204, 5
      %s206 = smul.addr %s202, 15
      %s207 = sadd.s32 %s205, %s206
      %s208 = smul.addr %s200, 30
      %s209 = sadd.s32 %s207, %s208
      %s210 = smul.addr %s209, 4
      %s211 = scalar_lea.vmem %s0, %s210
      %p212 = pneg %p58
      %p213 = pneg %p55
      %p214 = scmp.lt.s32.totalorder %s20, 2
      %s215 = scalar_select %p214, %s20, 2
      %s216 = smul.addr %s215, 72
      %s217 = smul.addr %s216, 8
      %s218 = scalar_lea.vmem %s1, %s217
      %p219 = pneg %p84
      %p220 = pneg %p81
      %p221 = scmp.lt.s32.totalorder %s20, 2
      %s222 = scalar_select %p221, %s20, 2
      %s223 = scalar_lea.vmem %s2, %s222
      %p224 = pneg %p110
      %p225 = pneg %p107
      %p226 = pneg %p140
      %p227 = pneg %p137
      %p228 = scmp.lt.s32.totalorder %s20, 2
      %s229 = scalar_select %p228, %s20, 2
      %p230 = scmp.lt.s32.totalorder %s19, 1
      %s231 = scalar_select %p230, %s19, 1
      %p232 = scmp.lt.s32.totalorder %s21, 0
      %s233 = scalar_select %p232, %s21, 0
      %s234 = sadd.s32 %s233, %s231
      %s235 = smul.addr %s229, 2
      %s236 = sadd.s32 %s234, %s235
      %s237 = scalar_lea.vmem %s3, %s236
      %s238 = smul.u32 3, %s21
      %p239 = scmp.lt.s32.totalorder %s20, 2
      %s240 = scalar_select %p239, %s20, 2
      %p241 = scmp.lt.s32.totalorder %s19, 1
      %s242 = scalar_select %p241, %s19, 1
      %p243 = scmp.lt.s32.totalorder %s238, 2
      %s244 = scalar_select %p243, %s238, 2
      %s245 = smul.addr %s244, 5
      %s246 = smul.addr %s242, 15
      %s247 = sadd.s32 %s245, %s246
      %s248 = smul.addr %s240, 30
      %s249 = sadd.s32 %s247, %s248
      %s250 = smul.addr %s249, 4
      %s251 = scalar_lea.vmem %s0, %s250
      %s252 = smul.u32 3, %s21
      %p253 = scmp.lt.s32.totalorder %s20, 2
      %s254 = scalar_select %p253, %s20, 2
      %s255 = smul.addr %s254, 72
      %s256 = smul.addr %s255, 8
      %s257 = scalar_lea.vmem %s1, %s256
      %p258 = scmp.lt.s32.totalorder %s20, 2
      %s259 = scalar_select %p258, %s20, 2
      %s260 = scalar_lea.vmem %s2, %s259
      %p261 = scmp.lt.s32.totalorder %s20, 2
      %s262 = scalar_select %p261, %s20, 2
      %p263 = scmp.lt.s32.totalorder %s19, 1
      %s264 = scalar_select %p263, %s19, 1
      %p265 = scmp.lt.s32.totalorder %s21, 0
      %s266 = scalar_select %p265, %s21, 0
      %s267 = sadd.s32 %s266, %s264
      %s268 = smul.addr %s262, 2
      %s269 = sadd.s32 %s267, %s268
      %s270 = scalar_lea.vmem %s3, %s269
      %v271 = vld [vmem:[%s257] sm:$0xff]
      %v272 = vld [vmem:[%s257 + $0x8] sm:$0xff]
      %v273 = vld [vmem:[%s257 + $0x10] sm:$0xff]
      %v274 = vld [vmem:[%s257 + $0x18] sm:$0xff]
      %v275 = vld [vmem:[%s257 + $0x20] sm:$0xff]
      %v276 = vld [vmem:[%s257 + $0x28] sm:$0xff]
      %v277 = vld [vmem:[%s257 + $0x30] sm:$0xff]
      %v278 = vld [vmem:[%s257 + $0x38] sm:$0xff]
      %v279 = vld [vmem:[%s257 + $0x40] sm:$0xff]
      %v280 = vld [vmem:[%s257 + $0x48] sm:$0xff]
      %v281 = vld [vmem:[%s257 + $0x50] sm:$0xff]
      %v282 = vld [vmem:[%s257 + $0x58] sm:$0xff]
      %v283 = vld [vmem:[%s257 + $0x60] sm:$0xff]
      %v284 = vld [vmem:[%s257 + $0x68] sm:$0xff]
      %v285 = vld [vmem:[%s257 + $0x70] sm:$0xff]
      %v286 = vld [vmem:[%s257 + $0x78] sm:$0xff]
      %v287 = vld [vmem:[%s257 + $0x80] sm:$0xff]
      %v288 = vld [vmem:[%s257 + $0x88] sm:$0xff]
      %v289 = vld [vmem:[%s257 + $0x90] sm:$0xff]
      %v290 = vld [vmem:[%s257 + $0x98] sm:$0xff]
      %v291 = vld [vmem:[%s257 + $0xa0] sm:$0xff]
      %v292 = vld [vmem:[%s257 + $0xa8] sm:$0xff]
      %v293 = vld [vmem:[%s257 + $0xb0] sm:$0xff]
      %v294 = vld [vmem:[%s257 + $0xb8] sm:$0xff]
      %v295 = vld [vmem:[%s257 + $0xc0] sm:$0xff]
      %v296 = vld [vmem:[%s257 + $0xc8] sm:$0xff]
      %v297 = vld [vmem:[%s257 + $0xd0] sm:$0xff]
      %v298 = vld [vmem:[%s257 + $0xd8] sm:$0xff]
      %v299 = vld [vmem:[%s257 + $0xe0] sm:$0xff]
      %v300 = vld [vmem:[%s257 + $0xe8] sm:$0xff]
      %v301 = vld [vmem:[%s257 + $0xf0] sm:$0xff]
      %v302 = vld [vmem:[%s257 + $0xf8] sm:$0xff]
      %v303 = vld [vmem:[%s257 + $0x100] sm:$0xff]
      %v304 = vld [vmem:[%s257 + $0x108] sm:$0xff]
      %v305 = vld [vmem:[%s257 + $0x110] sm:$0xff]
      %v306 = vld [vmem:[%s257 + $0x118] sm:$0xff]
      %v307 = vld [vmem:[%s257 + $0x120] sm:$0xff]
      %v308 = vld [vmem:[%s257 + $0x128] sm:$0xff]
      %v309 = vld [vmem:[%s257 + $0x130] sm:$0xff]
      %v310 = vld [vmem:[%s257 + $0x138] sm:$0xff]
      %v311 = vld [vmem:[%s257 + $0x140] sm:$0xff]
      %v312 = vld [vmem:[%s257 + $0x148] sm:$0xff]
      %v313 = vld [vmem:[%s257 + $0x150] sm:$0xff]
      %v314 = vld [vmem:[%s257 + $0x158] sm:$0xff]
      %v315 = vld [vmem:[%s257 + $0x160] sm:$0xff]
      %v316 = vld [vmem:[%s257 + $0x168] sm:$0xff]
      %v317 = vld [vmem:[%s257 + $0x170] sm:$0xff]
      %v318 = vld [vmem:[%s257 + $0x178] sm:$0xff]
      %v319 = vld [vmem:[%s257 + $0x180] sm:$0xff]
      %v320 = vld [vmem:[%s257 + $0x188] sm:$0xff]
      %v321 = vld [vmem:[%s257 + $0x190] sm:$0xff]
      %v322 = vld [vmem:[%s257 + $0x198] sm:$0xff]
      %v323 = vld [vmem:[%s257 + $0x1a0] sm:$0xff]
      %v324 = vld [vmem:[%s257 + $0x1a8] sm:$0xff]
      %v325 = vld [vmem:[%s257 + $0x1b0] sm:$0xff]
      %v326 = vld [vmem:[%s257 + $0x1b8] sm:$0xff]
      %v327 = vld [vmem:[%s257 + $0x1c0] sm:$0xff]
      %v328 = vld [vmem:[%s257 + $0x1c8] sm:$0xff]
      %v329 = vld [vmem:[%s257 + $0x1d0] sm:$0xff]
      %v330 = vld [vmem:[%s257 + $0x1d8] sm:$0xff]
      %v331 = vld [vmem:[%s257 + $0x1e0] sm:$0xff]
      %v332 = vld [vmem:[%s257 + $0x1e8] sm:$0xff]
      %v333 = vld [vmem:[%s257 + $0x1f0] sm:$0xff]
      %v334 = vld [vmem:[%s257 + $0x1f8] sm:$0xff]
      %v335 = vld [vmem:[%s257 + $0x200] sm:$0xff]
      %v336 = vld [vmem:[%s257 + $0x208] sm:$0xff]
      %v337 = vld [vmem:[%s257 + $0x210] sm:$0xff]
      %v338 = vld [vmem:[%s257 + $0x218] sm:$0xff]
      %v339 = vld [vmem:[%s257 + $0x220] sm:$0xff]
      %v340 = vld [vmem:[%s257 + $0x228] sm:$0xff]
      %v341 = vld [vmem:[%s257 + $0x230] sm:$0xff]
      %v342 = vld [vmem:[%s257 + $0x238] sm:$0xff]
      %v343 = vld [vmem:[%s251] sm:$0x77]
      %v344 = vld [vmem:[%s251 + $0x8] sm:$0x77]
      %v345 = vld [vmem:[%s251 + $0x10] sm:$0x7]
      %v349 = vcombine.high %v343, %v343
      %v350 = vcombine.high %v344, %v344
      %vm353 = vcmask 523264
      %v354 = vsel %vm353, %v345, 0
      %356 = vmatprep.subr.mxu0 0.0
      %357 = vmatpush1.msra.mxu0 %v271
      %358 = vmatprep.subr.mxu0 0.0
      %359 = vmatpush1.msra.mxu0 %v272
      %360 = vmatprep.subr.mxu0 0.0
      %361 = vmatpush1.msra.mxu0 %v273
      %362 = vmatprep.subr.mxu0 0.0
      %363 = vmatpush1.msra.mxu0 %v274
      %364 = vmatprep.subr.mxu0 0.0
      %365 = vmatpush1.msra.mxu0 %v275
      %366 = vmatprep.subr.mxu0 0.0
      %367 = vmatpush1.msra.mxu0 %v276
      %368 = vmatprep.subr.mxu0 0.0
      %369 = vmatpush1.msra.mxu0 %v277
      %370 = vmatprep.subr.mxu0 0.0
      %371 = vmatpush1.msra.mxu0 %v278
      %372 = vmatprep.subr.mxu0 0.0
      %373 = vmatpush1.msra.mxu0 %v279
      %374 = vmatprep.subr.mxu0 0.0
      %375 = vmatpush1.msra.mxu0 %v280
      %376 = vmatprep.subr.mxu0 0.0
      %377 = vmatpush1.msra.mxu0 %v281
      %378 = vmatprep.subr.mxu0 0.0
      %379 = vmatpush1.msra.mxu0 %v282
      %380 = vmatprep.subr.mxu0 0.0
      %381 = vmatpush1.msra.mxu0 %v283
      %382 = vmatprep.subr.mxu0 0.0
      %383 = vmatpush1.msra.mxu0 %v284
      %384 = vmatprep.subr.mxu0 0.0
      %385 = vmatpush1.msra.mxu0 %v285
      %386 = vmatprep.subr.mxu0 0.0
      %387 = vmatpush1.msra.mxu0 %v286
      %388 = vmatprep.subr.mxu0 0.0
      %389 = vmatpush1.msra.mxu0 %v287
      %390 = vmatprep.subr.mxu0 0.0
      %391 = vmatpush1.msra.mxu0 %v288
      %392 = vmatprep.subr.mxu0 0.0
      %393 = vmatpush1.msra.mxu0 %v289
      %394 = vmatprep.subr.mxu0 0.0
      %395 = vmatpush1.msra.mxu0 %v290
      %396 = vmatprep.subr.mxu0 0.0
      %397 = vmatpush1.msra.mxu0 %v291
      %398 = vmatprep.subr.mxu0 0.0
      %399 = vmatpush1.msra.mxu0 %v292
      %400 = vmatprep.subr.mxu0 0.0
      %401 = vmatpush1.msra.mxu0 %v293
      %402 = vmatprep.subr.mxu0 0.0
      %403 = vmatpush1.msra.mxu0 %v294
      %404 = vmatprep.subr.mxu0 0.0
      %405 = vmatpush1.msra.mxu0 %v295
      %406 = vmatprep.subr.mxu0 0.0
      %407 = vmatpush1.msra.mxu0 %v296
      %408 = vmatprep.subr.mxu0 0.0
      %409 = vmatpush1.msra.mxu0 %v297
      %410 = vmatprep.subr.mxu0 0.0
      %411 = vmatpush1.msra.mxu0 %v298
      %412 = vmatprep.subr.mxu0 0.0
      %413 = vmatpush1.msra.mxu0 %v299
      %414 = vmatprep.subr.mxu0 0.0
      %415 = vmatpush1.msra.mxu0 %v300
      %416 = vmatprep.subr.mxu0 0.0
      %417 = vmatpush1.msra.mxu0 %v301
      %418 = vmatprep.subr.mxu0 0.0
      %419 = vmatpush1.msra.mxu0 %v302
      %420 = vmatprep.mubr.f32.mxu0 %v349
      %421 = vmatmul.mubr.f32.gmra.mrb[0].mxu0 %v343
      %v422 = vpop.f32.mrb[0].mxu0
      %v423 = vadd.f32 0.0, %v422
      %v424 = vpop.f32.mrb[0].mxu0
      %425 = vdwg.mxu0
      %426 = vmatprep.subr.mxu0 0.0
      %427 = vmatpush1.msra.mxu0 %v303
      %428 = vmatprep.subr.mxu0 0.0
      %429 = vmatpush1.msra.mxu0 %v304
      %430 = vmatprep.subr.mxu0 0.0
      %431 = vmatpush1.msra.mxu0 %v305
      %432 = vmatprep.subr.mxu0 0.0
      %433 = vmatpush1.msra.mxu0 %v306
      %434 = vmatprep.subr.mxu0 0.0
      %435 = vmatpush1.msra.mxu0 %v307
      %436 = vmatprep.subr.mxu0 0.0
      %437 = vmatpush1.msra.mxu0 %v308
      %438 = vmatprep.subr.mxu0 0.0
      %439 = vmatpush1.msra.mxu0 %v309
      %440 = vmatprep.subr.mxu0 0.0
      %441 = vmatpush1.msra.mxu0 %v310
      %442 = vmatprep.subr.mxu0 0.0
      %443 = vmatpush1.msra.mxu0 %v311
      %444 = vmatprep.subr.mxu0 0.0
      %445 = vmatpush1.msra.mxu0 %v312
      %446 = vmatprep.subr.mxu0 0.0
      %447 = vmatpush1.msra.mxu0 %v313
      %448 = vmatprep.subr.mxu0 0.0
      %449 = vmatpush1.msra.mxu0 %v314
      %450 = vmatprep.subr.mxu0 0.0
      %451 = vmatpush1.msra.mxu0 %v315
      %452 = vmatprep.subr.mxu0 0.0
      %453 = vmatpush1.msra.mxu0 %v316
      %454 = vmatprep.subr.mxu0 0.0
      %455 = vmatpush1.msra.mxu0 %v317
      %456 = vmatprep.subr.mxu0 0.0
      %457 = vmatpush1.msra.mxu0 %v318
      %458 = vmatprep.subr.mxu0 0.0
      %459 = vmatpush1.msra.mxu0 %v319
      %460 = vmatprep.subr.mxu0 0.0
      %461 = vmatpush1.msra.mxu0 %v320
      %462 = vmatprep.subr.mxu0 0.0
      %463 = vmatpush1.msra.mxu0 %v321
      %464 = vmatprep.subr.mxu0 0.0
      %465 = vmatpush1.msra.mxu0 %v322
      %466 = vmatprep.subr.mxu0 0.0
      %467 = vmatpush1.msra.mxu0 %v323
      %468 = vmatprep.subr.mxu0 0.0
      %469 = vmatpush1.msra.mxu0 %v324
      %470 = vmatprep.subr.mxu0 0.0
      %471 = vmatpush1.msra.mxu0 %v325
      %472 = vmatprep.subr.mxu0 0.0
      %473 = vmatpush1.msra.mxu0 %v326
      %474 = vmatprep.subr.mxu0 0.0
      %475 = vmatpush1.msra.mxu0 %v327
      %476 = vmatprep.subr.mxu0 0.0
      %477 = vmatpush1.msra.mxu0 %v328
      %478 = vmatprep.subr.mxu0 0.0
      %479 = vmatpush1.msra.mxu0 %v329
      %480 = vmatprep.subr.mxu0 0.0
      %481 = vmatpush1.msra.mxu0 %v330
      %482 = vmatprep.subr.mxu0 0.0
      %483 = vmatpush1.msra.mxu0 %v331
      %484 = vmatprep.subr.mxu0 0.0
      %485 = vmatpush1.msra.mxu0 %v332
      %486 = vmatprep.subr.mxu0 0.0
      %487 = vmatpush1.msra.mxu0 %v333
      %488 = vmatprep.subr.mxu0 0.0
      %489 = vmatpush1.msra.mxu0 %v334
      %490 = vmatprep.mubr.f32.mxu0 %v350
      %491 = vmatmul.mubr.f32.gmra.mrb[0].mxu0 %v344
      %v492 = vpop.f32.mrb[0].mxu0
      %v493 = vadd.f32 %v423, %v492
      %v494 = vpop.f32.mrb[0].mxu0
      %495 = vdwg.mxu0
      %496 = vmatprep.subr.mxu0 0.0
      %497 = vmatpush1.msra.mxu0 %v335
      %498 = vmatprep.subr.mxu0 0.0
      %499 = vmatpush1.msra.mxu0 %v336
      %500 = vmatprep.subr.mxu0 0.0
      %501 = vmatpush1.msra.mxu0 %v337
      %502 = vmatprep.subr.mxu0 0.0
      %503 = vmatpush1.msra.mxu0 %v338
      %504 = vmatprep.subr.mxu0 0.0
      %505 = vmatpush1.msra.mxu0 %v339
      %506 = vmatprep.subr.mxu0 0.0
      %507 = vmatpush1.msra.mxu0 %v340
      %508 = vmatprep.subr.mxu0 0.0
      %509 = vmatpush1.msra.mxu0 %v341
      %510 = vmatprep.subr.mxu0 0.0
      %511 = vmatpush1.msra.mxu0 %v342
      %512 = vmatprep.subr.mxu0 0.0
      %513 = vmatpush1.msra.mxu0 0.0
      %514 = vmatprep.subr.mxu0 0.0
      %515 = vmatpush1.msra.mxu0 0.0
      %516 = vmatprep.subr.mxu0 0.0
      %517 = vmatpush1.msra.mxu0 0.0
      %518 = vmatprep.subr.mxu0 0.0
      %519 = vmatpush1.msra.mxu0 0.0
      %520 = vmatprep.subr.mxu0 0.0
      %521 = vmatpush1.msra.mxu0 0.0
      %522 = vmatprep.subr.mxu0 0.0
      %523 = vmatpush1.msra.mxu0 0.0
      %524 = vmatprep.subr.mxu0 0.0
      %525 = vmatpush1.msra.mxu0 0.0
      %526 = vmatprep.subr.mxu0 0.0
      %527 = vmatpush1.msra.mxu0 0.0
      %528 = vmatprep.subr.mxu0 0.0
      %529 = vmatpush1.msra.mxu0 0.0
      %530 = vmatprep.subr.mxu0 0.0
      %531 = vmatpush1.msra.mxu0 0.0
      %532 = vmatprep.subr.mxu0 0.0
      %533 = vmatpush1.msra.mxu0 0.0
      %534 = vmatprep.subr.mxu0 0.0
      %535 = vmatpush1.msra.mxu0 0.0
      %536 = vmatprep.subr.mxu0 0.0
      %537 = vmatpush1.msra.mxu0 0.0
      %538 = vmatprep.subr.mxu0 0.0
      %539 = vmatpush1.msra.mxu0 0.0
      %540 = vmatprep.subr.mxu0 0.0
      %541 = vmatpush1.msra.mxu0 0.0
      %542 = vmatprep.subr.mxu0 0.0
      %543 = vmatpush1.msra.mxu0 0.0
      %544 = vmatprep.subr.mxu0 0.0
      %545 = vmatpush1.msra.mxu0 0.0
      %546 = vmatprep.subr.mxu0 0.0
      %547 = vmatpush1.msra.mxu0 0.0
      %548 = vmatprep.subr.mxu0 0.0
      %549 = vmatpush1.msra.mxu0 0.0
      %550 = vmatprep.subr.mxu0 0.0
      %551 = vmatpush1.msra.mxu0 0.0
      %552 = vmatprep.subr.mxu0 0.0
      %553 = vmatpush1.msra.mxu0 0.0
      %554 = vmatprep.subr.mxu0 0.0
      %555 = vmatpush1.msra.mxu0 0.0
      %556 = vmatprep.subr.mxu0 0.0
      %557 = vmatpush1.msra.mxu0 0.0
      %558 = vmatprep.subr.mxu0 0.0
      %559 = vmatpush1.msra.mxu0 0.0
      %560 = vmatprep.mubr.f32.mxu0 0.0
      %561 = vmatmul.mubr.f32.gmra.mrb[0].mxu0 %v354
      %v562 = vpop.f32.mrb[0].mxu0
      %v563 = vadd.f32 %v493, %v562
      %v564 = vpop.f32.mrb[0].mxu0
      %565 = vdwg.mxu0
      %s566 = scalar_lea.vmem %s251, 20
      %v567 = vld [vmem:[%s566] sm:$0x77]
      %v568 = vld [vmem:[%s566 + $0x8] sm:$0x77]
      %v569 = vld [vmem:[%s566 + $0x10] sm:$0x7]
      %v573 = vcombine.high %v567, %v567
      %v574 = vcombine.high %v568, %v568
      %v577 = vsel %vm353, %v569, 0
      %579 = vmatprep.subr.mxu0 0.0
      %580 = vmatpush1.msra.mxu0 %v271
      %581 = vmatprep.subr.mxu0 0.0
      %582 = vmatpush1.msra.mxu0 %v272
      %583 = vmatprep.subr.mxu0 0.0
      %584 = vmatpush1.msra.mxu0 %v273
      %585 = vmatprep.subr.mxu0 0.0
      %586 = vmatpush1.msra.mxu0 %v274
      %587 = vmatprep.subr.mxu0 0.0
      %588 = vmatpush1.msra.mxu0 %v275
      %589 = vmatprep.subr.mxu0 0.0
      %590 = vmatpush1.msra.mxu0 %v276
      %591 = vmatprep.subr.mxu0 0.0
      %592 = vmatpush1.msra.mxu0 %v277
      %593 = vmatprep.subr.mxu0 0.0
      %594 = vmatpush1.msra.mxu0 %v278
      %595 = vmatprep.subr.mxu0 0.0
      %596 = vmatpush1.msra.mxu0 %v279
      %597 = vmatprep.subr.mxu0 0.0
      %598 = vmatpush1.msra.mxu0 %v280
      %599 = vmatprep.subr.mxu0 0.0
      %600 = vmatpush1.msra.mxu0 %v281
      %601 = vmatprep.subr.mxu0 0.0
      %602 = vmatpush1.msra.mxu0 %v282
      %603 = vmatprep.subr.mxu0 0.0
      %604 = vmatpush1.msra.mxu0 %v283
      %605 = vmatprep.subr.mxu0 0.0
      %606 = vmatpush1.msra.mxu0 %v284
      %607 = vmatprep.subr.mxu0 0.0
      %608 = vmatpush1.msra.mxu0 %v285
      %609 = vmatprep.subr.mxu0 0.0
      %610 = vmatpush1.msra.mxu0 %v286
      %611 = vmatprep.subr.mxu0 0.0
      %612 = vmatpush1.msra.mxu0 %v287
      %613 = vmatprep.subr.mxu0 0.0
      %614 = vmatpush1.msra.mxu0 %v288
      %615 = vmatprep.subr.mxu0 0.0
      %616 = vmatpush1.msra.mxu0 %v289
      %617 = vmatprep.subr.mxu0 0.0
      %618 = vmatpush1.msra.mxu0 %v290
      %619 = vmatprep.subr.mxu0 0.0
      %620 = vmatpush1.msra.mxu0 %v291
      %621 = vmatprep.subr.mxu0 0.0
      %622 = vmatpush1.msra.mxu0 %v292
      %623 = vmatprep.subr.mxu0 0.0
      %624 = vmatpush1.msra.mxu0 %v293
      %625 = vmatprep.subr.mxu0 0.0
      %626 = vmatpush1.msra.mxu0 %v294
      %627 = vmatprep.subr.mxu0 0.0
      %628 = vmatpush1.msra.mxu0 %v295
      %629 = vmatprep.subr.mxu0 0.0
      %630 = vmatpush1.msra.mxu0 %v296
      %631 = vmatprep.subr.mxu0 0.0
      %632 = vmatpush1.msra.mxu0 %v297
      %633 = vmatprep.subr.mxu0 0.0
      %634 = vmatpush1.msra.mxu0 %v298
      %635 = vmatprep.subr.mxu0 0.0
      %636 = vmatpush1.msra.mxu0 %v299
      %637 = vmatprep.subr.mxu0 0.0
      %638 = vmatpush1.msra.mxu0 %v300
      %639 = vmatprep.subr.mxu0 0.0
      %640 = vmatpush1.msra.mxu0 %v301
      %641 = vmatprep.subr.mxu0 0.0
      %642 = vmatpush1.msra.mxu0 %v302
      %643 = vmatprep.mubr.f32.mxu0 %v573
      %644 = vmatmul.mubr.f32.gmra.mrb[0].mxu0 %v567
      %v645 = vpop.f32.mrb[0].mxu0
      %v646 = vadd.f32 0.0, %v645
      %v647 = vpop.f32.mrb[0].mxu0
      %648 = vdwg.mxu0
      %649 = vmatprep.subr.mxu0 0.0
      %650 = vmatpush1.msra.mxu0 %v303
      %651 = vmatprep.subr.mxu0 0.0
      %652 = vmatpush1.msra.mxu0 %v304
      %653 = vmatprep.subr.mxu0 0.0
      %654 = vmatpush1.msra.mxu0 %v305
      %655 = vmatprep.subr.mxu0 0.0
      %656 = vmatpush1.msra.mxu0 %v306
      %657 = vmatprep.subr.mxu0 0.0
      %658 = vmatpush1.msra.mxu0 %v307
      %659 = vmatprep.subr.mxu0 0.0
      %660 = vmatpush1.msra.mxu0 %v308
      %661 = vmatprep.subr.mxu0 0.0
      %662 = vmatpush1.msra.mxu0 %v309
      %663 = vmatprep.subr.mxu0 0.0
      %664 = vmatpush1.msra.mxu0 %v310
      %665 = vmatprep.subr.mxu0 0.0
      %666 = vmatpush1.msra.mxu0 %v311
      %667 = vmatprep.subr.mxu0 0.0
      %668 = vmatpush1.msra.mxu0 %v312
      %669 = vmatprep.subr.mxu0 0.0
      %670 = vmatpush1.msra.mxu0 %v313
      %671 = vmatprep.subr.mxu0 0.0
      %672 = vmatpush1.msra.mxu0 %v314
      %673 = vmatprep.subr.mxu0 0.0
      %674 = vmatpush1.msra.mxu0 %v315
      %675 = vmatprep.subr.mxu0 0.0
      %676 = vmatpush1.msra.mxu0 %v316
      %677 = vmatprep.subr.mxu0 0.0
      %678 = vmatpush1.msra.mxu0 %v317
      %679 = vmatprep.subr.mxu0 0.0
      %680 = vmatpush1.msra.mxu0 %v318
      %681 = vmatprep.subr.mxu0 0.0
      %682 = vmatpush1.msra.mxu0 %v319
      %683 = vmatprep.subr.mxu0 0.0
      %684 = vmatpush1.msra.mxu0 %v320
      %685 = vmatprep.subr.mxu0 0.0
      %686 = vmatpush1.msra.mxu0 %v321
      %687 = vmatprep.subr.mxu0 0.0
      %688 = vmatpush1.msra.mxu0 %v322
      %689 = vmatprep.subr.mxu0 0.0
      %690 = vmatpush1.msra.mxu0 %v323
      %691 = vmatprep.subr.mxu0 0.0
      %692 = vmatpush1.msra.mxu0 %v324
      %693 = vmatprep.subr.mxu0 0.0
      %694 = vmatpush1.msra.mxu0 %v325
      %695 = vmatprep.subr.mxu0 0.0
      %696 = vmatpush1.msra.mxu0 %v326
      %697 = vmatprep.subr.mxu0 0.0
      %698 = vmatpush1.msra.mxu0 %v327
      %699 = vmatprep.subr.mxu0 0.0
      %700 = vmatpush1.msra.mxu0 %v328
      %701 = vmatprep.subr.mxu0 0.0
      %702 = vmatpush1.msra.mxu0 %v329
      %703 = vmatprep.subr.mxu0 0.0
      %704 = vmatpush1.msra.mxu0 %v330
      %705 = vmatprep.subr.mxu0 0.0
      %706 = vmatpush1.msra.mxu0 %v331
      %707 = vmatprep.subr.mxu0 0.0
      %708 = vmatpush1.msra.mxu0 %v332
      %709 = vmatprep.subr.mxu0 0.0
      %710 = vmatpush1.msra.mxu0 %v333
      %711 = vmatprep.subr.mxu0 0.0
      %712 = vmatpush1.msra.mxu0 %v334
      %713 = vmatprep.mubr.f32.mxu0 %v574
      %714 = vmatmul.mubr.f32.gmra.mrb[0].mxu0 %v568
      %v715 = vpop.f32.mrb[0].mxu0
      %v716 = vadd.f32 %v646, %v715
      %v717 = vpop.f32.mrb[0].mxu0
      %718 = vdwg.mxu0
      %719 = vmatprep.subr.mxu0 0.0
      %720 = vmatpush1.msra.mxu0 %v335
      %721 = vmatprep.subr.mxu0 0.0
      %722 = vmatpush1.msra.mxu0 %v336
      %723 = vmatprep.subr.mxu0 0.0
      %724 = vmatpush1.msra.mxu0 %v337
      %725 = vmatprep.subr.mxu0 0.0
      %726 = vmatpush1.msra.mxu0 %v338
      %727 = vmatprep.subr.mxu0 0.0
      %728 = vmatpush1.msra.mxu0 %v339
      %729 = vmatprep.subr.mxu0 0.0
      %730 = vmatpush1.msra.mxu0 %v340
      %731 = vmatprep.subr.mxu0 0.0
      %732 = vmatpush1.msra.mxu0 %v341
      %733 = vmatprep.subr.mxu0 0.0
      %734 = vmatpush1.msra.mxu0 %v342
      %735 = vmatprep.subr.mxu0 0.0
      %736 = vmatpush1.msra.mxu0 0.0
      %737 = vmatprep.subr.mxu0 0.0
      %738 = vmatpush1.msra.mxu0 0.0
      %739 = vmatprep.subr.mxu0 0.0
      %740 = vmatpush1.msra.mxu0 0.0
      %741 = vmatprep.subr.mxu0 0.0
      %742 = vmatpush1.msra.mxu0 0.0
      %743 = vmatprep.subr.mxu0 0.0
      %744 = vmatpush1.msra.mxu0 0.0
      %745 = vmatprep.subr.mxu0 0.0
      %746 = vmatpush1.msra.mxu0 0.0
      %747 = vmatprep.subr.mxu0 0.0
      %748 = vmatpush1.msra.mxu0 0.0
      %749 = vmatprep.subr.mxu0 0.0
      %750 = vmatpush1.msra.mxu0 0.0
      %751 = vmatprep.subr.mxu0 0.0
      %752 = vmatpush1.msra.mxu0 0.0
      %753 = vmatprep.subr.mxu0 0.0
      %754 = vmatpush1.msra.mxu0 0.0
      %755 = vmatprep.subr.mxu0 0.0
      %756 = vmatpush1.msra.mxu0 0.0
      %757 = vmatprep.subr.mxu0 0.0
      %758 = vmatpush1.msra.mxu0 0.0
      %759 = vmatprep.subr.mxu0 0.0
      %760 = vmatpush1.msra.mxu0 0.0
      %761 = vmatprep.subr.mxu0 0.0
      %762 = vmatpush1.msra.mxu0 0.0
      %763 = vmatprep.subr.mxu0 0.0
      %764 = vmatpush1.msra.mxu0 0.0
      %765 = vmatprep.subr.mxu0 0.0
      %766 = vmatpush1.msra.mxu0 0.0
      %767 = vmatprep.subr.mxu0 0.0
      %768 = vmatpush1.msra.mxu0 0.0
      %769 = vmatprep.subr.mxu0 0.0
      %770 = vmatpush1.msra.mxu0 0.0
      %771 = vmatprep.subr.mxu0 0.0
      %772 = vmatpush1.msra.mxu0 0.0
      %773 = vmatprep.subr.mxu0 0.0
      %774 = vmatpush1.msra.mxu0 0.0
      %775 = vmatprep.subr.mxu0 0.0
      %776 = vmatpush1.msra.mxu0 0.0
      %777 = vmatprep.subr.mxu0 0.0
      %778 = vmatpush1.msra.mxu0 0.0
      %779 = vmatprep.subr.mxu0 0.0
      %780 = vmatpush1.msra.mxu0 0.0
      %781 = vmatprep.subr.mxu0 0.0
      %782 = vmatpush1.msra.mxu0 0.0
      %783 = vmatprep.mubr.f32.mxu0 0.0
      %784 = vmatmul.mubr.f32.gmra.mrb[0].mxu0 %v577
      %v785 = vpop.f32.mrb[0].mxu0
      %v786 = vadd.f32 %v716, %v785
      %v787 = vpop.f32.mrb[0].mxu0
      %788 = vdwg.mxu0
      %v789 = vmax.f32 %v563, %v786
      %s790 = scalar_lea.vmem %s251, 40
      %v791 = vld [vmem:[%s790] sm:$0x77]
      %v792 = vld [vmem:[%s790 + $0x8] sm:$0x77]
      %v793 = vld [vmem:[%s790 + $0x10] sm:$0x7]
      %v797 = vcombine.high %v791, %v791
      %v798 = vcombine.high %v792, %v792
      %v801 = vsel %vm353, %v793, 0
      %803 = vmatprep.subr.mxu0 0.0
      %804 = vmatpush1.msra.mxu0 %v271
      %805 = vmatprep.subr.mxu0 0.0
      %806 = vmatpush1.msra.mxu0 %v272
      %807 = vmatprep.subr.mxu0 0.0
      %808 = vmatpush1.msra.mxu0 %v273
      %809 = vmatprep.subr.mxu0 0.0
      %810 = vmatpush1.msra.mxu0 %v274
      %811 = vmatprep.subr.mxu0 0.0
      %812 = vmatpush1.msra.mxu0 %v275
      %813 = vmatprep.subr.mxu0 0.0
      %814 = vmatpush1.msra.mxu0 %v276
      %815 = vmatprep.subr.mxu0 0.0
      %816 = vmatpush1.msra.mxu0 %v277
      %817 = vmatprep.subr.mxu0 0.0
      %818 = vmatpush1.msra.mxu0 %v278
      %819 = vmatprep.subr.mxu0 0.0
      %820 = vmatpush1.msra.mxu0 %v279
      %821 = vmatprep.subr.mxu0 0.0
      %822 = vmatpush1.msra.mxu0 %v280
      %823 = vmatprep.subr.mxu0 0.0
      %824 = vmatpush1.msra.mxu0 %v281
      %825 = vmatprep.subr.mxu0 0.0
      %826 = vmatpush1.msra.mxu0 %v282
      %827 = vmatprep.subr.mxu0 0.0
      %828 = vmatpush1.msra.mxu0 %v283
      %829 = vmatprep.subr.mxu0 0.0
      %830 = vmatpush1.msra.mxu0 %v284
      %831 = vmatprep.subr.mxu0 0.0
      %832 = vmatpush1.msra.mxu0 %v285
      %833 = vmatprep.subr.mxu0 0.0
      %834 = vmatpush1.msra.mxu0 %v286
      %835 = vmatprep.subr.mxu0 0.0
      %836 = vmatpush1.msra.mxu0 %v287
      %837 = vmatprep.subr.mxu0 0.0
      %838 = vmatpush1.msra.mxu0 %v288
      %839 = vmatprep.subr.mxu0 0.0
      %840 = vmatpush1.msra.mxu0 %v289
      %841 = vmatprep.subr.mxu0 0.0
      %842 = vmatpush1.msra.mxu0 %v290
      %843 = vmatprep.subr.mxu0 0.0
      %844 = vmatpush1.msra.mxu0 %v291
      %845 = vmatprep.subr.mxu0 0.0
      %846 = vmatpush1.msra.mxu0 %v292
      %847 = vmatprep.subr.mxu0 0.0
      %848 = vmatpush1.msra.mxu0 %v293
      %849 = vmatprep.subr.mxu0 0.0
      %850 = vmatpush1.msra.mxu0 %v294
      %851 = vmatprep.subr.mxu0 0.0
      %852 = vmatpush1.msra.mxu0 %v295
      %853 = vmatprep.subr.mxu0 0.0
      %854 = vmatpush1.msra.mxu0 %v296
      %855 = vmatprep.subr.mxu0 0.0
      %856 = vmatpush1.msra.mxu0 %v297
      %857 = vmatprep.subr.mxu0 0.0
      %858 = vmatpush1.msra.mxu0 %v298
      %859 = vmatprep.subr.mxu0 0.0
      %860 = vmatpush1.msra.mxu0 %v299
      %861 = vmatprep.subr.mxu0 0.0
      %862 = vmatpush1.msra.mxu0 %v300
      %863 = vmatprep.subr.mxu0 0.0
      %864 = vmatpush1.msra.mxu0 %v301
      %865 = vmatprep.subr.mxu0 0.0
      %866 = vmatpush1.msra.mxu0 %v302
      %867 = vmatprep.mubr.f32.mxu0 %v797
      %868 = vmatmul.mubr.f32.gmra.mrb[0].mxu0 %v791
      %v869 = vpop.f32.mrb[0].mxu0
      %v870 = vadd.f32 0.0, %v869
      %v871 = vpop.f32.mrb[0].mxu0
      %872 = vdwg.mxu0
      %873 = vmatprep.subr.mxu0 0.0
      %874 = vmatpush1.msra.mxu0 %v303
      %875 = vmatprep.subr.mxu0 0.0
      %876 = vmatpush1.msra.mxu0 %v304
      %877 = vmatprep.subr.mxu0 0.0
      %878 = vmatpush1.msra.mxu0 %v305
      %879 = vmatprep.subr.mxu0 0.0
      %880 = vmatpush1.msra.mxu0 %v306
      %881 = vmatprep.subr.mxu0 0.0
      %882 = vmatpush1.msra.mxu0 %v307
      %883 = vmatprep.subr.mxu0 0.0
      %884 = vmatpush1.msra.mxu0 %v308
      %885 = vmatprep.subr.mxu0 0.0
      %886 = vmatpush1.msra.mxu0 %v309
      %887 = vmatprep.subr.mxu0 0.0
      %888 = vmatpush1.msra.mxu0 %v310
      %889 = vmatprep.subr.mxu0 0.0
      %890 = vmatpush1.msra.mxu0 %v311
      %891 = vmatprep.subr.mxu0 0.0
      %892 = vmatpush1.msra.mxu0 %v312
      %893 = vmatprep.subr.mxu0 0.0
      %894 = vmatpush1.msra.mxu0 %v313
      %895 = vmatprep.subr.mxu0 0.0
      %896 = vmatpush1.msra.mxu0 %v314
      %897 = vmatprep.subr.mxu0 0.0
      %898 = vmatpush1.msra.mxu0 %v315
      %899 = vmatprep.subr.mxu0 0.0
      %900 = vmatpush1.msra.mxu0 %v316
      %901 = vmatprep.subr.mxu0 0.0
      %902 = vmatpush1.msra.mxu0 %v317
      %903 = vmatprep.subr.mxu0 0.0
      %904 = vmatpush1.msra.mxu0 %v318
      %905 = vmatprep.subr.mxu0 0.0
      %906 = vmatpush1.msra.mxu0 %v319
      %907 = vmatprep.subr.mxu0 0.0
      %908 = vmatpush1.msra.mxu0 %v320
      %909 = vmatprep.subr.mxu0 0.0
      %910 = vmatpush1.msra.mxu0 %v321
      %911 = vmatprep.subr.mxu0 0.0
      %912 = vmatpush1.msra.mxu0 %v322
      %913 = vmatprep.subr.mxu0 0.0
      %914 = vmatpush1.msra.mxu0 %v323
      %915 = vmatprep.subr.mxu0 0.0
      %916 = vmatpush1.msra.mxu0 %v324
      %917 = vmatprep.subr.mxu0 0.0
      %918 = vmatpush1.msra.mxu0 %v325
      %919 = vmatprep.subr.mxu0 0.0
      %920 = vmatpush1.msra.mxu0 %v326
      %921 = vmatprep.subr.mxu0 0.0
      %922 = vmatpush1.msra.mxu0 %v327
      %923 = vmatprep.subr.mxu0 0.0
      %924 = vmatpush1.msra.mxu0 %v328
      %925 = vmatprep.subr.mxu0 0.0
      %926 = vmatpush1.msra.mxu0 %v329
      %927 = vmatprep.subr.mxu0 0.0
      %928 = vmatpush1.msra.mxu0 %v330
      %929 = vmatprep.subr.mxu0 0.0
      %930 = vmatpush1.msra.mxu0 %v331
      %931 = vmatprep.subr.mxu0 0.0
      %932 = vmatpush1.msra.mxu0 %v332
      %933 = vmatprep.subr.mxu0 0.0
      %934 = vmatpush1.msra.mxu0 %v333
      %935 = vmatprep.subr.mxu0 0.0
      %936 = vmatpush1.msra.mxu0 %v334
      %937 = vmatprep.mubr.f32.mxu0 %v798
      %938 = vmatmul.mubr.f32.gmra.mrb[0].mxu0 %v792
      %v939 = vpop.f32.mrb[0].mxu0
      %v940 = vadd.f32 %v870, %v939
      %v941 = vpop.f32.mrb[0].mxu0
      %942 = vdwg.mxu0
      %943 = vmatprep.subr.mxu0 0.0
      %944 = vmatpush1.msra.mxu0 %v335
      %945 = vmatprep.subr.mxu0 0.0
      %946 = vmatpush1.msra.mxu0 %v336
      %947 = vmatprep.subr.mxu0 0.0
      %948 = vmatpush1.msra.mxu0 %v337
      %949 = vmatprep.subr.mxu0 0.0
      %950 = vmatpush1.msra.mxu0 %v338
      %951 = vmatprep.subr.mxu0 0.0
      %952 = vmatpush1.msra.mxu0 %v339
      %953 = vmatprep.subr.mxu0 0.0
      %954 = vmatpush1.msra.mxu0 %v340
      %955 = vmatprep.subr.mxu0 0.0
      %956 = vmatpush1.msra.mxu0 %v341
      %957 = vmatprep.subr.mxu0 0.0
      %958 = vmatpush1.msra.mxu0 %v342
      %959 = vmatprep.subr.mxu0 0.0
      %960 = vmatpush1.msra.mxu0 0.0
      %961 = vmatprep.subr.mxu0 0.0
      %962 = vmatpush1.msra.mxu0 0.0
      %963 = vmatprep.subr.mxu0 0.0
      %964 = vmatpush1.msra.mxu0 0.0
      %965 = vmatprep.subr.mxu0 0.0
      %966 = vmatpush1.msra.mxu0 0.0
      %967 = vmatprep.subr.mxu0 0.0
      %968 = vmatpush1.msra.mxu0 0.0
      %969 = vmatprep.subr.mxu0 0.0
      %970 = vmatpush1.msra.mxu0 0.0
      %971 = vmatprep.subr.mxu0 0.0
      %972 = vmatpush1.msra.mxu0 0.0
      %973 = vmatprep.subr.mxu0 0.0
      %974 = vmatpush1.msra.mxu0 0.0
      %975 = vmatprep.subr.mxu0 0.0
      %976 = vmatpush1.msra.mxu0 0.0
      %977 = vmatprep.subr.mxu0 0.0
      %978 = vmatpush1.msra.mxu0 0.0
      %979 = vmatprep.subr.mxu0 0.0
      %980 = vmatpush1.msra.mxu0 0.0
      %981 = vmatprep.subr.mxu0 0.0
      %982 = vmatpush1.msra.mxu0 0.0
      %983 = vmatprep.subr.mxu0 0.0
      %984 = vmatpush1.msra.mxu0 0.0
      %985 = vmatprep.subr.mxu0 0.0
      %986 = vmatpush1.msra.mxu0 0.0
      %987 = vmatprep.subr.mxu0 0.0
      %988 = vmatpush1.msra.mxu0 0.0
      %989 = vmatprep.subr.mxu0 0.0
      %990 = vmatpush1.msra.mxu0 0.0
      %991 = vmatprep.subr.mxu0 0.0
      %992 = vmatpush1.msra.mxu0 0.0
      %993 = vmatprep.subr.mxu0 0.0
      %994 = vmatpush1.msra.mxu0 0.0
      %995 = vmatprep.subr.mxu0 0.0
      %996 = vmatpush1.msra.mxu0 0.0
      %997 = vmatprep.subr.mxu0 0.0
      %998 = vmatpush1.msra.mxu0 0.0
      %999 = vmatprep.subr.mxu0 0.0
      %1000 = vmatpush1.msra.mxu0 0.0
      %1001 = vmatprep.subr.mxu0 0.0
      %1002 = vmatpush1.msra.mxu0 0.0
      %1003 = vmatprep.subr.mxu0 0.0
      %1004 = vmatpush1.msra.mxu0 0.0
      %1005 = vmatprep.subr.mxu0 0.0
      %1006 = vmatpush1.msra.mxu0 0.0
      %1007 = vmatprep.mubr.f32.mxu0 0.0
      %1008 = vmatmul.mubr.f32.gmra.mrb[0].mxu0 %v801
      %v1009 = vpop.f32.mrb[0].mxu0
      %v1010 = vadd.f32 %v940, %v1009
      %v1011 = vpop.f32.mrb[0].mxu0
      %1012 = vdwg.mxu0
      %v1013 = vmax.f32 %v789, %v1010
      %v1014 = vld [vmem:[%s260] sm:$0x1]
      %v1016 = vlaneseq
      %v1017 = vshrl.u32 %v1016, 7
      %v1018 = vsub.s32 0, %v1017
      %v1019 = vrot.slane %v1014, %v1018
      %v1021 = vadd.f32 %v1013, %v1019
      %v1022 = vmax.f32 %v1021, 0.0
      %1023 = vst [vmem:[#allocation2] sm:$0x7] %v1022
      %v1024 = vld [vmem:[#allocation2] ss:$3 sm:$0x1]
      %s1025 = scalar_lea.vmem [#allocation2], 1
      %v1026 = vld [vmem:[%s1025] ss:$3 sm:$0x1]
      %v1027 = vmax.f32 %v1024, %v1026
      %s1028 = scalar_lea.vmem [#allocation2], 2
      %v1029 = vld [vmem:[%s1028] ss:$3 sm:$0x1]
      %v1030 = vmax.f32 %v1027, %v1029
      %1031 = vst [vmem:[%s270] sm:$0x1] %v1030
      %p1032 = scmp.lt.s32.totalorder %s20, 2
      %s1033 = scalar_select %p1032, %s20, 2
      %p1034 = scmp.lt.s32.totalorder %s19, 1
      %s1035 = scalar_select %p1034, %s19, 1
      %p1036 = scmp.lt.s32.totalorder %s21, 0
      %s1037 = scalar_select %p1036, %s21, 0
      %s1038 = sadd.s32 %s1037, %s1035
      %s1039 = smul.addr %s1033, 2
      %s1040 = sadd.s32 %s1038, %s1039
      %s1041 = scalar_lea.vmem %s3, %s1040
      // Predicated region
      $region33: #{leaves_net_forward.6} parent=31 // pred_check
        %p1042 = pneg %p137
      $region34: #{leaves_net_forward.6} parent=31 // pred_check_branch
        %1044 = sbr.rel (%p1042) target = $region36
      $region35: #{leaves_net_forward.6} parent=31 // pred_region
        _
      $region36: #{leaves_net_forward.6} parent=31 // pred_fallthru
        _
    $region32: #{leaves_net_forward.6} parent=5 // pred_fallthru
      _
    %p1045 = scmp.le.s32.totalorder 2, %s9
    // Predicated region
    $region37: #{leaves_net_forward.6} parent=5 // pred_check
      %p1046 = pneg %p1045
    $region38: #{leaves_net_forward.6} parent=5 // pred_check_branch
      %1048 = sbr.rel (%p1046) target = $region40
    $region39: #{leaves_net_forward.6} parent=5 // pred_region
      %s1049 = ssub.s32 %s9, 2
      // Predicated region
      $region41: #{leaves_net_forward.6} parent=39 // pred_check
        %p1050 = pneg %p143
      $region42: #{leaves_net_forward.6} parent=39 // pred_check_branch
        %1052 = sbr.rel (%p1050) target = $region44
      $region43: #{leaves_net_forward.6} parent=39 // pred_region
        %p1053 = scmp.lt.s32.totalorder %s23, 2
        %s1054 = scalar_select %p1053, %s23, 2
        %p1055 = scmp.lt.s32.totalorder %s22, 1
        %s1056 = scalar_select %p1055, %s22, 1
        %p1057 = scmp.lt.s32.totalorder %s24, 0
        %s1058 = scalar_select %p1057, %s24, 0
        %s1059 = sadd.s32 %s1058, %s1056
        %s1060 = smul.addr %s1054, 2
        %s1061 = sadd.s32 %s1059, %s1060
        %s1062 = scalar_lea.vmem %s3, %s1061
      $region44: #{leaves_net_forward.6} parent=39 // pred_fallthru
        _
    $region40: #{leaves_net_forward.6} parent=5 // pred_fallthru
      _
  $region6: #{leaves_net_forward.6} parent=0 // loop_footer
    %s13 = sadd.s32 1, %s9
  $region7: #{leaves_net_forward.6} parent=0 // loop_footer_branch
    %8 = sbr.rel target = $region3
  $region8: #{leaves_net_forward.6} parent=0 // loop_exit
    _

// kernel: leaves_net_forward.7
$region0: #{leaves_net_forward.7}
  #allocation0 [shape = 'u32[]', space=smem, size = 0x4, offset = 0x4, fixed_abs, tag = 'smem constant byte address 0x4 - core index']
  #allocation1 [shape = 'u32[144,128]{1,0:T(1,128)}', space=vmem, size = 0x12000, scoped, tag = 'internal scratch']
  %s0 = inlined_call_operand.vmem [shape: f32[3,2,128], index: 0, kind: input, shape index: {}]
  %s1 = inlined_call_operand.vmem [shape: f32[128,128], index: 1, kind: input, shape index: {}]
  %s2 = inlined_call_operand.vmem [shape: f32[1,128], index: 2, kind: input, shape index: {}]
  %s3 = inlined_call_operand.vmem [shape: f32[128,6], index: 3, kind: input, shape index: {}]
  %s4 = inlined_call_operand.vmem [shape: f32[1,6], index: 4, kind: input, shape index: {}]
  %s5 = inlined_call_operand.vmem [shape: f32[128,128], index: 5, kind: input, shape index: {}]
  %s6 = inlined_call_operand.vmem [shape: f32[1,128], index: 6, kind: input, shape index: {}]
  %s7 = inlined_call_operand.vmem [shape: f32[128,5], index: 7, kind: input, shape index: {}]
  %s8 = inlined_call_operand.vmem [shape: f32[1,5], index: 8, kind: input, shape index: {}]
  %s9 = inlined_call_operand.vmem [shape: f32[128,128], index: 9, kind: input, shape index: {}]
  %s10 = inlined_call_operand.vmem [shape: f32[1,128], index: 10, kind: input, shape index: {}]
  %s11 = inlined_call_operand.vmem [shape: f32[128,4], index: 11, kind: input, shape index: {}]
  %s12 = inlined_call_operand.vmem [shape: f32[1,4], index: 12, kind: input, shape index: {}]
  %s13 = inlined_call_operand.vmem [shape: f32[6,120], index: 13, kind: input, shape index: {}]
  %s14 = inlined_call_operand.vmem [shape: f32[5,120], index: 14, kind: input, shape index: {}]
  %s15 = inlined_call_operand.vmem [shape: f32[4,120], index: 15, kind: input, shape index: {}]
  %s16 = inlined_call_operand.vmem [shape: f32[120,11], index: 16, kind: input, shape index: {}]
  %s17 = inlined_call_operand.hbm [shape: f32[2,11], index: 17, kind: output, shape index: {}]
  %s18 = sld [smem:[#allocation0]]
  $region78: #{leaves_net_forward.7} parent=0
    _
  %s20 = ssub.s32 1, %s18
  %s21 = scalar_select 0, %s20, %s18
  $region1: #{leaves_net_forward.7} parent=0
    #allocation2 [shape = 'u8[1024]{0}', space=vmem, size = 0x400, scoped, tag = 'output window, operand 0, single buffered']
    #allocation3 [shape = 's32[1]{0}', space=sflag, size = 0x4, scoped, tag = 'scoped memory for leaves_net_forward.7']
    %22 = vsyncpa [#allocation3], 0
    // Predicated region
    $region2: #{leaves_net_forward.7} parent=1 // pred_check
      _
    $region3: #{leaves_net_forward.7} parent=1 // pred_check_branch
      %24 = sbr.rel (0) target = $region5
    $region4: #{leaves_net_forward.7} parent=1 // pred_region
      _
    $region5: #{leaves_net_forward.7} parent=1 // pred_fallthru
      _
    // Predicated region
    $region6: #{leaves_net_forward.7} parent=1 // pred_check
      _
    $region7: #{leaves_net_forward.7} parent=1 // pred_check_branch
      %26 = sbr.rel (0) target = $region9
    $region8: #{leaves_net_forward.7} parent=1 // pred_region
      _
    $region9: #{leaves_net_forward.7} parent=1 // pred_fallthru
      _
    // Predicated region
    $region10: #{leaves_net_forward.7} parent=1 // pred_check
      _
    $region11: #{leaves_net_forward.7} parent=1 // pred_check_branch
      %28 = sbr.rel (0) target = $region13
    $region12: #{leaves_net_forward.7} parent=1 // pred_region
      _
    $region13: #{leaves_net_forward.7} parent=1 // pred_fallthru
      _
    // Predicated region
    $region14: #{leaves_net_forward.7} parent=1 // pred_check
      _
    $region15: #{leaves_net_forward.7} parent=1 // pred_check_branch
      %30 = sbr.rel (0) target = $region17
    $region16: #{leaves_net_forward.7} parent=1 // pred_region
      _
    $region17: #{leaves_net_forward.7} parent=1 // pred_fallthru
      _
    // Predicated region
    $region18: #{leaves_net_forward.7} parent=1 // pred_check
      _
    $region19: #{leaves_net_forward.7} parent=1 // pred_check_branch
      %32 = sbr.rel (0) target = $region21
    $region20: #{leaves_net_forward.7} parent=1 // pred_region
      _
    $region21: #{leaves_net_forward.7} parent=1 // pred_fallthru
      _
    // Predicated region
    $region22: #{leaves_net_forward.7} parent=1 // pred_check
      _
    $region23: #{leaves_net_forward.7} parent=1 // pred_check_branch
      %34 = sbr.rel (0) target = $region25
    $region24: #{leaves_net_forward.7} parent=1 // pred_region
      _
    $region25: #{leaves_net_forward.7} parent=1 // pred_fallthru
      _
    // Predicated region
    $region26: #{leaves_net_forward.7} parent=1 // pred_check
      _
    $region27: #{leaves_net_forward.7} parent=1 // pred_check_branch
      %36 = sbr.rel (0) target = $region29
    $region28: #{leaves_net_forward.7} parent=1 // pred_region
      _
    $region29: #{leaves_net_forward.7} parent=1 // pred_fallthru
      _
    // Predicated region
    $region30: #{leaves_net_forward.7} parent=1 // pred_check
      _
    $region31: #{leaves_net_forward.7} parent=1 // pred_check_branch
      %38 = sbr.rel (0) target = $region33
    $region32: #{leaves_net_forward.7} parent=1 // pred_region
      _
    $region33: #{leaves_net_forward.7} parent=1 // pred_fallthru
      _
    // Predicated region
    $region34: #{leaves_net_forward.7} parent=1 // pred_check
      _
    $region35: #{leaves_net_forward.7} parent=1 // pred_check_branch
      %40 = sbr.rel (0) target = $region37
    $region36: #{leaves_net_forward.7} parent=1 // pred_region
      _
    $region37: #{leaves_net_forward.7} parent=1 // pred_fallthru
      _
    // Predicated region
    $region38: #{leaves_net_forward.7} parent=1 // pred_check
      _
    $region39: #{leaves_net_forward.7} parent=1 // pred_check_branch
      %42 = sbr.rel (0) target = $region41
    $region40: #{leaves_net_forward.7} parent=1 // pred_region
      _
    $region41: #{leaves_net_forward.7} parent=1 // pred_fallthru
      _
    // Predicated region
    $region42: #{leaves_net_forward.7} parent=1 // pred_check
      _
    $region43: #{leaves_net_forward.7} parent=1 // pred_check_branch
      %44 = sbr.rel (0) target = $region45
    $region44: #{leaves_net_forward.7} parent=1 // pred_region
      _
    $region45: #{leaves_net_forward.7} parent=1 // pred_fallthru
      _
    // Predicated region
    $region46: #{leaves_net_forward.7} parent=1 // pred_check
      _
    $region47: #{leaves_net_forward.7} parent=1 // pred_check_branch
      %46 = sbr.rel (0) target = $region49
    $region48: #{leaves_net_forward.7} parent=1 // pred_region
      _
    $region49: #{leaves_net_forward.7} parent=1 // pred_fallthru
      _
    // Predicated region
    $region50: #{leaves_net_forward.7} parent=1 // pred_check
      _
    $region51: #{leaves_net_forward.7} parent=1 // pred_check_branch
      %48 = sbr.rel (0) target = $region53
    $region52: #{leaves_net_forward.7} parent=1 // pred_region
      _
    $region53: #{leaves_net_forward.7} parent=1 // pred_fallthru
      _
    // Predicated region
    $region54: #{leaves_net_forward.7} parent=1 // pred_check
      _
    $region55: #{leaves_net_forward.7} parent=1 // pred_check_branch
      %50 = sbr.rel (0) target = $region57
    $region56: #{leaves_net_forward.7} parent=1 // pred_region
      _
    $region57: #{leaves_net_forward.7} parent=1 // pred_fallthru
      _
    // Predicated region
    $region58: #{leaves_net_forward.7} parent=1 // pred_check
      _
    $region59: #{leaves_net_forward.7} parent=1 // pred_check_branch
      %52 = sbr.rel (0) target = $region61
    $region60: #{leaves_net_forward.7} parent=1 // pred_region
      _
    $region61: #{leaves_net_forward.7} parent=1 // pred_fallthru
      _
    // Predicated region
    $region62: #{leaves_net_forward.7} parent=1 // pred_check
      _
    $region63: #{leaves_net_forward.7} parent=1 // pred_check_branch
      %54 = sbr.rel (0) target = $region65
    $region64: #{leaves_net_forward.7} parent=1 // pred_region
      _
    $region65: #{leaves_net_forward.7} parent=1 // pred_fallthru
      _
    // Predicated region
    $region66: #{leaves_net_forward.7} parent=1 // pred_check
      _
    $region67: #{leaves_net_forward.7} parent=1 // pred_check_branch
      %56 = sbr.rel (0) target = $region69
    $region68: #{leaves_net_forward.7} parent=1 // pred_region
      _
    $region69: #{leaves_net_forward.7} parent=1 // pred_fallthru
      _
    %v57 = vld [vmem:[%s0] sm:$0x3]
    %v58 = vld [vmem:[%s1] sm:$0xff]
    %v59 = vld [vmem:[%s1 + $0x8] sm:$0xff]
    %v60 = vld [vmem:[%s1 + $0x10] sm:$0xff]
    %v61 = vld [vmem:[%s1 + $0x18] sm:$0xff]
    %v62 = vld [vmem:[%s1 + $0x20] sm:$0xff]
    %v63 = vld [vmem:[%s1 + $0x28] sm:$0xff]
    %v64 = vld [vmem:[%s1 + $0x30] sm:$0xff]
    %v65 = vld [vmem:[%s1 + $0x38] sm:$0xff]
    %v66 = vld [vmem:[%s1 + $0x40] sm:$0xff]
    %v67 = vld [vmem:[%s1 + $0x48] sm:$0xff]
    %v68 = vld [vmem:[%s1 + $0x50] sm:$0xff]
    %v69 = vld [vmem:[%s1 + $0x58] sm:$0xff]
    %v70 = vld [vmem:[%s1 + $0x60] sm:$0xff]
    %v71 = vld [vmem:[%s1 + $0x68] sm:$0xff]
    %v72 = vld [vmem:[%s1 + $0x70] sm:$0xff]
    %v73 = vld [vmem:[%s1 + $0x78] sm:$0xff]
    %v74 = vld [vmem:[%s2] sm:$0x1]
    %v76 = vlaneseq
    %v77 = vshrl.u32 %v76, 7
    %v78 = vsub.s32 0, %v77
    %v79 = vrot.slane %v74, %v78
    %81 = vmatprep.subr.mxu0 0.0
    %82 = vmatpush1.msra.mxu0 %v58
    %83 = vmatprep.subr.mxu0 0.0
    %84 = vmatpush1.msra.mxu0 %v59
    %85 = vmatprep.subr.mxu0 0.0
    %86 = vmatpush1.msra.mxu0 %v60
    %87 = vmatprep.subr.mxu0 0.0
    %88 = vmatpush1.msra.mxu0 %v61
    %89 = vmatprep.subr.mxu0 0.0
    %90 = vmatpush1.msra.mxu0 %v62
    %91 = vmatprep.subr.mxu0 0.0
    %92 = vmatpush1.msra.mxu0 %v63
    %93 = vmatprep.subr.mxu0 0.0
    %94 = vmatpush1.msra.mxu0 %v64
    %95 = vmatprep.subr.mxu0 0.0
    %96 = vmatpush1.msra.mxu0 %v65
    %97 = vmatprep.subr.mxu0 0.0
    %98 = vmatpush1.msra.mxu0 %v66
    %99 = vmatprep.subr.mxu0 0.0
    %100 = vmatpush1.msra.mxu0 %v67
    %101 = vmatprep.subr.mxu0 0.0
    %102 = vmatpush1.msra.mxu0 %v68
    %103 = vmatprep.subr.mxu0 0.0
    %104 = vmatpush1.msra.mxu0 %v69
    %105 = vmatprep.subr.mxu0 0.0
    %106 = vmatpush1.msra.mxu0 %v70
    %107 = vmatprep.subr.mxu0 0.0
    %108 = vmatpush1.msra.mxu0 %v71
    %109 = vmatprep.subr.mxu0 0.0
    %110 = vmatpush1.msra.mxu0 %v72
    %111 = vmatprep.subr.mxu0 0.0
    %112 = vmatpush1.msra.mxu0 %v73
    %113 = vmatprep.subr.mxu0 0.0
    %114 = vmatpush1.msra.mxu0 0.0
    %115 = vmatprep.subr.mxu0 0.0
    %116 = vmatpush1.msra.mxu0 0.0
    %117 = vmatprep.subr.mxu0 0.0
    %118 = vmatpush1.msra.mxu0 0.0
    %119 = vmatprep.subr.mxu0 0.0
    %120 = vmatpush1.msra.mxu0 0.0
    %121 = vmatprep.subr.mxu0 0.0
    %122 = vmatpush1.msra.mxu0 0.0
    %123 = vmatprep.subr.mxu0 0.0
    %124 = vmatpush1.msra.mxu0 0.0
    %125 = vmatprep.subr.mxu0 0.0
    %126 = vmatpush1.msra.mxu0 0.0
    %127 = vmatprep.subr.mxu0 0.0
    %128 = vmatpush1.msra.mxu0 0.0
    %129 = vmatprep.subr.mxu0 0.0
    %130 = vmatpush1.msra.mxu0 0.0
    %131 = vmatprep.subr.mxu0 0.0
    %132 = vmatpush1.msra.mxu0 0.0
    %133 = vmatprep.subr.mxu0 0.0
    %134 = vmatpush1.msra.mxu0 0.0
    %135 = vmatprep.subr.mxu0 0.0
    %136 = vmatpush1.msra.mxu0 0.0
    %137 = vmatprep.subr.mxu0 0.0
    %138 = vmatpush1.msra.mxu0 0.0
    %139 = vmatprep.subr.mxu0 0.0
    %140 = vmatpush1.msra.mxu0 0.0
    %141 = vmatprep.subr.mxu0 0.0
    %142 = vmatpush1.msra.mxu0 0.0
    %143 = vmatprep.subr.mxu0 0.0
    %144 = vmatpush1.msra.mxu0 0.0
    %145 = vmatprep.mubr.f32.mxu0 0.0
    %146 = vmatmul.mubr.f32.gmra.mrb[0].mxu0 %v57
    %v147 = vpop.f32.mrb[0].mxu0
    %v148 = vadd.f32 %v79, %v147
    %v149 = vpop.f32.mrb[0].mxu0
    %150 = vdwg.mxu0
    %v151 = vmax.f32 %v148, 0.0
    %v152 = vld [vmem:[%s3] sm:$0xff]
    %v153 = vld [vmem:[%s3 + $0x8] sm:$0xff]
    %v154 = vld [vmem:[%s3 + $0x10] sm:$0xff]
    %v155 = vld [vmem:[%s3 + $0x18] sm:$0xff]
    %v156 = vld [vmem:[%s3 + $0x20] sm:$0xff]
    %v157 = vld [vmem:[%s3 + $0x28] sm:$0xff]
    %v158 = vld [vmem:[%s3 + $0x30] sm:$0xff]
    %v159 = vld [vmem:[%s3 + $0x38] sm:$0xff]
    %v160 = vld [vmem:[%s3 + $0x40] sm:$0xff]
    %v161 = vld [vmem:[%s3 + $0x48] sm:$0xff]
    %v162 = vld [vmem:[%s3 + $0x50] sm:$0xff]
    %v163 = vld [vmem:[%s3 + $0x58] sm:$0xff]
    %v164 = vld [vmem:[%s3 + $0x60] sm:$0xff]
    %v165 = vld [vmem:[%s3 + $0x68] sm:$0xff]
    %v166 = vld [vmem:[%s3 + $0x70] sm:$0xff]
    %v167 = vld [vmem:[%s3 + $0x78] sm:$0xff]
    %v168 = vld [vmem:[%s4] sm:$0x1]
    %v170 = vlaneseq
    %v171 = vshrl.u32 %v170, 7
    %v172 = vsub.s32 0, %v171
    %v173 = vrot.slane %v168, %v172
    %175 = vmatprep.subr.mxu0 0.0
    %176 = vmatpush1.msra.mxu0 %v152
    %177 = vmatprep.subr.mxu0 0.0
    %178 = vmatpush1.msra.mxu0 %v153
    %179 = vmatprep.subr.mxu0 0.0
    %180 = vmatpush1.msra.mxu0 %v154
    %181 = vmatprep.subr.mxu0 0.0
    %182 = vmatpush1.msra.mxu0 %v155
    %183 = vmatprep.subr.mxu0 0.0
    %184 = vmatpush1.msra.mxu0 %v156
    %185 = vmatprep.subr.mxu0 0.0
    %186 = vmatpush1.msra.mxu0 %v157
    %187 = vmatprep.subr.mxu0 0.0
    %188 = vmatpush1.msra.mxu0 %v158
    %189 = vmatprep.subr.mxu0 0.0
    %190 = vmatpush1.msra.mxu0 %v159
    %191 = vmatprep.subr.mxu0 0.0
    %192 = vmatpush1.msra.mxu0 %v160
    %193 = vmatprep.subr.mxu0 0.0
    %194 = vmatpush1.msra.mxu0 %v161
    %195 = vmatprep.subr.mxu0 0.0
    %196 = vmatpush1.msra.mxu0 %v162
    %197 = vmatprep.subr.mxu0 0.0
    %198 = vmatpush1.msra.mxu0 %v163
    %199 = vmatprep.subr.mxu0 0.0
    %200 = vmatpush1.msra.mxu0 %v164
    %201 = vmatprep.subr.mxu0 0.0
    %202 = vmatpush1.msra.mxu0 %v165
    %203 = vmatprep.subr.mxu0 0.0
    %204 = vmatpush1.msra.mxu0 %v166
    %205 = vmatprep.subr.mxu0 0.0
    %206 = vmatpush1.msra.mxu0 %v167
    %207 = vmatprep.subr.mxu0 0.0
    %208 = vmatpush1.msra.mxu0 0.0
    %209 = vmatprep.subr.mxu0 0.0
    %210 = vmatpush1.msra.mxu0 0.0
    %211 = vmatprep.subr.mxu0 0.0
    %212 = vmatpush1.msra.mxu0 0.0
    %213 = vmatprep.subr.mxu0 0.0
    %214 = vmatpush1.msra.mxu0 0.0
    %215 = vmatprep.subr.mxu0 0.0
    %216 = vmatpush1.msra.mxu0 0.0
    %217 = vmatprep.subr.mxu0 0.0
    %218 = vmatpush1.msra.mxu0 0.0
    %219 = vmatprep.subr.mxu0 0.0
    %220 = vmatpush1.msra.mxu0 0.0
    %221 = vmatprep.subr.mxu0 0.0
    %222 = vmatpush1.msra.mxu0 0.0
    %223 = vmatprep.subr.mxu0 0.0
    %224 = vmatpush1.msra.mxu0 0.0
    %225 = vmatprep.subr.mxu0 0.0
    %226 = vmatpush1.msra.mxu0 0.0
    %227 = vmatprep.subr.mxu0 0.0
    %228 = vmatpush1.msra.mxu0 0.0
    %229 = vmatprep.subr.mxu0 0.0
    %230 = vmatpush1.msra.mxu0 0.0
    %231 = vmatprep.subr.mxu0 0.0
    %232 = vmatpush1.msra.mxu0 0.0
    %233 = vmatprep.subr.mxu0 0.0
    %234 = vmatpush1.msra.mxu0 0.0
    %235 = vmatprep.subr.mxu0 0.0
    %236 = vmatpush1.msra.mxu0 0.0
    %237 = vmatprep.subr.mxu0 0.0
    %238 = vmatpush1.msra.mxu0 0.0
    %239 = vmatprep.mubr.f32.mxu0 0.0
    %240 = vmatmul.mubr.f32.gmra.mrb[0].mxu0 %v151
    %v241 = vpop.f32.mrb[0].mxu0
    %v242 = vadd.f32 %v173, %v241
    %v243 = vpop.f32.mrb[0].mxu0
    %244 = vdwg.mxu0
    %vm245 = vcmask 41984
    %v246 = vsel %vm245, %v242, -inf
    %247 = vmax.xlane.f32.xlu0 %v246
    %v248 = vpop.xlane.xlu0 %247
    %v249 = vsub.f32 %v242, %v248
    %v250 = vmul.f32 %v249, 1.442695
    %v251 = vpow.pop %v250
    %v252 = vsel %vm245, %v251, 0.0
    %253 = vadd.xlane.f32.xlu0 %v252
    %v254 = vpop.xlane.xlu0 %253
    %v255 = vrcp.pop %v254
    %v256 = vmul.f32 %v254, %v255
    %v257 = vsub.f32 2.0, %v256
    %v258 = vmul.f32 %v255, %v257
    %v259 = vmul.f32 %v251, %v258
    %s260 = scalar_lea.vmem %s0, 2
    %v261 = vld [vmem:[%s260] sm:$0x3]
    %v262 = vld [vmem:[%s5] sm:$0xff]
    %v263 = vld [vmem:[%s5 + $0x8] sm:$0xff]
    %v264 = vld [vmem:[%s5 + $0x10] sm:$0xff]
    %v265 = vld [vmem:[%s5 + $0x18] sm:$0xff]
    %v266 = vld [vmem:[%s5 + $0x20] sm:$0xff]
    %v267 = vld [vmem:[%s5 + $0x28] sm:$0xff]
    %v268 = vld [vmem:[%s5 + $0x30] sm:$0xff]
    %v269 = vld [vmem:[%s5 + $0x38] sm:$0xff]
    %v270 = vld [vmem:[%s5 + $0x40] sm:$0xff]
    %v271 = vld [vmem:[%s5 + $0x48] sm:$0xff]
    %v272 = vld [vmem:[%s5 + $0x50] sm:$0xff]
    %v273 = vld [vmem:[%s5 + $0x58] sm:$0xff]
    %v274 = vld [vmem:[%s5 + $0x60] sm:$0xff]
    %v275 = vld [vmem:[%s5 + $0x68] sm:$0xff]
    %v276 = vld [vmem:[%s5 + $0x70] sm:$0xff]
    %v277 = vld [vmem:[%s5 + $0x78] sm:$0xff]
    %v278 = vld [vmem:[%s6] sm:$0x1]
    %v280 = vlaneseq
    %v281 = vshrl.u32 %v280, 7
    %v282 = vsub.s32 0, %v281
    %v283 = vrot.slane %v278, %v282
    %285 = vmatprep.subr.mxu0 0.0
    %286 = vmatpush1.msra.mxu0 %v262
    %287 = vmatprep.subr.mxu0 0.0
    %288 = vmatpush1.msra.mxu0 %v263
    %289 = vmatprep.subr.mxu0 0.0
    %290 = vmatpush1.msra.mxu0 %v264
    %291 = vmatprep.subr.mxu0 0.0
    %292 = vmatpush1.msra.mxu0 %v265
    %293 = vmatprep.subr.mxu0 0.0
    %294 = vmatpush1.msra.mxu0 %v266
    %295 = vmatprep.subr.mxu0 0.0
    %296 = vmatpush1.msra.mxu0 %v267
    %297 = vmatprep.subr.mxu0 0.0
    %298 = vmatpush1.msra.mxu0 %v268
    %299 = vmatprep.subr.mxu0 0.0
    %300 = vmatpush1.msra.mxu0 %v269
    %301 = vmatprep.subr.mxu0 0.0
    %302 = vmatpush1.msra.mxu0 %v270
    %303 = vmatprep.subr.mxu0 0.0
    %304 = vmatpush1.msra.mxu0 %v271
    %305 = vmatprep.subr.mxu0 0.0
    %306 = vmatpush1.msra.mxu0 %v272
    %307 = vmatprep.subr.mxu0 0.0
    %308 = vmatpush1.msra.mxu0 %v273
    %309 = vmatprep.subr.mxu0 0.0
    %310 = vmatpush1.msra.mxu0 %v274
    %311 = vmatprep.subr.mxu0 0.0
    %312 = vmatpush1.msra.mxu0 %v275
    %313 = vmatprep.subr.mxu0 0.0
    %314 = vmatpush1.msra.mxu0 %v276
    %315 = vmatprep.subr.mxu0 0.0
    %316 = vmatpush1.msra.mxu0 %v277
    %317 = vmatprep.subr.mxu0 0.0
    %318 = vmatpush1.msra.mxu0 0.0
    %319 = vmatprep.subr.mxu0 0.0
    %320 = vmatpush1.msra.mxu0 0.0
    %321 = vmatprep.subr.mxu0 0.0
    %322 = vmatpush1.msra.mxu0 0.0
    %323 = vmatprep.subr.mxu0 0.0
    %324 = vmatpush1.msra.mxu0 0.0
    %325 = vmatprep.subr.mxu0 0.0
    %326 = vmatpush1.msra.mxu0 0.0
    %327 = vmatprep.subr.mxu0 0.0
    %328 = vmatpush1.msra.mxu0 0.0
    %329 = vmatprep.subr.mxu0 0.0
    %330 = vmatpush1.msra.mxu0 0.0
    %331 = vmatprep.subr.mxu0 0.0
    %332 = vmatpush1.msra.mxu0 0.0
    %333 = vmatprep.subr.mxu0 0.0
    %334 = vmatpush1.msra.mxu0 0.0
    %335 = vmatprep.subr.mxu0 0.0
    %336 = vmatpush1.msra.mxu0 0.0
    %337 = vmatprep.subr.mxu0 0.0
    %338 = vmatpush1.msra.mxu0 0.0
    %339 = vmatprep.subr.mxu0 0.0
    %340 = vmatpush1.msra.mxu0 0.0
    %341 = vmatprep.subr.mxu0 0.0
    %342 = vmatpush1.msra.mxu0 0.0
    %343 = vmatprep.subr.mxu0 0.0
    %344 = vmatpush1.msra.mxu0 0.0
    %345 = vmatprep.subr.mxu0 0.0
    %346 = vmatpush1.msra.mxu0 0.0
    %347 = vmatprep.subr.mxu0 0.0
    %348 = vmatpush1.msra.mxu0 0.0
    %349 = vmatprep.mubr.f32.mxu0 0.0
    %350 = vmatmul.mubr.f32.gmra.mrb[0].mxu0 %v261
    %v351 = vpop.f32.mrb[0].mxu0
    %v352 = vadd.f32 %v283, %v351
    %v353 = vpop.f32.mrb[0].mxu0
    %354 = vdwg.mxu0
    %v355 = vmax.f32 %v352, 0.0
    %v356 = vld [vmem:[%s7] sm:$0xff]
    %v357 = vld [vmem:[%s7 + $0x8] sm:$0xff]
    %v358 = vld [vmem:[%s7 + $0x10] sm:$0xff]
    %v359 = vld [vmem:[%s7 + $0x18] sm:$0xff]
    %v360 = vld [vmem:[%s7 + $0x20] sm:$0xff]
    %v361 = vld [vmem:[%s7 + $0x28] sm:$0xff]
    %v362 = vld [vmem:[%s7 + $0x30] sm:$0xff]
    %v363 = vld [vmem:[%s7 + $0x38] sm:$0xff]
    %v364 = vld [vmem:[%s7 + $0x40] sm:$0xff]
    %v365 = vld [vmem:[%s7 + $0x48] sm:$0xff]
    %v366 = vld [vmem:[%s7 + $0x50] sm:$0xff]
    %v367 = vld [vmem:[%s7 + $0x58] sm:$0xff]
    %v368 = vld [vmem:[%s7 + $0x60] sm:$0xff]
    %v369 = vld [vmem:[%s7 + $0x68] sm:$0xff]
    %v370 = vld [vmem:[%s7 + $0x70] sm:$0xff]
    %v371 = vld [vmem:[%s7 + $0x78] sm:$0xff]
    %v372 = vld [vmem:[%s8] sm:$0x1]
    %v374 = vlaneseq
    %v375 = vshrl.u32 %v374, 7
    %v376 = vsub.s32 0, %v375
    %v377 = vrot.slane %v372, %v376
    %379 = vmatprep.subr.mxu0 0.0
    %380 = vmatpush1.msra.mxu0 %v356
    %381 = vmatprep.subr.mxu0 0.0
    %382 = vmatpush1.msra.mxu0 %v357
    %383 = vmatprep.subr.mxu0 0.0
    %384 = vmatpush1.msra.mxu0 %v358
    %385 = vmatprep.subr.mxu0 0.0
    %386 = vmatpush1.msra.mxu0 %v359
    %387 = vmatprep.subr.mxu0 0.0
    %388 = vmatpush1.msra.mxu0 %v360
    %389 = vmatprep.subr.mxu0 0.0
    %390 = vmatpush1.msra.mxu0 %v361
    %391 = vmatprep.subr.mxu0 0.0
    %392 = vmatpush1.msra.mxu0 %v362
    %393 = vmatprep.subr.mxu0 0.0
    %394 = vmatpush1.msra.mxu0 %v363
    %395 = vmatprep.subr.mxu0 0.0
    %396 = vmatpush1.msra.mxu0 %v364
    %397 = vmatprep.subr.mxu0 0.0
    %398 = vmatpush1.msra.mxu0 %v365
    %399 = vmatprep.subr.mxu0 0.0
    %400 = vmatpush1.msra.mxu0 %v366
    %401 = vmatprep.subr.mxu0 0.0
    %402 = vmatpush1.msra.mxu0 %v367
    %403 = vmatprep.subr.mxu0 0.0
    %404 = vmatpush1.msra.mxu0 %v368
    %405 = vmatprep.subr.mxu0 0.0
    %406 = vmatpush1.msra.mxu0 %v369
    %407 = vmatprep.subr.mxu0 0.0
    %408 = vmatpush1.msra.mxu0 %v370
    %409 = vmatprep.subr.mxu0 0.0
    %410 = vmatpush1.msra.mxu0 %v371
    %411 = vmatprep.subr.mxu0 0.0
    %412 = vmatpush1.msra.mxu0 0.0
    %413 = vmatprep.subr.mxu0 0.0
    %414 = vmatpush1.msra.mxu0 0.0
    %415 = vmatprep.subr.mxu0 0.0
    %416 = vmatpush1.msra.mxu0 0.0
    %417 = vmatprep.subr.mxu0 0.0
    %418 = vmatpush1.msra.mxu0 0.0
    %419 = vmatprep.subr.mxu0 0.0
    %420 = vmatpush1.msra.mxu0 0.0
    %421 = vmatprep.subr.mxu0 0.0
    %422 = vmatpush1.msra.mxu0 0.0
    %423 = vmatprep.subr.mxu0 0.0
    %424 = vmatpush1.msra.mxu0 0.0
    %425 = vmatprep.subr.mxu0 0.0
    %426 = vmatpush1.msra.mxu0 0.0
    %427 = vmatprep.subr.mxu0 0.0
    %428 = vmatpush1.msra.mxu0 0.0
    %429 = vmatprep.subr.mxu0 0.0
    %430 = vmatpush1.msra.mxu0 0.0
    %431 = vmatprep.subr.mxu0 0.0
    %432 = vmatpush1.msra.mxu0 0.0
    %433 = vmatprep.subr.mxu0 0.0
    %434 = vmatpush1.msra.mxu0 0.0
    %435 = vmatprep.subr.mxu0 0.0
    %436 = vmatpush1.msra.mxu0 0.0
    %437 = vmatprep.subr.mxu0 0.0
    %438 = vmatpush1.msra.mxu0 0.0
    %439 = vmatprep.subr.mxu0 0.0
    %440 = vmatpush1.msra.mxu0 0.0
    %441 = vmatprep.subr.mxu0 0.0
    %442 = vmatpush1.msra.mxu0 0.0
    %443 = vmatprep.mubr.f32.mxu0 0.0
    %444 = vmatmul.mubr.f32.gmra.mrb[0].mxu0 %v355
    %v445 = vpop.f32.mrb[0].mxu0
    %v446 = vadd.f32 %v377, %v445
    %v447 = vpop.f32.mrb[0].mxu0
    %448 = vdwg.mxu0
    %vm449 = vcmask 33792
    %v450 = vsel %vm449, %v446, -inf
    %451 = vmax.xlane.f32.xlu0 %v450
    %v452 = vpop.xlane.xlu0 %451
    %v453 = vsub.f32 %v446, %v452
    %v454 = vmul.f32 %v453, 1.442695
    %v455 = vpow.pop %v454
    %v456 = vsel %vm449, %v455, 0.0
    %457 = vadd.xlane.f32.xlu0 %v456
    %v458 = vpop.xlane.xlu0 %457
    %v459 = vrcp.pop %v458
    %v460 = vmul.f32 %v458, %v459
    %v461 = vsub.f32 2.0, %v460
    %v462 = vmul.f32 %v459, %v461
    %v463 = vmul.f32 %v455, %v462
    %s464 = scalar_lea.vmem %s0, 4
    %v465 = vld [vmem:[%s464] sm:$0x3]
    %v466 = vld [vmem:[%s9] sm:$0xff]
    %v467 = vld [vmem:[%s9 + $0x8] sm:$0xff]
    %v468 = vld [vmem:[%s9 + $0x10] sm:$0xff]
    %v469 = vld [vmem:[%s9 + $0x18] sm:$0xff]
    %v470 = vld [vmem:[%s9 + $0x20] sm:$0xff]
    %v471 = vld [vmem:[%s9 + $0x28] sm:$0xff]
    %v472 = vld [vmem:[%s9 + $0x30] sm:$0xff]
    %v473 = vld [vmem:[%s9 + $0x38] sm:$0xff]
    %v474 = vld [vmem:[%s9 + $0x40] sm:$0xff]
    %v475 = vld [vmem:[%s9 + $0x48] sm:$0xff]
    %v476 = vld [vmem:[%s9 + $0x50] sm:$0xff]
    %v477 = vld [vmem:[%s9 + $0x58] sm:$0xff]
    %v478 = vld [vmem:[%s9 + $0x60] sm:$0xff]
    %v479 = vld [vmem:[%s9 + $0x68] sm:$0xff]
    %v480 = vld [vmem:[%s9 + $0x70] sm:$0xff]
    %v481 = vld [vmem:[%s9 + $0x78] sm:$0xff]
    %v482 = vld [vmem:[%s10] sm:$0x1]
    %v484 = vlaneseq
    %v485 = vshrl.u32 %v484, 7
    %v486 = vsub.s32 0, %v485
    %v487 = vrot.slane %v482, %v486
    %489 = vmatprep.subr.mxu0 0.0
    %490 = vmatpush1.msra.mxu0 %v466
    %491 = vmatprep.subr.mxu0 0.0
    %492 = vmatpush1.msra.mxu0 %v467
    %493 = vmatprep.subr.mxu0 0.0
    %494 = vmatpush1.msra.mxu0 %v468
    %495 = vmatprep.subr.mxu0 0.0
    %496 = vmatpush1.msra.mxu0 %v469
    %497 = vmatprep.subr.mxu0 0.0
    %498 = vmatpush1.msra.mxu0 %v470
    %499 = vmatprep.subr.mxu0 0.0
    %500 = vmatpush1.msra.mxu0 %v471
    %501 = vmatprep.subr.mxu0 0.0
    %502 = vmatpush1.msra.mxu0 %v472
    %503 = vmatprep.subr.mxu0 0.0
    %504 = vmatpush1.msra.mxu0 %v473
    %505 = vmatprep.subr.mxu0 0.0
    %506 = vmatpush1.msra.mxu0 %v474
    %507 = vmatprep.subr.mxu0 0.0
    %508 = vmatpush1.msra.mxu0 %v475
    %509 = vmatprep.subr.mxu0 0.0
    %510 = vmatpush1.msra.mxu0 %v476
    %511 = vmatprep.subr.mxu0 0.0
    %512 = vmatpush1.msra.mxu0 %v477
    %513 = vmatprep.subr.mxu0 0.0
    %514 = vmatpush1.msra.mxu0 %v478
    %515 = vmatprep.subr.mxu0 0.0
    %516 = vmatpush1.msra.mxu0 %v479
    %517 = vmatprep.subr.mxu0 0.0
    %518 = vmatpush1.msra.mxu0 %v480
    %519 = vmatprep.subr.mxu0 0.0
    %520 = vmatpush1.msra.mxu0 %v481
    %521 = vmatprep.subr.mxu0 0.0
    %522 = vmatpush1.msra.mxu0 0.0
    %523 = vmatprep.subr.mxu0 0.0
    %524 = vmatpush1.msra.mxu0 0.0
    %525 = vmatprep.subr.mxu0 0.0
    %526 = vmatpush1.msra.mxu0 0.0
    %527 = vmatprep.subr.mxu0 0.0
    %528 = vmatpush1.msra.mxu0 0.0
    %529 = vmatprep.subr.mxu0 0.0
    %530 = vmatpush1.msra.mxu0 0.0
    %531 = vmatprep.subr.mxu0 0.0
    %532 = vmatpush1.msra.mxu0 0.0
    %533 = vmatprep.subr.mxu0 0.0
    %534 = vmatpush1.msra.mxu0 0.0
    %535 = vmatprep.subr.mxu0 0.0
    %536 = vmatpush1.msra.mxu0 0.0
    %537 = vmatprep.subr.mxu0 0.0
    %538 = vmatpush1.msra.mxu0 0.0
    %539 = vmatprep.subr.mxu0 0.0
    %540 = vmatpush1.msra.mxu0 0.0
    %541 = vmatprep.subr.mxu0 0.0
    %542 = vmatpush1.msra.mxu0 0.0
    %543 = vmatprep.subr.mxu0 0.0
    %544 = vmatpush1.msra.mxu0 0.0
    %545 = vmatprep.subr.mxu0 0.0
    %546 = vmatpush1.msra.mxu0 0.0
    %547 = vmatprep.subr.mxu0 0.0
    %548 = vmatpush1.msra.mxu0 0.0
    %549 = vmatprep.subr.mxu0 0.0
    %550 = vmatpush1.msra.mxu0 0.0
    %551 = vmatprep.subr.mxu0 0.0
    %552 = vmatpush1.msra.mxu0 0.0
    %553 = vmatprep.mubr.f32.mxu0 0.0
    %554 = vmatmul.mubr.f32.gmra.mrb[0].mxu0 %v465
    %v555 = vpop.f32.mrb[0].mxu0
    %v556 = vadd.f32 %v487, %v555
    %v557 = vpop.f32.mrb[0].mxu0
    %558 = vdwg.mxu0
    %v559 = vmax.f32 %v556, 0.0
    %v560 = vld [vmem:[%s11] sm:$0xff]
    %v561 = vld [vmem:[%s11 + $0x8] sm:$0xff]
    %v562 = vld [vmem:[%s11 + $0x10] sm:$0xff]
    %v563 = vld [vmem:[%s11 + $0x18] sm:$0xff]
    %v564 = vld [vmem:[%s11 + $0x20] sm:$0xff]
    %v565 = vld [vmem:[%s11 + $0x28] sm:$0xff]
    %v566 = vld [vmem:[%s11 + $0x30] sm:$0xff]
    %v567 = vld [vmem:[%s11 + $0x38] sm:$0xff]
    %v568 = vld [vmem:[%s11 + $0x40] sm:$0xff]
    %v569 = vld [vmem:[%s11 + $0x48] sm:$0xff]
    %v570 = vld [vmem:[%s11 + $0x50] sm:$0xff]
    %v571 = vld [vmem:[%s11 + $0x58] sm:$0xff]
    %v572 = vld [vmem:[%s11 + $0x60] sm:$0xff]
    %v573 = vld [vmem:[%s11 + $0x68] sm:$0xff]
    %v574 = vld [vmem:[%s11 + $0x70] sm:$0xff]
    %v575 = vld [vmem:[%s11 + $0x78] sm:$0xff]
    %v576 = vld [vmem:[%s12] sm:$0x1]
    %v578 = vlaneseq
    %v579 = vshrl.u32 %v578, 7
    %v580 = vsub.s32 0, %v579
    %v581 = vrot.slane %v576, %v580
    %583 = vmatprep.subr.mxu0 0.0
    %584 = vmatpush1.msra.mxu0 %v560
    %585 = vmatprep.subr.mxu0 0.0
    %586 = vmatpush1.msra.mxu0 %v561
    %587 = vmatprep.subr.mxu0 0.0
    %588 = vmatpush1.msra.mxu0 %v562
    %589 = vmatprep.subr.mxu0 0.0
    %590 = vmatpush1.msra.mxu0 %v563
    %591 = vmatprep.subr.mxu0 0.0
    %592 = vmatpush1.msra.mxu0 %v564
    %593 = vmatprep.subr.mxu0 0.0
    %594 = vmatpush1.msra.mxu0 %v565
    %595 = vmatprep.subr.mxu0 0.0
    %596 = vmatpush1.msra.mxu0 %v566
    %597 = vmatprep.subr.mxu0 0.0
    %598 = vmatpush1.msra.mxu0 %v567
    %599 = vmatprep.subr.mxu0 0.0
    %600 = vmatpush1.msra.mxu0 %v568
    %601 = vmatprep.subr.mxu0 0.0
    %602 = vmatpush1.msra.mxu0 %v569
    %603 = vmatprep.subr.mxu0 0.0
    %604 = vmatpush1.msra.mxu0 %v570
    %605 = vmatprep.subr.mxu0 0.0
    %606 = vmatpush1.msra.mxu0 %v571
    %607 = vmatprep.subr.mxu0 0.0
    %608 = vmatpush1.msra.mxu0 %v572
    %609 = vmatprep.subr.mxu0 0.0
    %610 = vmatpush1.msra.mxu0 %v573
    %611 = vmatprep.subr.mxu0 0.0
    %612 = vmatpush1.msra.mxu0 %v574
    %613 = vmatprep.subr.mxu0 0.0
    %614 = vmatpush1.msra.mxu0 %v575
    %615 = vmatprep.subr.mxu0 0.0
    %616 = vmatpush1.msra.mxu0 0.0
    %617 = vmatprep.subr.mxu0 0.0
    %618 = vmatpush1.msra.mxu0 0.0
    %619 = vmatprep.subr.mxu0 0.0
    %620 = vmatpush1.msra.mxu0 0.0
    %621 = vmatprep.subr.mxu0 0.0
    %622 = vmatpush1.msra.mxu0 0.0
    %623 = vmatprep.subr.mxu0 0.0
    %624 = vmatpush1.msra.mxu0 0.0
    %625 = vmatprep.subr.mxu0 0.0
    %626 = vmatpush1.msra.mxu0 0.0
    %627 = vmatprep.subr.mxu0 0.0
    %628 = vmatpush1.msra.mxu0 0.0
    %629 = vmatprep.subr.mxu0 0.0
    %630 = vmatpush1.msra.mxu0 0.0
    %631 = vmatprep.subr.mxu0 0.0
    %632 = vmatpush1.msra.mxu0 0.0
    %633 = vmatprep.subr.mxu0 0.0
    %634 = vmatpush1.msra.mxu0 0.0
    %635 = vmatprep.subr.mxu0 0.0
    %636 = vmatpush1.msra.mxu0 0.0
    %637 = vmatprep.subr.mxu0 0.0
    %638 = vmatpush1.msra.mxu0 0.0
    %639 = vmatprep.subr.mxu0 0.0
    %640 = vmatpush1.msra.mxu0 0.0
    %641 = vmatprep.subr.mxu0 0.0
    %642 = vmatpush1.msra.mxu0 0.0
    %643 = vmatprep.subr.mxu0 0.0
    %644 = vmatpush1.msra.mxu0 0.0
    %645 = vmatprep.subr.mxu0 0.0
    %646 = vmatpush1.msra.mxu0 0.0
    %647 = vmatprep.mubr.f32.mxu0 0.0
    %648 = vmatmul.mubr.f32.gmra.mrb[0].mxu0 %v559
    %v649 = vpop.f32.mrb[0].mxu0
    %v650 = vadd.f32 %v581, %v649
    %v651 = vpop.f32.mrb[0].mxu0
    %652 = vdwg.mxu0
    %vm653 = vcmask 25600
    %v654 = vsel %vm653, %v650, -inf
    %655 = vmax.xlane.f32.xlu0 %v654
    %v656 = vpop.xlane.xlu0 %655
    %v657 = vsub.f32 %v650, %v656
    %v658 = vmul.f32 %v657, 1.442695
    %v659 = vpow.pop %v658
    %v660 = vsel %vm653, %v659, 0.0
    %661 = vadd.xlane.f32.xlu0 %v660
    %v662 = vpop.xlane.xlu0 %661
    %v663 = vrcp.pop %v662
    %v664 = vmul.f32 %v662, %v663
    %v665 = vsub.f32 2.0, %v664
    %v666 = vmul.f32 %v663, %v665
    %v667 = vmul.f32 %v659, %v666
    %v668 = vld [vmem:[%s13] sm:$0x3f]
    %vm669 = vcmask 48128
    %v671 = vsel %vm669, %v259, 0
    %vm673 = vcmask 1045504
    %v675 = vsel %vm673, %v668, 0
    %677 = vmatprep.subr.mxu0 0.0
    %678 = vmatpush1.msra.mxu0 %v675
    %679 = vmatprep.subr.mxu0 0.0
    %680 = vmatpush1.msra.mxu0 0.0
    %681 = vmatprep.subr.mxu0 0.0
    %682 = vmatpush1.msra.mxu0 0.0
    %683 = vmatprep.subr.mxu0 0.0
    %684 = vmatpush1.msra.mxu0 0.0
    %685 = vmatprep.subr.mxu0 0.0
    %686 = vmatpush1.msra.mxu0 0.0
    %687 = vmatprep.subr.mxu0 0.0
    %688 = vmatpush1.msra.mxu0 0.0
    %689 = vmatprep.subr.mxu0 0.0
    %690 = vmatpush1.msra.mxu0 0.0
    %691 = vmatprep.subr.mxu0 0.0
    %692 = vmatpush1.msra.mxu0 0.0
    %693 = vmatprep.subr.mxu0 0.0
    %694 = vmatpush1.msra.mxu0 0.0
    %695 = vmatprep.subr.mxu0 0.0
    %696 = vmatpush1.msra.mxu0 0.0
    %697 = vmatprep.subr.mxu0 0.0
    %698 = vmatpush1.msra.mxu0 0.0
    %699 = vmatprep.subr.mxu0 0.0
    %700 = vmatpush1.msra.mxu0 0.0
    %701 = vmatprep.subr.mxu0 0.0
    %702 = vmatpush1.msra.mxu0 0.0
    %703 = vmatprep.subr.mxu0 0.0
    %704 = vmatpush1.msra.mxu0 0.0
    %705 = vmatprep.subr.mxu0 0.0
    %706 = vmatpush1.msra.mxu0 0.0
    %707 = vmatprep.subr.mxu0 0.0
    %708 = vmatpush1.msra.mxu0 0.0
    %709 = vmatprep.subr.mxu0 0.0
    %710 = vmatpush1.msra.mxu0 0.0
    %711 = vmatprep.subr.mxu0 0.0
    %712 = vmatpush1.msra.mxu0 0.0
    %713 = vmatprep.subr.mxu0 0.0
    %714 = vmatpush1.msra.mxu0 0.0
    %715 = vmatprep.subr.mxu0 0.0
    %716 = vmatpush1.msra.mxu0 0.0
    %717 = vmatprep.subr.mxu0 0.0
    %718 = vmatpush1.msra.mxu0 0.0
    %719 = vmatprep.subr.mxu0 0.0
    %720 = vmatpush1.msra.mxu0 0.0
    %721 = vmatprep.subr.mxu0 0.0
    %722 = vmatpush1.msra.mxu0 0.0
    %723 = vmatprep.subr.mxu0 0.0
    %724 = vmatpush1.msra.mxu0 0.0
    %725 = vmatprep.subr.mxu0 0.0
    %726 = vmatpush1.msra.mxu0 0.0
    %727 = vmatprep.subr.mxu0 0.0
    %728 = vmatpush1.msra.mxu0 0.0
    %729 = vmatprep.subr.mxu0 0.0
    %730 = vmatpush1.msra.mxu0 0.0
    %731 = vmatprep.subr.mxu0 0.0
    %732 = vmatpush1.msra.mxu0 0.0
    %733 = vmatprep.subr.mxu0 0.0
    %734 = vmatpush1.msra.mxu0 0.0
    %735 = vmatprep.subr.mxu0 0.0
    %736 = vmatpush1.msra.mxu0 0.0
    %737 = vmatprep.subr.mxu0 0.0
    %738 = vmatpush1.msra.mxu0 0.0
    %739 = vmatprep.subr.mxu0 0.0
    %740 = vmatpush1.msra.mxu0 0.0
    %741 = vmatprep.mubr.f32.mxu0 0.0
    %742 = vmatmul.mubr.f32.gmra.mrb[0].mxu0 %v671
    %v743 = vpop.f32.mrb[0].mxu0
    %v744 = vadd.f32 0.0, %v743
    %v745 = vpop.f32.mrb[0].mxu0
    %746 = vdwg.mxu0
    %v747 = vld [vmem:[%s14] sm:$0x1f]
    %vm748 = vcmask 39936
    %v750 = vsel %vm748, %v463, 0
    %vm752 = vcmask 1044480
    %v754 = vsel %vm752, %v747, 0
    %756 = vmatprep.subr.mxu0 0.0
    %757 = vmatpush1.msra.mxu0 %v754
    %758 = vmatprep.subr.mxu0 0.0
    %759 = vmatpush1.msra.mxu0 0.0
    %760 = vmatprep.subr.mxu0 0.0
    %761 = vmatpush1.msra.mxu0 0.0
    %762 = vmatprep.subr.mxu0 0.0
    %763 = vmatpush1.msra.mxu0 0.0
    %764 = vmatprep.subr.mxu0 0.0
    %765 = vmatpush1.msra.mxu0 0.0
    %766 = vmatprep.subr.mxu0 0.0
    %767 = vmatpush1.msra.mxu0 0.0
    %768 = vmatprep.subr.mxu0 0.0
    %769 = vmatpush1.msra.mxu0 0.0
    %770 = vmatprep.subr.mxu0 0.0
    %771 = vmatpush1.msra.mxu0 0.0
    %772 = vmatprep.subr.mxu0 0.0
    %773 = vmatpush1.msra.mxu0 0.0
    %774 = vmatprep.subr.mxu0 0.0
    %775 = vmatpush1.msra.mxu0 0.0
    %776 = vmatprep.subr.mxu0 0.0
    %777 = vmatpush1.msra.mxu0 0.0
    %778 = vmatprep.subr.mxu0 0.0
    %779 = vmatpush1.msra.mxu0 0.0
    %780 = vmatprep.subr.mxu0 0.0
    %781 = vmatpush1.msra.mxu0 0.0
    %782 = vmatprep.subr.mxu0 0.0
    %783 = vmatpush1.msra.mxu0 0.0
    %784 = vmatprep.subr.mxu0 0.0
    %785 = vmatpush1.msra.mxu0 0.0
    %786 = vmatprep.subr.mxu0 0.0
    %787 = vmatpush1.msra.mxu0 0.0
    %788 = vmatprep.subr.mxu0 0.0
    %789 = vmatpush1.msra.mxu0 0.0
    %790 = vmatprep.subr.mxu0 0.0
    %791 = vmatpush1.msra.mxu0 0.0
    %792 = vmatprep.subr.mxu0 0.0
    %793 = vmatpush1.msra.mxu0 0.0
    %794 = vmatprep.subr.mxu0 0.0
    %795 = vmatpush1.msra.mxu0 0.0
    %796 = vmatprep.subr.mxu0 0.0
    %797 = vmatpush1.msra.mxu0 0.0
    %798 = vmatprep.subr.mxu0 0.0
    %799 = vmatpush1.msra.mxu0 0.0
    %800 = vmatprep.subr.mxu0 0.0
    %801 = vmatpush1.msra.mxu0 0.0
    %802 = vmatprep.subr.mxu0 0.0
    %803 = vmatpush1.msra.mxu0 0.0
    %804 = vmatprep.subr.mxu0 0.0
    %805 = vmatpush1.msra.mxu0 0.0
    %806 = vmatprep.subr.mxu0 0.0
    %807 = vmatpush1.msra.mxu0 0.0
    %808 = vmatprep.subr.mxu0 0.0
    %809 = vmatpush1.msra.mxu0 0.0
    %810 = vmatprep.subr.mxu0 0.0
    %811 = vmatpush1.msra.mxu0 0.0
    %812 = vmatprep.subr.mxu0 0.0
    %813 = vmatpush1.msra.mxu0 0.0
    %814 = vmatprep.subr.mxu0 0.0
    %815 = vmatpush1.msra.mxu0 0.0
    %816 = vmatprep.subr.mxu0 0.0
    %817 = vmatpush1.msra.mxu0 0.0
    %818 = vmatprep.subr.mxu0 0.0
    %819 = vmatpush1.msra.mxu0 0.0
    %820 = vmatprep.mubr.f32.mxu0 0.0
    %821 = vmatmul.mubr.f32.gmra.mrb[0].mxu0 %v750
    %v822 = vpop.f32.mrb[0].mxu0
    %v823 = vadd.f32 0.0, %v822
    %v824 = vpop.f32.mrb[0].mxu0
    %825 = vdwg.mxu0
    %v826 = vmul.f32 %v744, %v823
    %v827 = vld [vmem:[%s15] sm:$0xf]
    %vm828 = vcmask 31744
    %v830 = vsel %vm828, %v667, 0
    %vm832 = vcmask 1043456
    %v834 = vsel %vm832, %v827, 0
    %836 = vmatprep.subr.mxu0 0.0
    %837 = vmatpush1.msra.mxu0 %v834
    %838 = vmatprep.subr.mxu0 0.0
    %839 = vmatpush1.msra.mxu0 0.0
    %840 = vmatprep.subr.mxu0 0.0
    %841 = vmatpush1.msra.mxu0 0.0
    %842 = vmatprep.subr.mxu0 0.0
    %843 = vmatpush1.msra.mxu0 0.0
    %844 = vmatprep.subr.mxu0 0.0
    %845 = vmatpush1.msra.mxu0 0.0
    %846 = vmatprep.subr.mxu0 0.0
    %847 = vmatpush1.msra.mxu0 0.0
    %848 = vmatprep.subr.mxu0 0.0
    %849 = vmatpush1.msra.mxu0 0.0
    %850 = vmatprep.subr.mxu0 0.0
    %851 = vmatpush1.msra.mxu0 0.0
    %852 = vmatprep.subr.mxu0 0.0
    %853 = vmatpush1.msra.mxu0 0.0
    %854 = vmatprep.subr.mxu0 0.0
    %855 = vmatpush1.msra.mxu0 0.0
    %856 = vmatprep.subr.mxu0 0.0
    %857 = vmatpush1.msra.mxu0 0.0
    %858 = vmatprep.subr.mxu0 0.0
    %859 = vmatpush1.msra.mxu0 0.0
    %860 = vmatprep.subr.mxu0 0.0
    %861 = vmatpush1.msra.mxu0 0.0
    %862 = vmatprep.subr.mxu0 0.0
    %863 = vmatpush1.msra.mxu0 0.0
    %864 = vmatprep.subr.mxu0 0.0
    %865 = vmatpush1.msra.mxu0 0.0
    %866 = vmatprep.subr.mxu0 0.0
    %867 = vmatpush1.msra.mxu0 0.0
    %868 = vmatprep.subr.mxu0 0.0
    %869 = vmatpush1.msra.mxu0 0.0
    %870 = vmatprep.subr.mxu0 0.0
    %871 = vmatpush1.msra.mxu0 0.0
    %872 = vmatprep.subr.mxu0 0.0
    %873 = vmatpush1.msra.mxu0 0.0
    %874 = vmatprep.subr.mxu0 0.0
    %875 = vmatpush1.msra.mxu0 0.0
    %876 = vmatprep.subr.mxu0 0.0
    %877 = vmatpush1.msra.mxu0 0.0
    %878 = vmatprep.subr.mxu0 0.0
    %879 = vmatpush1.msra.mxu0 0.0
    %880 = vmatprep.subr.mxu0 0.0
    %881 = vmatpush1.msra.mxu0 0.0
    %882 = vmatprep.subr.mxu0 0.0
    %883 = vmatpush1.msra.mxu0 0.0
    %884 = vmatprep.subr.mxu0 0.0
    %885 = vmatpush1.msra.mxu0 0.0
    %886 = vmatprep.subr.mxu0 0.0
    %887 = vmatpush1.msra.mxu0 0.0
    %888 = vmatprep.subr.mxu0 0.0
    %889 = vmatpush1.msra.mxu0 0.0
    %890 = vmatprep.subr.mxu0 0.0
    %891 = vmatpush1.msra.mxu0 0.0
    %892 = vmatprep.subr.mxu0 0.0
    %893 = vmatpush1.msra.mxu0 0.0
    %894 = vmatprep.subr.mxu0 0.0
    %895 = vmatpush1.msra.mxu0 0.0
    %896 = vmatprep.subr.mxu0 0.0
    %897 = vmatpush1.msra.mxu0 0.0
    %898 = vmatprep.subr.mxu0 0.0
    %899 = vmatpush1.msra.mxu0 0.0
    %900 = vmatprep.mubr.f32.mxu0 0.0
    %901 = vmatmul.mubr.f32.gmra.mrb[0].mxu0 %v830
    %v902 = vpop.f32.mrb[0].mxu0
    %v903 = vadd.f32 0.0, %v902
    %v904 = vpop.f32.mrb[0].mxu0
    %905 = vdwg.mxu0
    %v906 = vmul.f32 %v826, %v903
    %v907 = vld [vmem:[%s16] sm:$0xff]
    %v908 = vld [vmem:[%s16 + $0x8] sm:$0xff]
    %v909 = vld [vmem:[%s16 + $0x10] sm:$0xff]
    %v910 = vld [vmem:[%s16 + $0x18] sm:$0xff]
    %v911 = vld [vmem:[%s16 + $0x20] sm:$0xff]
    %v912 = vld [vmem:[%s16 + $0x28] sm:$0xff]
    %v913 = vld [vmem:[%s16 + $0x30] sm:$0xff]
    %v914 = vld [vmem:[%s16 + $0x38] sm:$0xff]
    %v915 = vld [vmem:[%s16 + $0x40] sm:$0xff]
    %v916 = vld [vmem:[%s16 + $0x48] sm:$0xff]
    %v917 = vld [vmem:[%s16 + $0x50] sm:$0xff]
    %v918 = vld [vmem:[%s16 + $0x58] sm:$0xff]
    %v919 = vld [vmem:[%s16 + $0x60] sm:$0xff]
    %v920 = vld [vmem:[%s16 + $0x68] sm:$0xff]
    %v921 = vld [vmem:[%s16 + $0x70] sm:$0xff]
    %vm922 = vcmask 982016
    %v924 = vsel %vm922, %v906, 0
    %926 = vmatprep.subr.mxu0 0.0
    %927 = vmatpush1.msra.mxu0 %v907
    %928 = vmatprep.subr.mxu0 0.0
    %929 = vmatpush1.msra.mxu0 %v908
    %930 = vmatprep.subr.mxu0 0.0
    %931 = vmatpush1.msra.mxu0 %v909
    %932 = vmatprep.subr.mxu0 0.0
    %933 = vmatpush1.msra.mxu0 %v910
    %934 = vmatprep.subr.mxu0 0.0
    %935 = vmatpush1.msra.mxu0 %v911
    %936 = vmatprep.subr.mxu0 0.0
    %937 = vmatpush1.msra.mxu0 %v912
    %938 = vmatprep.subr.mxu0 0.0
    %939 = vmatpush1.msra.mxu0 %v913
    %940 = vmatprep.subr.mxu0 0.0
    %941 = vmatpush1.msra.mxu0 %v914
    %942 = vmatprep.subr.mxu0 0.0
    %943 = vmatpush1.msra.mxu0 %v915
    %944 = vmatprep.subr.mxu0 0.0
    %945 = vmatpush1.msra.mxu0 %v916
    %946 = vmatprep.subr.mxu0 0.0
    %947 = vmatpush1.msra.mxu0 %v917
    %948 = vmatprep.subr.mxu0 0.0
    %949 = vmatpush1.msra.mxu0 %v918
    %950 = vmatprep.subr.mxu0 0.0
    %951 = vmatpush1.msra.mxu0 %v919
    %952 = vmatprep.subr.mxu0 0.0
    %953 = vmatpush1.msra.mxu0 %v920
    %954 = vmatprep.subr.mxu0 0.0
    %955 = vmatpush1.msra.mxu0 %v921
    %956 = vmatprep.subr.mxu0 0.0
    %957 = vmatpush1.msra.mxu0 0.0
    %958 = vmatprep.subr.mxu0 0.0
    %959 = vmatpush1.msra.mxu0 0.0
    %960 = vmatprep.subr.mxu0 0.0
    %961 = vmatpush1.msra.mxu0 0.0
    %962 = vmatprep.subr.mxu0 0.0
    %963 = vmatpush1.msra.mxu0 0.0
    %964 = vmatprep.subr.mxu0 0.0
    %965 = vmatpush1.msra.mxu0 0.0
    %966 = vmatprep.subr.mxu0 0.0
    %967 = vmatpush1.msra.mxu0 0.0
    %968 = vmatprep.subr.mxu0 0.0
    %969 = vmatpush1.msra.mxu0 0.0
    %970 = vmatprep.subr.mxu0 0.0
    %971 = vmatpush1.msra.mxu0 0.0
    %972 = vmatprep.subr.mxu0 0.0
    %973 = vmatpush1.msra.mxu0 0.0
    %974 = vmatprep.subr.mxu0 0.0
    %975 = vmatpush1.msra.mxu0 0.0
    %976 = vmatprep.subr.mxu0 0.0
    %977 = vmatpush1.msra.mxu0 0.0
    %978 = vmatprep.subr.mxu0 0.0
    %979 = vmatpush1.msra.mxu0 0.0
    %980 = vmatprep.subr.mxu0 0.0
    %981 = vmatpush1.msra.mxu0 0.0
    %982 = vmatprep.subr.mxu0 0.0
    %983 = vmatpush1.msra.mxu0 0.0
    %984 = vmatprep.subr.mxu0 0.0
    %985 = vmatpush1.msra.mxu0 0.0
    %986 = vmatprep.subr.mxu0 0.0
    %987 = vmatpush1.msra.mxu0 0.0
    %988 = vmatprep.subr.mxu0 0.0
    %989 = vmatpush1.msra.mxu0 0.0
    %990 = vmatprep.mubr.f32.mxu0 0.0
    %991 = vmatmul.mubr.f32.gmra.mrb[0].mxu0 %v924
    %v992 = vpop.f32.mrb[0].mxu0
    %v993 = vadd.f32 0.0, %v992
    %v994 = vpop.f32.mrb[0].mxu0
    %995 = vdwg.mxu0
    %vm996 = vcmask 82944
    %997 = vst.msk [vmem:[#allocation2] sm:$0x3] %vm996, %v993
    // Predicated region
    $region70: #{leaves_net_forward.7} parent=1 // pred_check
      _
    $region71: #{leaves_net_forward.7} parent=1 // pred_check_branch
      %999 = sbr.rel (0) target = $region73
    $region72: #{leaves_net_forward.7} parent=1 // pred_region
      %s1001 = ssub.s32 32, 32
      %1002 = vsyncadd [#allocation3], %s1001
      %s1004 = sshll.u32 [#allocation2], 4
      %s1005 = int_to_ptr.vmem [resolvable:$true] %s1004
      %1007 = dma.vmem_to_hbm [thread:$0]  %s1005, 32, %s17, [#allocation3]
    $region73: #{leaves_net_forward.7} parent=1 // pred_fallthru
      _
    // Predicated region
    $region74: #{leaves_net_forward.7} parent=1 // pred_check
      _
    $region75: #{leaves_net_forward.7} parent=1 // pred_check_branch
      %1009 = sbr.rel (0) target = $region77
    $region76: #{leaves_net_forward.7} parent=1 // pred_region
      %1010 = dma.done [#allocation3], 32
    $region77: #{leaves_net_forward.7} parent=1 // pred_fallthru
      _
    %1011 = vsyncpa [#allocation3], 1

</llo_original>
